<compile_context>
chip_gen: v6e
topology: v6e:2x2x1
jax: 0.10.0
libtpu: 0.0.40
codegen_flags: <defaults>
</compile_context>

<pallas_src>
import functools

import jax
import jax.numpy as jnp
from jax import lax
from jax.experimental import pallas as pl
from jax.experimental.pallas import tpu as pltpu


# ---------------------------------------------------------------------------
# Fused Pallas kernel: conv3x3 -> +temb(+b1) -> SiLU -> conv3x3 -> +b2
# All spatial work is done on a flattened padded grid of length
# NP = N*(H+2)*(W+2); columns [s0, s0+Lc) are the positions whose full 3x3
# receptive field lies inside the flat buffer (real pixels plus some padding
# positions that get masked to zero).
# ---------------------------------------------------------------------------
def fused_sd_kernel(xpad_ref, w1_ref, w2_ref, tb_ref, b2_ref, mask_ref, o_ref,
                    hpad_scr, *, Wp, NP, Lc, s0):
    # xpad_ref: (C_in, NP)    zero-padded input, flattened (sample-major, row-major)
    # w1_ref:   (9, C_mid, C_in)   conv1 weights, tap k = ky*3 + kx
    # w2_ref:   (9, C_out, C_mid)  conv2 weights, same packing
    # tb_ref:   (C_mid, Lc)   per-position timestep embedding (+ folded b1)
    # b2_ref:   (C_out, 1)    conv2 bias (column layout -> lane broadcast)
    # mask_ref: (1, Lc)       1.0 at real-pixel positions, 0.0 at padding
    # o_ref:    (C_out, Lc)   lane-dense output block
    # hpad_scr: VMEM (C_mid, NP)  padded hidden activation (never leaves VMEM)

    def conv_taps(src_ref, w_ref):
        # 9-tap accumulate: no im2col patch matrix, just shifted VMEM loads
        # feeding tiny (C_dst, C_src) x (C_src, Lc) MXU matmuls.
        acc = None
        for k in range(9):
            dy, dx = divmod(k, 3)
            off = dy * Wp + dx                      # static per-tap lane offset
            win = src_ref[:, off:off + Lc]          # (C_src, Lc) shifted load
            contrib = jnp.dot(w_ref[k], win, preferred_element_type=jnp.float32)
            acc = contrib if acc is None else acc + contrib
        return acc                                  # (C_dst, Lc), f32

    # ---- conv1 (3x3, SAME) + (temb + b1) + SiLU, all lane-dense ----
    h = conv_taps(xpad_ref, w1_ref) + tb_ref[...]
    h = h * jax.nn.sigmoid(h)                       # SiLU epilogue in f32 (EUP)
    h = h * mask_ref[...]                           # zero the padding positions

    # ---- padded hidden activation: interior write + two tiny end strips ----
    c_mid = h.shape[0]
    hpad_scr[:, 0:s0] = jnp.zeros((c_mid, s0), jnp.float32)
    hpad_scr[:, s0 + Lc:NP] = jnp.zeros((c_mid, NP - s0 - Lc), jnp.float32)
    hpad_scr[:, s0:s0 + Lc] = h

    # ---- conv2 (3x3, SAME) + bias: h never leaves VMEM ----
    o_ref[...] = conv_taps(hpad_scr, w2_ref) + b2_ref[...]


# ---------------------------------------------------------------------------
# Wrappers
# ---------------------------------------------------------------------------
def sinusoidal_embed(t, dim):
    # glue: tiny elementwise timestep embedding (left to XLA)
    half = dim // 2
    freqs = jnp.exp(-jnp.log(10000.0) * jnp.arange(half, dtype=jnp.float32) / half)
    args = t.astype(jnp.float32)[:, None] * freqs[None, :]
    return jnp.concatenate([jnp.sin(args), jnp.cos(args)], axis=-1)  # (N, dim)


def diff_forward(params, x_nchw, t):
    """Mirrors Diff.forward: reshape t to 1-D, then run the sd stand-in."""
    t = t.reshape(t.shape[-1])                       # t = t.reshape(t.size(-1))
    n, c_in, h_, w_ = x_nchw.shape
    c_mid = params["w1"].shape[1]
    c_out = params["w2"].shape[1]

    hp, wp = h_ + 2, w_ + 2                          # padded spatial dims
    p = hp * wp                                      # padded pixels per sample
    nflat = n * p                                    # combined flat length
    s0 = wp + 1                                      # first interior position
    lc = (n - 1) * p + (p - 2 * s0)                  # interior column count

    # Tiny timestep MLP: (N,8)@(8,C) + SiLU — kept in XLA (a custom call would
    # cost more than it saves).  conv1 bias b1 folded in here (free win).
    emb = sinusoidal_embed(t, params["w_t"].shape[0])
    temb = jax.nn.silu(emb @ params["w_t"] + params["b_t"]) + params["b1"][None, :]
    tb_lanes = jnp.repeat(jnp.transpose(temb), p, axis=1)[:, s0:s0 + lc]  # (C_mid, Lc)

    # Layout plumbing (wrapper side): NCHW -> (C, N, Hp, Wp) zero-padded
    # -> flattened (C, N*Hp*Wp).  ~10 KiB at these sizes.
    xpad = jnp.pad(jnp.transpose(x_nchw, (1, 0, 2, 3)),
                   ((0, 0), (0, 0), (1, 1), (1, 1))).reshape(c_in, nflat)

    # Interior (real-pixel) mask over the combined flat axis.
    q = jnp.arange(s0, s0 + lc)
    row = (q % p) // wp
    col = q % wp
    mask = (((row >= 1) & (row <= h_) & (col >= 1) & (col <= w_))
            .astype(jnp.float32))[None, :]           # (1, Lc)

    kernel = functools.partial(fused_sd_kernel, Wp=wp, NP=nflat, Lc=lc, s0=s0)
    out_flat = pl.pallas_call(
        kernel,
        out_shape=jax.ShapeDtypeStruct((c_out, lc), jnp.float32),
        grid=(1,),                                   # batch folded: one step
        in_specs=[
            pl.BlockSpec((c_in, nflat), lambda i: (0, 0)),
            pl.BlockSpec((9, c_mid, c_in), lambda i: (0, 0, 0)),
            pl.BlockSpec((9, c_out, c_mid), lambda i: (0, 0, 0)),
            pl.BlockSpec((c_mid, lc), lambda i: (0, 0)),
            pl.BlockSpec((c_out, 1), lambda i: (0, 0)),
            pl.BlockSpec((1, lc), lambda i: (0, 0)),
        ],
        out_specs=pl.BlockSpec((c_out, lc), lambda i: (0, 0)),
        scratch_shapes=[pltpu.VMEM((c_mid, nflat), jnp.float32)],
        compiler_params=pltpu.CompilerParams(
            dimension_semantics=("arbitrary",)),
    )(xpad, params["w1"], params["w2"], tb_lanes, params["b2c"], mask)

    # Un-flatten: pad back to the full padded grid, slice real pixels, to NCHW.
    out_np = jnp.pad(out_flat, ((0, 0), (s0, nflat - s0 - lc)))
    out = out_np.reshape(c_out, n, hp, wp)[:, :, 1:h_ + 1, 1:w_ + 1]
    return jnp.transpose(out, (1, 0, 2, 3))          # (N, C_out, H, W)


# ---------------------------------------------------------------------------
# Pure-JAX reference (for verification)
# ---------------------------------------------------------------------------
def diff_forward_ref(params, x_nchw, t, w1_oihw, w2_oihw):
    t = t.reshape(t.shape[-1])
    emb = sinusoidal_embed(t, params["w_t"].shape[0])
    temb = jax.nn.silu(emb @ params["w_t"] + params["b_t"])
    dn = ("NCHW", "OIHW", "NCHW")
    h = lax.conv_general_dilated(x_nchw, w1_oihw, (1, 1), "SAME",
                                 dimension_numbers=dn,
                                 precision=lax.Precision.HIGHEST)
    h = h + params["b1"][None, :, None, None] + temb[:, :, None, None]
    h = jax.nn.silu(h)
    out = lax.conv_general_dilated(h, w2_oihw, (1, 1), "SAME",
                                   dimension_numbers=dn,
                                   precision=lax.Precision.HIGHEST)
    out = out + params["b2c"][:, 0][None, :, None, None]
    return out


# ---------------------------------------------------------------------------
# Main
# ---------------------------------------------------------------------------
if __name__ == "__main__":
    key = jax.random.PRNGKey(0)
    N, C, H, W = 2, 4, 16, 16
    EMB = 8

    k_x, k_t, k_wt, k_w1, k_w2 = jax.random.split(key, 5)

    x = jax.random.normal(k_x, (N, C, H, W), jnp.float32)
    t = jax.random.uniform(k_t, (1, N), jnp.float32) * 100.0   # reshaped to (N,) inside

    # deterministic synthetic parameters
    w_t = jax.random.normal(k_wt, (EMB, C), jnp.float32) * 0.1
    b_t = jnp.zeros((C,), jnp.float32)
    w1_oihw = jax.random.normal(k_w1, (C, C, 3, 3), jnp.float32) * 0.1
    w2_oihw = jax.random.normal(k_w2, (C, C, 3, 3), jnp.float32) * 0.1
    b1 = jnp.full((C,), 0.01, jnp.float32)       # folded into temb in the wrapper
    b2 = jnp.full((C, 1), -0.01, jnp.float32)    # column layout (lane broadcast)

    # Tap-major weight packing: w[k][m, c] = w_oihw[m, c, ky, kx], k = ky*3 + kx
    def pack_taps(w_oihw):
        o, i, kh, kw = w_oihw.shape
        return jnp.transpose(w_oihw, (2, 3, 0, 1)).reshape(kh * kw, o, i)  # (9, O, I)

    params = {
        "w_t": w_t, "b_t": b_t,
        "w1": pack_taps(w1_oihw), "b1": b1,
        "w2": pack_taps(w2_oihw), "b2c": b2,
    }

    out = jax.jit(diff_forward)(params, x, t)
    out = jax.block_until_ready(out)

    ref = diff_forward_ref(params, x, t, w1_oihw, w2_oihw)
    assert out.shape == (N, C, H, W)
    assert jnp.allclose(out, ref, rtol=1e-3, atol=1e-3), "mismatch vs reference"

    print("KERNEL_OK")
</pallas_src>

<mosaic_0001>
module attributes {stable_mosaic.version = 11 : i64} {
  func.func @fused_sd_kernel(%arg0: i32, %arg1: memref<4x648xf32, #tpu.memory_space<vmem>>, %arg2: memref<9x4x4xf32, #tpu.memory_space<vmem>>, %arg3: memref<9x4x4xf32, #tpu.memory_space<vmem>>, %arg4: memref<4x610xf32, #tpu.memory_space<vmem>>, %arg5: memref<4x1xf32, #tpu.memory_space<vmem>>, %arg6: memref<1x610xf32, #tpu.memory_space<vmem>>, %arg7: memref<4x610xf32, #tpu.memory_space<vmem>>, %arg8: memref<4x648xf32, #tpu.memory_space<vmem>>) attributes {dimension_semantics = [#tpu.dimension_semantics<arbitrary>], iteration_bounds = array<i64: 1>, scalar_prefetch = 0 : i64, scratch_operands = 1 : i64, tpu.core_type = #tpu.core_type<tc>, window_params = [{pipeline_mode = #tpu.pipeline_mode<synchronous>, transform_indices = @transform_0, window_bounds = array<i64: 4, 648>}, {pipeline_mode = #tpu.pipeline_mode<synchronous>, transform_indices = @transform_1, window_bounds = array<i64: 9, 4, 4>}, {pipeline_mode = #tpu.pipeline_mode<synchronous>, transform_indices = @transform_2, window_bounds = array<i64: 9, 4, 4>}, {pipeline_mode = #tpu.pipeline_mode<synchronous>, transform_indices = @transform_3, window_bounds = array<i64: 4, 610>}, {pipeline_mode = #tpu.pipeline_mode<synchronous>, transform_indices = @transform_4, window_bounds = array<i64: 4, 1>}, {pipeline_mode = #tpu.pipeline_mode<synchronous>, transform_indices = @transform_5, window_bounds = array<i64: 1, 610>}, {pipeline_mode = #tpu.pipeline_mode<synchronous>, transform_indices = @transform_6, window_bounds = array<i64: 4, 610>}]} {
    %c0 = arith.constant 0 : index
    %c0_0 = arith.constant 0 : index
    %0 = vector.load %arg1[%c0, %c0_0] : memref<4x648xf32, #tpu.memory_space<vmem>>, vector<4x610xf32>
    %c0_1 = arith.constant 0 : index
    %c0_2 = arith.constant 0 : index
    %c0_3 = arith.constant 0 : index
    %1 = vector.load %arg2[%c0_1, %c0_2, %c0_3] : memref<9x4x4xf32, #tpu.memory_space<vmem>>, vector<1x4x4xf32>
    %2 = vector.shape_cast %1 : vector<1x4x4xf32> to vector<4x4xf32>
    %cst = arith.constant dense<0.000000e+00> : vector<4x610xf32>
    %3 = tpu.matmul %2, %0, %cst {dimension_numbers = #tpu.dot_dimension_numbers<[1], [0], [0], [1], [0, 0, 1, 1], [], []>} : vector<4x4xf32>, vector<4x610xf32>, vector<4x610xf32> -> vector<4x610xf32>
    %c0_4 = arith.constant 0 : index
    %c1 = arith.constant 1 : index
    %4 = vector.load %arg1[%c0_4, %c1] : memref<4x648xf32, #tpu.memory_space<vmem>>, vector<4x610xf32>
    %c1_5 = arith.constant 1 : index
    %c0_6 = arith.constant 0 : index
    %c0_7 = arith.constant 0 : index
    %5 = vector.load %arg2[%c1_5, %c0_6, %c0_7] : memref<9x4x4xf32, #tpu.memory_space<vmem>>, vector<1x4x4xf32>
    %6 = vector.shape_cast %5 : vector<1x4x4xf32> to vector<4x4xf32>
    %cst_8 = arith.constant dense<0.000000e+00> : vector<4x610xf32>
    %7 = tpu.matmul %6, %4, %cst_8 {dimension_numbers = #tpu.dot_dimension_numbers<[1], [0], [0], [1], [0, 0, 1, 1], [], []>} : vector<4x4xf32>, vector<4x610xf32>, vector<4x610xf32> -> vector<4x610xf32>
    %8 = arith.addf %3, %7 : vector<4x610xf32>
    %c0_9 = arith.constant 0 : index
    %c2 = arith.constant 2 : index
    %9 = vector.load %arg1[%c0_9, %c2] : memref<4x648xf32, #tpu.memory_space<vmem>>, vector<4x610xf32>
    %c2_10 = arith.constant 2 : index
    %c0_11 = arith.constant 0 : index
    %c0_12 = arith.constant 0 : index
    %10 = vector.load %arg2[%c2_10, %c0_11, %c0_12] : memref<9x4x4xf32, #tpu.memory_space<vmem>>, vector<1x4x4xf32>
    %11 = vector.shape_cast %10 : vector<1x4x4xf32> to vector<4x4xf32>
    %cst_13 = arith.constant dense<0.000000e+00> : vector<4x610xf32>
    %12 = tpu.matmul %11, %9, %cst_13 {dimension_numbers = #tpu.dot_dimension_numbers<[1], [0], [0], [1], [0, 0, 1, 1], [], []>} : vector<4x4xf32>, vector<4x610xf32>, vector<4x610xf32> -> vector<4x610xf32>
    %13 = arith.addf %8, %12 : vector<4x610xf32>
    %c0_14 = arith.constant 0 : index
    %c18 = arith.constant 18 : index
    %14 = vector.load %arg1[%c0_14, %c18] : memref<4x648xf32, #tpu.memory_space<vmem>>, vector<4x610xf32>
    %c3 = arith.constant 3 : index
    %c0_15 = arith.constant 0 : index
    %c0_16 = arith.constant 0 : index
    %15 = vector.load %arg2[%c3, %c0_15, %c0_16] : memref<9x4x4xf32, #tpu.memory_space<vmem>>, vector<1x4x4xf32>
    %16 = vector.shape_cast %15 : vector<1x4x4xf32> to vector<4x4xf32>
    %cst_17 = arith.constant dense<0.000000e+00> : vector<4x610xf32>
    %17 = tpu.matmul %16, %14, %cst_17 {dimension_numbers = #tpu.dot_dimension_numbers<[1], [0], [0], [1], [0, 0, 1, 1], [], []>} : vector<4x4xf32>, vector<4x610xf32>, vector<4x610xf32> -> vector<4x610xf32>
    %18 = arith.addf %13, %17 : vector<4x610xf32>
    %c0_18 = arith.constant 0 : index
    %c19 = arith.constant 19 : index
    %19 = vector.load %arg1[%c0_18, %c19] : memref<4x648xf32, #tpu.memory_space<vmem>>, vector<4x610xf32>
    %c4 = arith.constant 4 : index
    %c0_19 = arith.constant 0 : index
    %c0_20 = arith.constant 0 : index
    %20 = vector.load %arg2[%c4, %c0_19, %c0_20] : memref<9x4x4xf32, #tpu.memory_space<vmem>>, vector<1x4x4xf32>
    %21 = vector.shape_cast %20 : vector<1x4x4xf32> to vector<4x4xf32>
    %cst_21 = arith.constant dense<0.000000e+00> : vector<4x610xf32>
    %22 = tpu.matmul %21, %19, %cst_21 {dimension_numbers = #tpu.dot_dimension_numbers<[1], [0], [0], [1], [0, 0, 1, 1], [], []>} : vector<4x4xf32>, vector<4x610xf32>, vector<4x610xf32> -> vector<4x610xf32>
    %23 = arith.addf %18, %22 : vector<4x610xf32>
    %c0_22 = arith.constant 0 : index
    %c20 = arith.constant 20 : index
    %24 = vector.load %arg1[%c0_22, %c20] : memref<4x648xf32, #tpu.memory_space<vmem>>, vector<4x610xf32>
    %c5 = arith.constant 5 : index
    %c0_23 = arith.constant 0 : index
    %c0_24 = arith.constant 0 : index
    %25 = vector.load %arg2[%c5, %c0_23, %c0_24] : memref<9x4x4xf32, #tpu.memory_space<vmem>>, vector<1x4x4xf32>
    %26 = vector.shape_cast %25 : vector<1x4x4xf32> to vector<4x4xf32>
    %cst_25 = arith.constant dense<0.000000e+00> : vector<4x610xf32>
    %27 = tpu.matmul %26, %24, %cst_25 {dimension_numbers = #tpu.dot_dimension_numbers<[1], [0], [0], [1], [0, 0, 1, 1], [], []>} : vector<4x4xf32>, vector<4x610xf32>, vector<4x610xf32> -> vector<4x610xf32>
    %28 = arith.addf %23, %27 : vector<4x610xf32>
    %c0_26 = arith.constant 0 : index
    %c36 = arith.constant 36 : index
    %29 = vector.load %arg1[%c0_26, %c36] : memref<4x648xf32, #tpu.memory_space<vmem>>, vector<4x610xf32>
    %c6 = arith.constant 6 : index
    %c0_27 = arith.constant 0 : index
    %c0_28 = arith.constant 0 : index
    %30 = vector.load %arg2[%c6, %c0_27, %c0_28] : memref<9x4x4xf32, #tpu.memory_space<vmem>>, vector<1x4x4xf32>
    %31 = vector.shape_cast %30 : vector<1x4x4xf32> to vector<4x4xf32>
    %cst_29 = arith.constant dense<0.000000e+00> : vector<4x610xf32>
    %32 = tpu.matmul %31, %29, %cst_29 {dimension_numbers = #tpu.dot_dimension_numbers<[1], [0], [0], [1], [0, 0, 1, 1], [], []>} : vector<4x4xf32>, vector<4x610xf32>, vector<4x610xf32> -> vector<4x610xf32>
    %33 = arith.addf %28, %32 : vector<4x610xf32>
    %c0_30 = arith.constant 0 : index
    %c37 = arith.constant 37 : index
    %34 = vector.load %arg1[%c0_30, %c37] : memref<4x648xf32, #tpu.memory_space<vmem>>, vector<4x610xf32>
    %c7 = arith.constant 7 : index
    %c0_31 = arith.constant 0 : index
    %c0_32 = arith.constant 0 : index
    %35 = vector.load %arg2[%c7, %c0_31, %c0_32] : memref<9x4x4xf32, #tpu.memory_space<vmem>>, vector<1x4x4xf32>
    %36 = vector.shape_cast %35 : vector<1x4x4xf32> to vector<4x4xf32>
    %cst_33 = arith.constant dense<0.000000e+00> : vector<4x610xf32>
    %37 = tpu.matmul %36, %34, %cst_33 {dimension_numbers = #tpu.dot_dimension_numbers<[1], [0], [0], [1], [0, 0, 1, 1], [], []>} : vector<4x4xf32>, vector<4x610xf32>, vector<4x610xf32> -> vector<4x610xf32>
    %38 = arith.addf %33, %37 : vector<4x610xf32>
    %c0_34 = arith.constant 0 : index
    %c38 = arith.constant 38 : index
    %39 = vector.load %arg1[%c0_34, %c38] : memref<4x648xf32, #tpu.memory_space<vmem>>, vector<4x610xf32>
    %c8 = arith.constant 8 : index
    %c0_35 = arith.constant 0 : index
    %c0_36 = arith.constant 0 : index
    %40 = vector.load %arg2[%c8, %c0_35, %c0_36] : memref<9x4x4xf32, #tpu.memory_space<vmem>>, vector<1x4x4xf32>
    %41 = vector.shape_cast %40 : vector<1x4x4xf32> to vector<4x4xf32>
    %cst_37 = arith.constant dense<0.000000e+00> : vector<4x610xf32>
    %42 = tpu.matmul %41, %39, %cst_37 {dimension_numbers = #tpu.dot_dimension_numbers<[1], [0], [0], [1], [0, 0, 1, 1], [], []>} : vector<4x4xf32>, vector<4x610xf32>, vector<4x610xf32> -> vector<4x610xf32>
    %43 = arith.addf %38, %42 : vector<4x610xf32>
    %c0_38 = arith.constant 0 : index
    %c0_39 = arith.constant 0 : index
    %44 = vector.load %arg4[%c0_38, %c0_39] : memref<4x610xf32, #tpu.memory_space<vmem>>, vector<4x610xf32>
    %45 = arith.addf %43, %44 : vector<4x610xf32>
    %46 = arith.negf %45 : vector<4x610xf32>
    %47 = math.exp %46 : vector<4x610xf32>
    %cst_40 = arith.constant 1.000000e+00 : f32
    %48 = vector.broadcast %cst_40 : f32 to vector<4x610xf32>
    %49 = arith.addf %48, %47 : vector<4x610xf32>
    %50 = arith.divf %48, %49 : vector<4x610xf32>
    %51 = arith.mulf %45, %50 : vector<4x610xf32>
    %c0_41 = arith.constant 0 : index
    %c0_42 = arith.constant 0 : index
    %52 = vector.load %arg6[%c0_41, %c0_42] : memref<1x610xf32, #tpu.memory_space<vmem>>, vector<1x610xf32>
    %53 = vector.broadcast %52 : vector<1x610xf32> to vector<4x610xf32>
    %54 = arith.mulf %51, %53 : vector<4x610xf32>
    %cst_43 = arith.constant 0.000000e+00 : f32
    %55 = vector.broadcast %cst_43 : f32 to vector<4x19xf32>
    %c0_44 = arith.constant 0 : index
    %c0_45 = arith.constant 0 : index
    %56 = vector.load %arg8[%c0_44, %c0_45] : memref<4x648xf32, #tpu.memory_space<vmem>>, vector<4x19xf32>
    tpu.vector_store %arg8[%c0_44, %c0_45], %55 {strides = array<i32>} : memref<4x648xf32, #tpu.memory_space<vmem>>, vector<4x19xf32>,
    %cst_46 = arith.constant 0.000000e+00 : f32
    %57 = vector.broadcast %cst_46 : f32 to vector<4x19xf32>
    %c0_47 = arith.constant 0 : index
    %c629 = arith.constant 629 : index
    %58 = vector.load %arg8[%c0_47, %c629] : memref<4x648xf32, #tpu.memory_space<vmem>>, vector<4x19xf32>
    tpu.vector_store %arg8[%c0_47, %c629], %57 {strides = array<i32>} : memref<4x648xf32, #tpu.memory_space<vmem>>, vector<4x19xf32>,
    %c0_48 = arith.constant 0 : index
    %c19_49 = arith.constant 19 : index
    %59 = vector.load %arg8[%c0_48, %c19_49] : memref<4x648xf32, #tpu.memory_space<vmem>>, vector<4x610xf32>
    tpu.vector_store %arg8[%c0_48, %c19_49], %54 {strides = array<i32>} : memref<4x648xf32, #tpu.memory_space<vmem>>, vector<4x610xf32>,
    %c0_50 = arith.constant 0 : index
    %c0_51 = arith.constant 0 : index
    %60 = vector.load %arg8[%c0_50, %c0_51] : memref<4x648xf32, #tpu.memory_space<vmem>>, vector<4x610xf32>
    %c0_52 = arith.constant 0 : index
    %c0_53 = arith.constant 0 : index
    %c0_54 = arith.constant 0 : index
    %61 = vector.load %arg3[%c0_52, %c0_53, %c0_54] : memref<9x4x4xf32, #tpu.memory_space<vmem>>, vector<1x4x4xf32>
    %62 = vector.shape_cast %61 : vector<1x4x4xf32> to vector<4x4xf32>
    %cst_55 = arith.constant dense<0.000000e+00> : vector<4x610xf32>
    %63 = tpu.matmul %62, %60, %cst_55 {dimension_numbers = #tpu.dot_dimension_numbers<[1], [0], [0], [1], [0, 0, 1, 1], [], []>} : vector<4x4xf32>, vector<4x610xf32>, vector<4x610xf32> -> vector<4x610xf32>
    %c0_56 = arith.constant 0 : index
    %c1_57 = arith.constant 1 : index
    %64 = vector.load %arg8[%c0_56, %c1_57] : memref<4x648xf32, #tpu.memory_space<vmem>>, vector<4x610xf32>
    %c1_58 = arith.constant 1 : index
    %c0_59 = arith.constant 0 : index
    %c0_60 = arith.constant 0 : index
    %65 = vector.load %arg3[%c1_58, %c0_59, %c0_60] : memref<9x4x4xf32, #tpu.memory_space<vmem>>, vector<1x4x4xf32>
    %66 = vector.shape_cast %65 : vector<1x4x4xf32> to vector<4x4xf32>
    %cst_61 = arith.constant dense<0.000000e+00> : vector<4x610xf32>
    %67 = tpu.matmul %66, %64, %cst_61 {dimension_numbers = #tpu.dot_dimension_numbers<[1], [0], [0], [1], [0, 0, 1, 1], [], []>} : vector<4x4xf32>, vector<4x610xf32>, vector<4x610xf32> -> vector<4x610xf32>
    %68 = arith.addf %63, %67 : vector<4x610xf32>
    %c0_62 = arith.constant 0 : index
    %c2_63 = arith.constant 2 : index
    %69 = vector.load %arg8[%c0_62, %c2_63] : memref<4x648xf32, #tpu.memory_space<vmem>>, vector<4x610xf32>
    %c2_64 = arith.constant 2 : index
    %c0_65 = arith.constant 0 : index
    %c0_66 = arith.constant 0 : index
    %70 = vector.load %arg3[%c2_64, %c0_65, %c0_66] : memref<9x4x4xf32, #tpu.memory_space<vmem>>, vector<1x4x4xf32>
    %71 = vector.shape_cast %70 : vector<1x4x4xf32> to vector<4x4xf32>
    %cst_67 = arith.constant dense<0.000000e+00> : vector<4x610xf32>
    %72 = tpu.matmul %71, %69, %cst_67 {dimension_numbers = #tpu.dot_dimension_numbers<[1], [0], [0], [1], [0, 0, 1, 1], [], []>} : vector<4x4xf32>, vector<4x610xf32>, vector<4x610xf32> -> vector<4x610xf32>
    %73 = arith.addf %68, %72 : vector<4x610xf32>
    %c0_68 = arith.constant 0 : index
    %c18_69 = arith.constant 18 : index
    %74 = vector.load %arg8[%c0_68, %c18_69] : memref<4x648xf32, #tpu.memory_space<vmem>>, vector<4x610xf32>
    %c3_70 = arith.constant 3 : index
    %c0_71 = arith.constant 0 : index
    %c0_72 = arith.constant 0 : index
    %75 = vector.load %arg3[%c3_70, %c0_71, %c0_72] : memref<9x4x4xf32, #tpu.memory_space<vmem>>, vector<1x4x4xf32>
    %76 = vector.shape_cast %75 : vector<1x4x4xf32> to vector<4x4xf32>
    %cst_73 = arith.constant dense<0.000000e+00> : vector<4x610xf32>
    %77 = tpu.matmul %76, %74, %cst_73 {dimension_numbers = #tpu.dot_dimension_numbers<[1], [0], [0], [1], [0, 0, 1, 1], [], []>} : vector<4x4xf32>, vector<4x610xf32>, vector<4x610xf32> -> vector<4x610xf32>
    %78 = arith.addf %73, %77 : vector<4x610xf32>
    %c0_74 = arith.constant 0 : index
    %c19_75 = arith.constant 19 : index
    %79 = vector.load %arg8[%c0_74, %c19_75] : memref<4x648xf32, #tpu.memory_space<vmem>>, vector<4x610xf32>
    %c4_76 = arith.constant 4 : index
    %c0_77 = arith.constant 0 : index
    %c0_78 = arith.constant 0 : index
    %80 = vector.load %arg3[%c4_76, %c0_77, %c0_78] : memref<9x4x4xf32, #tpu.memory_space<vmem>>, vector<1x4x4xf32>
    %81 = vector.shape_cast %80 : vector<1x4x4xf32> to vector<4x4xf32>
    %cst_79 = arith.constant dense<0.000000e+00> : vector<4x610xf32>
    %82 = tpu.matmul %81, %79, %cst_79 {dimension_numbers = #tpu.dot_dimension_numbers<[1], [0], [0], [1], [0, 0, 1, 1], [], []>} : vector<4x4xf32>, vector<4x610xf32>, vector<4x610xf32> -> vector<4x610xf32>
    %83 = arith.addf %78, %82 : vector<4x610xf32>
    %c0_80 = arith.constant 0 : index
    %c20_81 = arith.constant 20 : index
    %84 = vector.load %arg8[%c0_80, %c20_81] : memref<4x648xf32, #tpu.memory_space<vmem>>, vector<4x610xf32>
    %c5_82 = arith.constant 5 : index
    %c0_83 = arith.constant 0 : index
    %c0_84 = arith.constant 0 : index
    %85 = vector.load %arg3[%c5_82, %c0_83, %c0_84] : memref<9x4x4xf32, #tpu.memory_space<vmem>>, vector<1x4x4xf32>
    %86 = vector.shape_cast %85 : vector<1x4x4xf32> to vector<4x4xf32>
    %cst_85 = arith.constant dense<0.000000e+00> : vector<4x610xf32>
    %87 = tpu.matmul %86, %84, %cst_85 {dimension_numbers = #tpu.dot_dimension_numbers<[1], [0], [0], [1], [0, 0, 1, 1], [], []>} : vector<4x4xf32>, vector<4x610xf32>, vector<4x610xf32> -> vector<4x610xf32>
    %88 = arith.addf %83, %87 : vector<4x610xf32>
    %c0_86 = arith.constant 0 : index
    %c36_87 = arith.constant 36 : index
    %89 = vector.load %arg8[%c0_86, %c36_87] : memref<4x648xf32, #tpu.memory_space<vmem>>, vector<4x610xf32>
    %c6_88 = arith.constant 6 : index
    %c0_89 = arith.constant 0 : index
    %c0_90 = arith.constant 0 : index
    %90 = vector.load %arg3[%c6_88, %c0_89, %c0_90] : memref<9x4x4xf32, #tpu.memory_space<vmem>>, vector<1x4x4xf32>
    %91 = vector.shape_cast %90 : vector<1x4x4xf32> to vector<4x4xf32>
    %cst_91 = arith.constant dense<0.000000e+00> : vector<4x610xf32>
    %92 = tpu.matmul %91, %89, %cst_91 {dimension_numbers = #tpu.dot_dimension_numbers<[1], [0], [0], [1], [0, 0, 1, 1], [], []>} : vector<4x4xf32>, vector<4x610xf32>, vector<4x610xf32> -> vector<4x610xf32>
    %93 = arith.addf %88, %92 : vector<4x610xf32>
    %c0_92 = arith.constant 0 : index
    %c37_93 = arith.constant 37 : index
    %94 = vector.load %arg8[%c0_92, %c37_93] : memref<4x648xf32, #tpu.memory_space<vmem>>, vector<4x610xf32>
    %c7_94 = arith.constant 7 : index
    %c0_95 = arith.constant 0 : index
    %c0_96 = arith.constant 0 : index
    %95 = vector.load %arg3[%c7_94, %c0_95, %c0_96] : memref<9x4x4xf32, #tpu.memory_space<vmem>>, vector<1x4x4xf32>
    %96 = vector.shape_cast %95 : vector<1x4x4xf32> to vector<4x4xf32>
    %cst_97 = arith.constant dense<0.000000e+00> : vector<4x610xf32>
    %97 = tpu.matmul %96, %94, %cst_97 {dimension_numbers = #tpu.dot_dimension_numbers<[1], [0], [0], [1], [0, 0, 1, 1], [], []>} : vector<4x4xf32>, vector<4x610xf32>, vector<4x610xf32> -> vector<4x610xf32>
    %98 = arith.addf %93, %97 : vector<4x610xf32>
    %c0_98 = arith.constant 0 : index
    %c38_99 = arith.constant 38 : index
    %99 = vector.load %arg8[%c0_98, %c38_99] : memref<4x648xf32, #tpu.memory_space<vmem>>, vector<4x610xf32>
    %c8_100 = arith.constant 8 : index
    %c0_101 = arith.constant 0 : index
    %c0_102 = arith.constant 0 : index
    %100 = vector.load %arg3[%c8_100, %c0_101, %c0_102] : memref<9x4x4xf32, #tpu.memory_space<vmem>>, vector<1x4x4xf32>
    %101 = vector.shape_cast %100 : vector<1x4x4xf32> to vector<4x4xf32>
    %cst_103 = arith.constant dense<0.000000e+00> : vector<4x610xf32>
    %102 = tpu.matmul %101, %99, %cst_103 {dimension_numbers = #tpu.dot_dimension_numbers<[1], [0], [0], [1], [0, 0, 1, 1], [], []>} : vector<4x4xf32>, vector<4x610xf32>, vector<4x610xf32> -> vector<4x610xf32>
    %103 = arith.addf %98, %102 : vector<4x610xf32>
    %c0_104 = arith.constant 0 : index
    %c0_105 = arith.constant 0 : index
    %104 = vector.load %arg5[%c0_104, %c0_105] : memref<4x1xf32, #tpu.memory_space<vmem>>, vector<4x1xf32>
    %105 = vector.broadcast %104 : vector<4x1xf32> to vector<4x610xf32>
    %106 = arith.addf %103, %105 : vector<4x610xf32>
    %c0_106 = arith.constant 0 : index
    %c0_107 = arith.constant 0 : index
    %107 = vector.load %arg7[%c0_106, %c0_107] : memref<4x610xf32, #tpu.memory_space<vmem>>, vector<4x610xf32>
    tpu.vector_store %arg7[%c0_106, %c0_107], %106 {strides = array<i32>} : memref<4x610xf32, #tpu.memory_space<vmem>>, vector<4x610xf32>,
    return
  }
  func.func @transform_0(%arg0: i32) -> (i32, i32) {
    %c0_i32 = arith.constant 0 : i32
    %c0_i32_0 = arith.constant 0 : i32
    %c0_i32_1 = arith.constant 0 : i32
    return %c0_i32, %c0_i32_0 : i32, i32
  }
  func.func @transform_1(%arg0: i32) -> (i32, i32, i32) {
    %c0_i32 = arith.constant 0 : i32
    %c0_i32_0 = arith.constant 0 : i32
    %c0_i32_1 = arith.constant 0 : i32
    %c0_i32_2 = arith.constant 0 : i32
    return %c0_i32, %c0_i32_0, %c0_i32_1 : i32, i32, i32
  }
  func.func @transform_2(%arg0: i32) -> (i32, i32, i32) {
    %c0_i32 = arith.constant 0 : i32
    %c0_i32_0 = arith.constant 0 : i32
    %c0_i32_1 = arith.constant 0 : i32
    %c0_i32_2 = arith.constant 0 : i32
    return %c0_i32, %c0_i32_0, %c0_i32_1 : i32, i32, i32
  }
  func.func @transform_3(%arg0: i32) -> (i32, i32) {
    %c0_i32 = arith.constant 0 : i32
    %c0_i32_0 = arith.constant 0 : i32
    %c0_i32_1 = arith.constant 0 : i32
    return %c0_i32, %c0_i32_0 : i32, i32
  }
  func.func @transform_4(%arg0: i32) -> (i32, i32) {
    %c0_i32 = arith.constant 0 : i32
    %c0_i32_0 = arith.constant 0 : i32
    %c0_i32_1 = arith.constant 0 : i32
    return %c0_i32, %c0_i32_0 : i32, i32
  }
  func.func @transform_5(%arg0: i32) -> (i32, i32) {
    %c0_i32 = arith.constant 0 : i32
    %c0_i32_0 = arith.constant 0 : i32
    %c0_i32_1 = arith.constant 0 : i32
    return %c0_i32, %c0_i32_0 : i32, i32
  }
  func.func @transform_6(%arg0: i32) -> (i32, i32) {
    %c0_i32 = arith.constant 0 : i32
    %c0_i32_0 = arith.constant 0 : i32
    %c0_i32_1 = arith.constant 0 : i32
    return %c0_i32, %c0_i32_0 : i32, i32
  }
}

</mosaic_0001>

<llo_original>
// kernel: diff_forward.1
$region0: #{diff_forward.1}
  #allocation0 [shape = 'u32[]', space=smem, size = 0x4, offset = 0x4, fixed_abs, tag = 'smem constant byte address 0x4 - core index']
  #allocation1 [shape = 'u32[144,128]{1,0:T(1,128)}', space=vmem, size = 0x12000, scoped, tag = 'internal scratch']
  #allocation2 [shape = 'f32[4,648]{1,0:T(4,128)}', space=vmem, size = 0x3000, scoped, tag = 'scratch operand']
  %s0 = inlined_call_operand.vmem [shape: f32[4,648], index: 0, kind: input, shape index: {}]
  %s1 = inlined_call_operand.vmem [shape: f32[9,4,4], index: 1, kind: input, shape index: {}]
  %s2 = inlined_call_operand.vmem [shape: f32[9,4,4], index: 2, kind: input, shape index: {}]
  %s3 = inlined_call_operand.vmem [shape: f32[4,610], index: 3, kind: input, shape index: {}]
  %s4 = inlined_call_operand.vmem [shape: f32[4,1], index: 4, kind: input, shape index: {}]
  %s5 = inlined_call_operand.vmem [shape: f32[1,610], index: 5, kind: input, shape index: {}]
  %s6 = inlined_call_operand.vmem [shape: f32[4,610], index: 6, kind: output, shape index: {}]
  %s7 = sld [smem:[#allocation0]]
  $region34: #{diff_forward.1} parent=0
    _
  %s9 = ssub.s32 1, %s7
  %s10 = scalar_select 0, %s9, %s7
  // Predicated region
  $region2: #{diff_forward.1} parent=0 // pred_check
    _
  $region3: #{diff_forward.1} parent=0 // pred_check_branch
    %12 = sbr.rel (0) target = $region5
  $region4: #{diff_forward.1} parent=0 // pred_region
    _
  $region5: #{diff_forward.1} parent=0 // pred_fallthru
    _
  // Predicated region
  $region6: #{diff_forward.1} parent=0 // pred_check
    _
  $region7: #{diff_forward.1} parent=0 // pred_check_branch
    %14 = sbr.rel (0) target = $region9
  $region8: #{diff_forward.1} parent=0 // pred_region
    _
  $region9: #{diff_forward.1} parent=0 // pred_fallthru
    _
  // Predicated region
  $region10: #{diff_forward.1} parent=0 // pred_check
    _
  $region11: #{diff_forward.1} parent=0 // pred_check_branch
    %16 = sbr.rel (0) target = $region13
  $region12: #{diff_forward.1} parent=0 // pred_region
    _
  $region13: #{diff_forward.1} parent=0 // pred_fallthru
    _
  // Predicated region
  $region14: #{diff_forward.1} parent=0 // pred_check
    _
  $region15: #{diff_forward.1} parent=0 // pred_check_branch
    %18 = sbr.rel (0) target = $region17
  $region16: #{diff_forward.1} parent=0 // pred_region
    _
  $region17: #{diff_forward.1} parent=0 // pred_fallthru
    _
  // Predicated region
  $region18: #{diff_forward.1} parent=0 // pred_check
    _
  $region19: #{diff_forward.1} parent=0 // pred_check_branch
    %20 = sbr.rel (0) target = $region21
  $region20: #{diff_forward.1} parent=0 // pred_region
    _
  $region21: #{diff_forward.1} parent=0 // pred_fallthru
    _
  // Predicated region
  $region22: #{diff_forward.1} parent=0 // pred_check
    _
  $region23: #{diff_forward.1} parent=0 // pred_check_branch
    %22 = sbr.rel (0) target = $region25
  $region24: #{diff_forward.1} parent=0 // pred_region
    _
  $region25: #{diff_forward.1} parent=0 // pred_fallthru
    _
  %v23 = vld [vmem:[%s0] sm:$0xff]
  %v24 = vld [vmem:[%s0 + $0x8] sm:$0xff]
  %v25 = vld [vmem:[%s0 + $0x10] sm:$0xf]
  %v26 = vld [vmem:[%s1] sm:$0xf]
  %s27 = scalar_lea.vmem %s1, 4
  %v28 = vld [vmem:[%s27] sm:$0xf]
  %v32 = vcombine.high %v23, %v23
  %v33 = vcombine.high %v24, %v24
  %34 = vrot.lane.b32.xlu0 %v23, 127
  %v35 = vpop.permute.xlu0 %34
  %36 = vrot.lane.b32.xlu0 %v32, 127
  %v37 = vpop.permute.xlu0 %36
  %38 = vrot.lane.b32.xlu0 %v24, 127
  %v39 = vpop.permute.xlu0 %38
  %40 = vrot.lane.b32.xlu0 %v33, 127
  %v41 = vpop.permute.xlu0 %40
  %42 = vrot.lane.b32.xlu0 %v25, 127
  %v43 = vpop.permute.xlu0 %42
  %vm44 = vcmask 1039360
  %v45 = vsel %vm44, %v35, %v37
  %v46 = vsel %vm44, %v37, %v39
  %v47 = vsel %vm44, %v39, %v41
  %v48 = vsel %vm44, %v41, %v43
  %vm49 = vcmask 31744
  %v51 = vsel %vm49, %v28, 0
  %vm53 = vcmask 1043456
  %v54 = vsel %vm53, %v45, 0
  %v56 = vsel %vm53, %v46, 0
  %v58 = vsel %vm53, %v47, 0
  %v60 = vsel %vm53, %v48, 0
  %v62 = vsel %vm53, %v43, 0
  %64 = vmatprep.subr.mxu0 0.0
  %65 = vmatpush1.msra.mxu0 0.0
  %66 = vmatprep.subr.mxu0 0.0
  %67 = vmatpush1.msra.mxu0 0.0
  %68 = vmatprep.subr.mxu0 0.0
  %69 = vmatpush1.msra.mxu0 0.0
  %70 = vmatprep.subr.mxu0 0.0
  %71 = vmatpush1.msra.mxu0 0.0
  %72 = vmatprep.subr.mxu0 0.0
  %73 = vmatpush1.msra.mxu0 0.0
  %74 = vmatprep.subr.mxu0 0.0
  %75 = vmatpush1.msra.mxu0 0.0
  %76 = vmatprep.subr.mxu0 0.0
  %77 = vmatpush1.msra.mxu0 0.0
  %78 = vmatprep.subr.mxu0 0.0
  %79 = vmatpush1.msra.mxu0 0.0
  %80 = vmatprep.subr.mxu0 0.0
  %81 = vmatpush1.msra.mxu0 0.0
  %82 = vmatprep.subr.mxu0 0.0
  %83 = vmatpush1.msra.mxu0 0.0
  %84 = vmatprep.subr.mxu0 0.0
  %85 = vmatpush1.msra.mxu0 0.0
  %86 = vmatprep.subr.mxu0 0.0
  %87 = vmatpush1.msra.mxu0 0.0
  %88 = vmatprep.subr.mxu0 0.0
  %89 = vmatpush1.msra.mxu0 0.0
  %90 = vmatprep.subr.mxu0 0.0
  %91 = vmatpush1.msra.mxu0 0.0
  %92 = vmatprep.subr.mxu0 0.0
  %93 = vmatpush1.msra.mxu0 0.0
  %94 = vmatprep.subr.mxu0 %v56
  %95 = vmatpush1.msra.mxu0 %v54
  %96 = vmatprep.subr.mxu0 0.0
  %97 = vmatpush2.msra.mxu0 0.0
  %98 = vmatprep.subr.mxu0 0.0
  %99 = vmatpush2.msra.mxu0 0.0
  %100 = vmatprep.subr.mxu0 0.0
  %101 = vmatpush2.msra.mxu0 0.0
  %102 = vmatprep.subr.mxu0 0.0
  %103 = vmatpush2.msra.mxu0 0.0
  %104 = vmatprep.subr.mxu0 0.0
  %105 = vmatpush2.msra.mxu0 0.0
  %106 = vmatprep.subr.mxu0 0.0
  %107 = vmatpush2.msra.mxu0 0.0
  %108 = vmatprep.subr.mxu0 0.0
  %109 = vmatpush2.msra.mxu0 0.0
  %110 = vmatprep.subr.mxu0 0.0
  %111 = vmatpush2.msra.mxu0 0.0
  %112 = vmatprep.subr.mxu0 0.0
  %113 = vmatpush2.msra.mxu0 0.0
  %114 = vmatprep.subr.mxu0 0.0
  %115 = vmatpush2.msra.mxu0 0.0
  %116 = vmatprep.subr.mxu0 0.0
  %117 = vmatpush2.msra.mxu0 0.0
  %118 = vmatprep.subr.mxu0 0.0
  %119 = vmatpush2.msra.mxu0 0.0
  %120 = vmatprep.subr.mxu0 0.0
  %121 = vmatpush2.msra.mxu0 0.0
  %122 = vmatprep.subr.mxu0 0.0
  %123 = vmatpush2.msra.mxu0 0.0
  %124 = vmatprep.subr.mxu0 0.0
  %125 = vmatpush2.msra.mxu0 0.0
  %126 = vmatprep.subr.mxu0 0.0
  %127 = vmatpush2.msra.mxu0 0.0
  %128 = vmatprep.mubr.f32.mxu0 0.0
  %129 = vmatmul.mubr.f32.gmra.mxu0 %v51
  %v130 = vpop.f32.mrf.mxu0
  %v131 = vadd.f32 0.0, %v130
  %v132 = vpop.f32.mrf.mxu0
  %v133 = vadd.f32 0.0, %v132
  %134 = vdwg.mxu0
  %135 = vmatprep.subr.mxu0 0.0
  %136 = vmatpush1.msra.mxu0 0.0
  %137 = vmatprep.subr.mxu0 0.0
  %138 = vmatpush1.msra.mxu0 0.0
  %139 = vmatprep.subr.mxu0 0.0
  %140 = vmatpush1.msra.mxu0 0.0
  %141 = vmatprep.subr.mxu0 0.0
  %142 = vmatpush1.msra.mxu0 0.0
  %143 = vmatprep.subr.mxu0 0.0
  %144 = vmatpush1.msra.mxu0 0.0
  %145 = vmatprep.subr.mxu0 0.0
  %146 = vmatpush1.msra.mxu0 0.0
  %147 = vmatprep.subr.mxu0 0.0
  %148 = vmatpush1.msra.mxu0 0.0
  %149 = vmatprep.subr.mxu0 0.0
  %150 = vmatpush1.msra.mxu0 0.0
  %151 = vmatprep.subr.mxu0 0.0
  %152 = vmatpush1.msra.mxu0 0.0
  %153 = vmatprep.subr.mxu0 0.0
  %154 = vmatpush1.msra.mxu0 0.0
  %155 = vmatprep.subr.mxu0 0.0
  %156 = vmatpush1.msra.mxu0 0.0
  %157 = vmatprep.subr.mxu0 0.0
  %158 = vmatpush1.msra.mxu0 0.0
  %159 = vmatprep.subr.mxu0 0.0
  %160 = vmatpush1.msra.mxu0 0.0
  %161 = vmatprep.subr.mxu0 0.0
  %162 = vmatpush1.msra.mxu0 0.0
  %163 = vmatprep.subr.mxu0 0.0
  %164 = vmatpush1.msra.mxu0 0.0
  %165 = vmatprep.subr.mxu0 %v60
  %166 = vmatpush1.msra.mxu0 %v58
  %167 = vmatprep.subr.mxu0 0.0
  %168 = vmatpush2.msra.mxu0 0.0
  %169 = vmatprep.subr.mxu0 0.0
  %170 = vmatpush2.msra.mxu0 0.0
  %171 = vmatprep.subr.mxu0 0.0
  %172 = vmatpush2.msra.mxu0 0.0
  %173 = vmatprep.subr.mxu0 0.0
  %174 = vmatpush2.msra.mxu0 0.0
  %175 = vmatprep.subr.mxu0 0.0
  %176 = vmatpush2.msra.mxu0 0.0
  %177 = vmatprep.subr.mxu0 0.0
  %178 = vmatpush2.msra.mxu0 0.0
  %179 = vmatprep.subr.mxu0 0.0
  %180 = vmatpush2.msra.mxu0 0.0
  %181 = vmatprep.subr.mxu0 0.0
  %182 = vmatpush2.msra.mxu0 0.0
  %183 = vmatprep.subr.mxu0 0.0
  %184 = vmatpush2.msra.mxu0 0.0
  %185 = vmatprep.subr.mxu0 0.0
  %186 = vmatpush2.msra.mxu0 0.0
  %187 = vmatprep.subr.mxu0 0.0
  %188 = vmatpush2.msra.mxu0 0.0
  %189 = vmatprep.subr.mxu0 0.0
  %190 = vmatpush2.msra.mxu0 0.0
  %191 = vmatprep.subr.mxu0 0.0
  %192 = vmatpush2.msra.mxu0 0.0
  %193 = vmatprep.subr.mxu0 0.0
  %194 = vmatpush2.msra.mxu0 0.0
  %195 = vmatprep.subr.mxu0 0.0
  %196 = vmatpush2.msra.mxu0 0.0
  %197 = vmatprep.subr.mxu0 0.0
  %198 = vmatpush2.msra.mxu0 0.0
  %199 = vmatprep.mubr.f32.mxu0 0.0
  %200 = vmatmul.mubr.f32.gmra.mxu0 %v51
  %v201 = vpop.f32.mrf.mxu0
  %v202 = vadd.f32 0.0, %v201
  %v203 = vpop.f32.mrf.mxu0
  %v204 = vadd.f32 0.0, %v203
  %205 = vdwg.mxu0
  %206 = vmatprep.subr.mxu0 0.0
  %207 = vmatpush1.msra.mxu0 0.0
  %208 = vmatprep.subr.mxu0 0.0
  %209 = vmatpush1.msra.mxu0 0.0
  %210 = vmatprep.subr.mxu0 0.0
  %211 = vmatpush1.msra.mxu0 0.0
  %212 = vmatprep.subr.mxu0 0.0
  %213 = vmatpush1.msra.mxu0 0.0
  %214 = vmatprep.subr.mxu0 0.0
  %215 = vmatpush1.msra.mxu0 0.0
  %216 = vmatprep.subr.mxu0 0.0
  %217 = vmatpush1.msra.mxu0 0.0
  %218 = vmatprep.subr.mxu0 0.0
  %219 = vmatpush1.msra.mxu0 0.0
  %220 = vmatprep.subr.mxu0 0.0
  %221 = vmatpush1.msra.mxu0 0.0
  %222 = vmatprep.subr.mxu0 0.0
  %223 = vmatpush1.msra.mxu0 0.0
  %224 = vmatprep.subr.mxu0 0.0
  %225 = vmatpush1.msra.mxu0 0.0
  %226 = vmatprep.subr.mxu0 0.0
  %227 = vmatpush1.msra.mxu0 0.0
  %228 = vmatprep.subr.mxu0 0.0
  %229 = vmatpush1.msra.mxu0 0.0
  %230 = vmatprep.subr.mxu0 0.0
  %231 = vmatpush1.msra.mxu0 0.0
  %232 = vmatprep.subr.mxu0 0.0
  %233 = vmatpush1.msra.mxu0 0.0
  %234 = vmatprep.subr.mxu0 0.0
  %235 = vmatpush1.msra.mxu0 0.0
  %236 = vmatprep.subr.mxu0 0.0
  %237 = vmatpush1.msra.mxu0 %v62
  %238 = vmatprep.subr.mxu0 0.0
  %239 = vmatpush2.msra.mxu0 0.0
  %240 = vmatprep.subr.mxu0 0.0
  %241 = vmatpush2.msra.mxu0 0.0
  %242 = vmatprep.subr.mxu0 0.0
  %243 = vmatpush2.msra.mxu0 0.0
  %244 = vmatprep.subr.mxu0 0.0
  %245 = vmatpush2.msra.mxu0 0.0
  %246 = vmatprep.subr.mxu0 0.0
  %247 = vmatpush2.msra.mxu0 0.0
  %248 = vmatprep.subr.mxu0 0.0
  %249 = vmatpush2.msra.mxu0 0.0
  %250 = vmatprep.subr.mxu0 0.0
  %251 = vmatpush2.msra.mxu0 0.0
  %252 = vmatprep.subr.mxu0 0.0
  %253 = vmatpush2.msra.mxu0 0.0
  %254 = vmatprep.subr.mxu0 0.0
  %255 = vmatpush2.msra.mxu0 0.0
  %256 = vmatprep.subr.mxu0 0.0
  %257 = vmatpush2.msra.mxu0 0.0
  %258 = vmatprep.subr.mxu0 0.0
  %259 = vmatpush2.msra.mxu0 0.0
  %260 = vmatprep.subr.mxu0 0.0
  %261 = vmatpush2.msra.mxu0 0.0
  %262 = vmatprep.subr.mxu0 0.0
  %263 = vmatpush2.msra.mxu0 0.0
  %264 = vmatprep.subr.mxu0 0.0
  %265 = vmatpush2.msra.mxu0 0.0
  %266 = vmatprep.subr.mxu0 0.0
  %267 = vmatpush2.msra.mxu0 0.0
  %268 = vmatprep.subr.mxu0 0.0
  %269 = vmatpush2.msra.mxu0 0.0
  %270 = vmatprep.mubr.f32.mxu0 0.0
  %271 = vmatmul.mubr.f32.gmra.mxu0 %v51
  %v272 = vpop.f32.mrf.mxu0
  %v273 = vadd.f32 0.0, %v272
  %v274 = vpop.f32.mrf.mxu0
  %275 = vdwg.mxu0
  %v277 = vsel %vm49, %v26, 0
  %v279 = vsel %vm53, %v23, 0
  %v281 = vsel %vm53, %v32, 0
  %v283 = vsel %vm53, %v24, 0
  %v285 = vsel %vm53, %v33, 0
  %v287 = vsel %vm53, %v25, 0
  %289 = vmatprep.subr.mxu0 0.0
  %290 = vmatpush1.msra.mxu0 0.0
  %291 = vmatprep.subr.mxu0 0.0
  %292 = vmatpush1.msra.mxu0 0.0
  %293 = vmatprep.subr.mxu0 0.0
  %294 = vmatpush1.msra.mxu0 0.0
  %295 = vmatprep.subr.mxu0 0.0
  %296 = vmatpush1.msra.mxu0 0.0
  %297 = vmatprep.subr.mxu0 0.0
  %298 = vmatpush1.msra.mxu0 0.0
  %299 = vmatprep.subr.mxu0 0.0
  %300 = vmatpush1.msra.mxu0 0.0
  %301 = vmatprep.subr.mxu0 0.0
  %302 = vmatpush1.msra.mxu0 0.0
  %303 = vmatprep.subr.mxu0 0.0
  %304 = vmatpush1.msra.mxu0 0.0
  %305 = vmatprep.subr.mxu0 0.0
  %306 = vmatpush1.msra.mxu0 0.0
  %307 = vmatprep.subr.mxu0 0.0
  %308 = vmatpush1.msra.mxu0 0.0
  %309 = vmatprep.subr.mxu0 0.0
  %310 = vmatpush1.msra.mxu0 0.0
  %311 = vmatprep.subr.mxu0 0.0
  %312 = vmatpush1.msra.mxu0 0.0
  %313 = vmatprep.subr.mxu0 0.0
  %314 = vmatpush1.msra.mxu0 0.0
  %315 = vmatprep.subr.mxu0 0.0
  %316 = vmatpush1.msra.mxu0 0.0
  %317 = vmatprep.subr.mxu0 0.0
  %318 = vmatpush1.msra.mxu0 0.0
  %319 = vmatprep.subr.mxu0 %v281
  %320 = vmatpush1.msra.mxu0 %v279
  %321 = vmatprep.subr.mxu0 0.0
  %322 = vmatpush2.msra.mxu0 0.0
  %323 = vmatprep.subr.mxu0 0.0
  %324 = vmatpush2.msra.mxu0 0.0
  %325 = vmatprep.subr.mxu0 0.0
  %326 = vmatpush2.msra.mxu0 0.0
  %327 = vmatprep.subr.mxu0 0.0
  %328 = vmatpush2.msra.mxu0 0.0
  %329 = vmatprep.subr.mxu0 0.0
  %330 = vmatpush2.msra.mxu0 0.0
  %331 = vmatprep.subr.mxu0 0.0
  %332 = vmatpush2.msra.mxu0 0.0
  %333 = vmatprep.subr.mxu0 0.0
  %334 = vmatpush2.msra.mxu0 0.0
  %335 = vmatprep.subr.mxu0 0.0
  %336 = vmatpush2.msra.mxu0 0.0
  %337 = vmatprep.subr.mxu0 0.0
  %338 = vmatpush2.msra.mxu0 0.0
  %339 = vmatprep.subr.mxu0 0.0
  %340 = vmatpush2.msra.mxu0 0.0
  %341 = vmatprep.subr.mxu0 0.0
  %342 = vmatpush2.msra.mxu0 0.0
  %343 = vmatprep.subr.mxu0 0.0
  %344 = vmatpush2.msra.mxu0 0.0
  %345 = vmatprep.subr.mxu0 0.0
  %346 = vmatpush2.msra.mxu0 0.0
  %347 = vmatprep.subr.mxu0 0.0
  %348 = vmatpush2.msra.mxu0 0.0
  %349 = vmatprep.subr.mxu0 0.0
  %350 = vmatpush2.msra.mxu0 0.0
  %351 = vmatprep.subr.mxu0 0.0
  %352 = vmatpush2.msra.mxu0 0.0
  %353 = vmatprep.mubr.f32.mxu0 0.0
  %354 = vmatmul.mubr.f32.gmra.mxu0 %v277
  %v355 = vpop.f32.mrf.mxu0
  %v356 = vadd.f32 %v131, %v355
  %v357 = vpop.f32.mrf.mxu0
  %v358 = vadd.f32 %v133, %v357
  %359 = vdwg.mxu0
  %360 = vmatprep.subr.mxu0 0.0
  %361 = vmatpush1.msra.mxu0 0.0
  %362 = vmatprep.subr.mxu0 0.0
  %363 = vmatpush1.msra.mxu0 0.0
  %364 = vmatprep.subr.mxu0 0.0
  %365 = vmatpush1.msra.mxu0 0.0
  %366 = vmatprep.subr.mxu0 0.0
  %367 = vmatpush1.msra.mxu0 0.0
  %368 = vmatprep.subr.mxu0 0.0
  %369 = vmatpush1.msra.mxu0 0.0
  %370 = vmatprep.subr.mxu0 0.0
  %371 = vmatpush1.msra.mxu0 0.0
  %372 = vmatprep.subr.mxu0 0.0
  %373 = vmatpush1.msra.mxu0 0.0
  %374 = vmatprep.subr.mxu0 0.0
  %375 = vmatpush1.msra.mxu0 0.0
  %376 = vmatprep.subr.mxu0 0.0
  %377 = vmatpush1.msra.mxu0 0.0
  %378 = vmatprep.subr.mxu0 0.0
  %379 = vmatpush1.msra.mxu0 0.0
  %380 = vmatprep.subr.mxu0 0.0
  %381 = vmatpush1.msra.mxu0 0.0
  %382 = vmatprep.subr.mxu0 0.0
  %383 = vmatpush1.msra.mxu0 0.0
  %384 = vmatprep.subr.mxu0 0.0
  %385 = vmatpush1.msra.mxu0 0.0
  %386 = vmatprep.subr.mxu0 0.0
  %387 = vmatpush1.msra.mxu0 0.0
  %388 = vmatprep.subr.mxu0 0.0
  %389 = vmatpush1.msra.mxu0 0.0
  %390 = vmatprep.subr.mxu0 %v285
  %391 = vmatpush1.msra.mxu0 %v283
  %392 = vmatprep.subr.mxu0 0.0
  %393 = vmatpush2.msra.mxu0 0.0
  %394 = vmatprep.subr.mxu0 0.0
  %395 = vmatpush2.msra.mxu0 0.0
  %396 = vmatprep.subr.mxu0 0.0
  %397 = vmatpush2.msra.mxu0 0.0
  %398 = vmatprep.subr.mxu0 0.0
  %399 = vmatpush2.msra.mxu0 0.0
  %400 = vmatprep.subr.mxu0 0.0
  %401 = vmatpush2.msra.mxu0 0.0
  %402 = vmatprep.subr.mxu0 0.0
  %403 = vmatpush2.msra.mxu0 0.0
  %404 = vmatprep.subr.mxu0 0.0
  %405 = vmatpush2.msra.mxu0 0.0
  %406 = vmatprep.subr.mxu0 0.0
  %407 = vmatpush2.msra.mxu0 0.0
  %408 = vmatprep.subr.mxu0 0.0
  %409 = vmatpush2.msra.mxu0 0.0
  %410 = vmatprep.subr.mxu0 0.0
  %411 = vmatpush2.msra.mxu0 0.0
  %412 = vmatprep.subr.mxu0 0.0
  %413 = vmatpush2.msra.mxu0 0.0
  %414 = vmatprep.subr.mxu0 0.0
  %415 = vmatpush2.msra.mxu0 0.0
  %416 = vmatprep.subr.mxu0 0.0
  %417 = vmatpush2.msra.mxu0 0.0
  %418 = vmatprep.subr.mxu0 0.0
  %419 = vmatpush2.msra.mxu0 0.0
  %420 = vmatprep.subr.mxu0 0.0
  %421 = vmatpush2.msra.mxu0 0.0
  %422 = vmatprep.subr.mxu0 0.0
  %423 = vmatpush2.msra.mxu0 0.0
  %424 = vmatprep.mubr.f32.mxu0 0.0
  %425 = vmatmul.mubr.f32.gmra.mxu0 %v277
  %v426 = vpop.f32.mrf.mxu0
  %v427 = vadd.f32 %v202, %v426
  %v428 = vpop.f32.mrf.mxu0
  %v429 = vadd.f32 %v204, %v428
  %430 = vdwg.mxu0
  %431 = vmatprep.subr.mxu0 0.0
  %432 = vmatpush1.msra.mxu0 0.0
  %433 = vmatprep.subr.mxu0 0.0
  %434 = vmatpush1.msra.mxu0 0.0
  %435 = vmatprep.subr.mxu0 0.0
  %436 = vmatpush1.msra.mxu0 0.0
  %437 = vmatprep.subr.mxu0 0.0
  %438 = vmatpush1.msra.mxu0 0.0
  %439 = vmatprep.subr.mxu0 0.0
  %440 = vmatpush1.msra.mxu0 0.0
  %441 = vmatprep.subr.mxu0 0.0
  %442 = vmatpush1.msra.mxu0 0.0
  %443 = vmatprep.subr.mxu0 0.0
  %444 = vmatpush1.msra.mxu0 0.0
  %445 = vmatprep.subr.mxu0 0.0
  %446 = vmatpush1.msra.mxu0 0.0
  %447 = vmatprep.subr.mxu0 0.0
  %448 = vmatpush1.msra.mxu0 0.0
  %449 = vmatprep.subr.mxu0 0.0
  %450 = vmatpush1.msra.mxu0 0.0
  %451 = vmatprep.subr.mxu0 0.0
  %452 = vmatpush1.msra.mxu0 0.0
  %453 = vmatprep.subr.mxu0 0.0
  %454 = vmatpush1.msra.mxu0 0.0
  %455 = vmatprep.subr.mxu0 0.0
  %456 = vmatpush1.msra.mxu0 0.0
  %457 = vmatprep.subr.mxu0 0.0
  %458 = vmatpush1.msra.mxu0 0.0
  %459 = vmatprep.subr.mxu0 0.0
  %460 = vmatpush1.msra.mxu0 0.0
  %461 = vmatprep.subr.mxu0 0.0
  %462 = vmatpush1.msra.mxu0 %v287
  %463 = vmatprep.subr.mxu0 0.0
  %464 = vmatpush2.msra.mxu0 0.0
  %465 = vmatprep.subr.mxu0 0.0
  %466 = vmatpush2.msra.mxu0 0.0
  %467 = vmatprep.subr.mxu0 0.0
  %468 = vmatpush2.msra.mxu0 0.0
  %469 = vmatprep.subr.mxu0 0.0
  %470 = vmatpush2.msra.mxu0 0.0
  %471 = vmatprep.subr.mxu0 0.0
  %472 = vmatpush2.msra.mxu0 0.0
  %473 = vmatprep.subr.mxu0 0.0
  %474 = vmatpush2.msra.mxu0 0.0
  %475 = vmatprep.subr.mxu0 0.0
  %476 = vmatpush2.msra.mxu0 0.0
  %477 = vmatprep.subr.mxu0 0.0
  %478 = vmatpush2.msra.mxu0 0.0
  %479 = vmatprep.subr.mxu0 0.0
  %480 = vmatpush2.msra.mxu0 0.0
  %481 = vmatprep.subr.mxu0 0.0
  %482 = vmatpush2.msra.mxu0 0.0
  %483 = vmatprep.subr.mxu0 0.0
  %484 = vmatpush2.msra.mxu0 0.0
  %485 = vmatprep.subr.mxu0 0.0
  %486 = vmatpush2.msra.mxu0 0.0
  %487 = vmatprep.subr.mxu0 0.0
  %488 = vmatpush2.msra.mxu0 0.0
  %489 = vmatprep.subr.mxu0 0.0
  %490 = vmatpush2.msra.mxu0 0.0
  %491 = vmatprep.subr.mxu0 0.0
  %492 = vmatpush2.msra.mxu0 0.0
  %493 = vmatprep.subr.mxu0 0.0
  %494 = vmatpush2.msra.mxu0 0.0
  %495 = vmatprep.mubr.f32.mxu0 0.0
  %496 = vmatmul.mubr.f32.gmra.mxu0 %v277
  %v497 = vpop.f32.mrf.mxu0
  %v498 = vadd.f32 %v273, %v497
  %v499 = vpop.f32.mrf.mxu0
  %500 = vdwg.mxu0
  %v501 = vld [vmem:[%s0] sm:$0xff]
  %v502 = vld [vmem:[%s0 + $0x8] sm:$0xff]
  %v503 = vld [vmem:[%s0 + $0x10] sm:$0xf]
  %s504 = scalar_lea.vmem %s1, 8
  %v505 = vld [vmem:[%s504] sm:$0xf]
  %v509 = vcombine.high %v501, %v501
  %v510 = vcombine.high %v502, %v502
  %511 = vrot.lane.b32.xlu0 %v501, 126
  %v512 = vpop.permute.xlu0 %511
  %513 = vrot.lane.b32.xlu0 %v509, 126
  %v514 = vpop.permute.xlu0 %513
  %515 = vrot.lane.b32.xlu0 %v502, 126
  %v516 = vpop.permute.xlu0 %515
  %517 = vrot.lane.b32.xlu0 %v510, 126
  %v518 = vpop.permute.xlu0 %517
  %519 = vrot.lane.b32.xlu0 %v503, 126
  %v520 = vpop.permute.xlu0 %519
  %vm521 = vcmask 1031168
  %v522 = vsel %vm521, %v512, %v514
  %v523 = vsel %vm521, %v514, %v516
  %v524 = vsel %vm521, %v516, %v518
  %v525 = vsel %vm521, %v518, %v520
  %v527 = vsel %vm49, %v505, 0
  %v529 = vsel %vm53, %v522, 0
  %v531 = vsel %vm53, %v523, 0
  %v533 = vsel %vm53, %v524, 0
  %v535 = vsel %vm53, %v525, 0
  %v537 = vsel %vm53, %v520, 0
  %539 = vmatprep.subr.mxu0 0.0
  %540 = vmatpush1.msra.mxu0 0.0
  %541 = vmatprep.subr.mxu0 0.0
  %542 = vmatpush1.msra.mxu0 0.0
  %543 = vmatprep.subr.mxu0 0.0
  %544 = vmatpush1.msra.mxu0 0.0
  %545 = vmatprep.subr.mxu0 0.0
  %546 = vmatpush1.msra.mxu0 0.0
  %547 = vmatprep.subr.mxu0 0.0
  %548 = vmatpush1.msra.mxu0 0.0
  %549 = vmatprep.subr.mxu0 0.0
  %550 = vmatpush1.msra.mxu0 0.0
  %551 = vmatprep.subr.mxu0 0.0
  %552 = vmatpush1.msra.mxu0 0.0
  %553 = vmatprep.subr.mxu0 0.0
  %554 = vmatpush1.msra.mxu0 0.0
  %555 = vmatprep.subr.mxu0 0.0
  %556 = vmatpush1.msra.mxu0 0.0
  %557 = vmatprep.subr.mxu0 0.0
  %558 = vmatpush1.msra.mxu0 0.0
  %559 = vmatprep.subr.mxu0 0.0
  %560 = vmatpush1.msra.mxu0 0.0
  %561 = vmatprep.subr.mxu0 0.0
  %562 = vmatpush1.msra.mxu0 0.0
  %563 = vmatprep.subr.mxu0 0.0
  %564 = vmatpush1.msra.mxu0 0.0
  %565 = vmatprep.subr.mxu0 0.0
  %566 = vmatpush1.msra.mxu0 0.0
  %567 = vmatprep.subr.mxu0 0.0
  %568 = vmatpush1.msra.mxu0 0.0
  %569 = vmatprep.subr.mxu0 %v531
  %570 = vmatpush1.msra.mxu0 %v529
  %571 = vmatprep.subr.mxu0 0.0
  %572 = vmatpush2.msra.mxu0 0.0
  %573 = vmatprep.subr.mxu0 0.0
  %574 = vmatpush2.msra.mxu0 0.0
  %575 = vmatprep.subr.mxu0 0.0
  %576 = vmatpush2.msra.mxu0 0.0
  %577 = vmatprep.subr.mxu0 0.0
  %578 = vmatpush2.msra.mxu0 0.0
  %579 = vmatprep.subr.mxu0 0.0
  %580 = vmatpush2.msra.mxu0 0.0
  %581 = vmatprep.subr.mxu0 0.0
  %582 = vmatpush2.msra.mxu0 0.0
  %583 = vmatprep.subr.mxu0 0.0
  %584 = vmatpush2.msra.mxu0 0.0
  %585 = vmatprep.subr.mxu0 0.0
  %586 = vmatpush2.msra.mxu0 0.0
  %587 = vmatprep.subr.mxu0 0.0
  %588 = vmatpush2.msra.mxu0 0.0
  %589 = vmatprep.subr.mxu0 0.0
  %590 = vmatpush2.msra.mxu0 0.0
  %591 = vmatprep.subr.mxu0 0.0
  %592 = vmatpush2.msra.mxu0 0.0
  %593 = vmatprep.subr.mxu0 0.0
  %594 = vmatpush2.msra.mxu0 0.0
  %595 = vmatprep.subr.mxu0 0.0
  %596 = vmatpush2.msra.mxu0 0.0
  %597 = vmatprep.subr.mxu0 0.0
  %598 = vmatpush2.msra.mxu0 0.0
  %599 = vmatprep.subr.mxu0 0.0
  %600 = vmatpush2.msra.mxu0 0.0
  %601 = vmatprep.subr.mxu0 0.0
  %602 = vmatpush2.msra.mxu0 0.0
  %603 = vmatprep.mubr.f32.mxu0 0.0
  %604 = vmatmul.mubr.f32.gmra.mxu0 %v527
  %v605 = vpop.f32.mrf.mxu0
  %v606 = vadd.f32 0.0, %v605
  %v607 = vpop.f32.mrf.mxu0
  %v608 = vadd.f32 0.0, %v607
  %609 = vdwg.mxu0
  %610 = vmatprep.subr.mxu0 0.0
  %611 = vmatpush1.msra.mxu0 0.0
  %612 = vmatprep.subr.mxu0 0.0
  %613 = vmatpush1.msra.mxu0 0.0
  %614 = vmatprep.subr.mxu0 0.0
  %615 = vmatpush1.msra.mxu0 0.0
  %616 = vmatprep.subr.mxu0 0.0
  %617 = vmatpush1.msra.mxu0 0.0
  %618 = vmatprep.subr.mxu0 0.0
  %619 = vmatpush1.msra.mxu0 0.0
  %620 = vmatprep.subr.mxu0 0.0
  %621 = vmatpush1.msra.mxu0 0.0
  %622 = vmatprep.subr.mxu0 0.0
  %623 = vmatpush1.msra.mxu0 0.0
  %624 = vmatprep.subr.mxu0 0.0
  %625 = vmatpush1.msra.mxu0 0.0
  %626 = vmatprep.subr.mxu0 0.0
  %627 = vmatpush1.msra.mxu0 0.0
  %628 = vmatprep.subr.mxu0 0.0
  %629 = vmatpush1.msra.mxu0 0.0
  %630 = vmatprep.subr.mxu0 0.0
  %631 = vmatpush1.msra.mxu0 0.0
  %632 = vmatprep.subr.mxu0 0.0
  %633 = vmatpush1.msra.mxu0 0.0
  %634 = vmatprep.subr.mxu0 0.0
  %635 = vmatpush1.msra.mxu0 0.0
  %636 = vmatprep.subr.mxu0 0.0
  %637 = vmatpush1.msra.mxu0 0.0
  %638 = vmatprep.subr.mxu0 0.0
  %639 = vmatpush1.msra.mxu0 0.0
  %640 = vmatprep.subr.mxu0 %v535
  %641 = vmatpush1.msra.mxu0 %v533
  %642 = vmatprep.subr.mxu0 0.0
  %643 = vmatpush2.msra.mxu0 0.0
  %644 = vmatprep.subr.mxu0 0.0
  %645 = vmatpush2.msra.mxu0 0.0
  %646 = vmatprep.subr.mxu0 0.0
  %647 = vmatpush2.msra.mxu0 0.0
  %648 = vmatprep.subr.mxu0 0.0
  %649 = vmatpush2.msra.mxu0 0.0
  %650 = vmatprep.subr.mxu0 0.0
  %651 = vmatpush2.msra.mxu0 0.0
  %652 = vmatprep.subr.mxu0 0.0
  %653 = vmatpush2.msra.mxu0 0.0
  %654 = vmatprep.subr.mxu0 0.0
  %655 = vmatpush2.msra.mxu0 0.0
  %656 = vmatprep.subr.mxu0 0.0
  %657 = vmatpush2.msra.mxu0 0.0
  %658 = vmatprep.subr.mxu0 0.0
  %659 = vmatpush2.msra.mxu0 0.0
  %660 = vmatprep.subr.mxu0 0.0
  %661 = vmatpush2.msra.mxu0 0.0
  %662 = vmatprep.subr.mxu0 0.0
  %663 = vmatpush2.msra.mxu0 0.0
  %664 = vmatprep.subr.mxu0 0.0
  %665 = vmatpush2.msra.mxu0 0.0
  %666 = vmatprep.subr.mxu0 0.0
  %667 = vmatpush2.msra.mxu0 0.0
  %668 = vmatprep.subr.mxu0 0.0
  %669 = vmatpush2.msra.mxu0 0.0
  %670 = vmatprep.subr.mxu0 0.0
  %671 = vmatpush2.msra.mxu0 0.0
  %672 = vmatprep.subr.mxu0 0.0
  %673 = vmatpush2.msra.mxu0 0.0
  %674 = vmatprep.mubr.f32.mxu0 0.0
  %675 = vmatmul.mubr.f32.gmra.mxu0 %v527
  %v676 = vpop.f32.mrf.mxu0
  %v677 = vadd.f32 0.0, %v676
  %v678 = vpop.f32.mrf.mxu0
  %v679 = vadd.f32 0.0, %v678
  %680 = vdwg.mxu0
  %681 = vmatprep.subr.mxu0 0.0
  %682 = vmatpush1.msra.mxu0 0.0
  %683 = vmatprep.subr.mxu0 0.0
  %684 = vmatpush1.msra.mxu0 0.0
  %685 = vmatprep.subr.mxu0 0.0
  %686 = vmatpush1.msra.mxu0 0.0
  %687 = vmatprep.subr.mxu0 0.0
  %688 = vmatpush1.msra.mxu0 0.0
  %689 = vmatprep.subr.mxu0 0.0
  %690 = vmatpush1.msra.mxu0 0.0
  %691 = vmatprep.subr.mxu0 0.0
  %692 = vmatpush1.msra.mxu0 0.0
  %693 = vmatprep.subr.mxu0 0.0
  %694 = vmatpush1.msra.mxu0 0.0
  %695 = vmatprep.subr.mxu0 0.0
  %696 = vmatpush1.msra.mxu0 0.0
  %697 = vmatprep.subr.mxu0 0.0
  %698 = vmatpush1.msra.mxu0 0.0
  %699 = vmatprep.subr.mxu0 0.0
  %700 = vmatpush1.msra.mxu0 0.0
  %701 = vmatprep.subr.mxu0 0.0
  %702 = vmatpush1.msra.mxu0 0.0
  %703 = vmatprep.subr.mxu0 0.0
  %704 = vmatpush1.msra.mxu0 0.0
  %705 = vmatprep.subr.mxu0 0.0
  %706 = vmatpush1.msra.mxu0 0.0
  %707 = vmatprep.subr.mxu0 0.0
  %708 = vmatpush1.msra.mxu0 0.0
  %709 = vmatprep.subr.mxu0 0.0
  %710 = vmatpush1.msra.mxu0 0.0
  %711 = vmatprep.subr.mxu0 0.0
  %712 = vmatpush1.msra.mxu0 %v537
  %713 = vmatprep.subr.mxu0 0.0
  %714 = vmatpush2.msra.mxu0 0.0
  %715 = vmatprep.subr.mxu0 0.0
  %716 = vmatpush2.msra.mxu0 0.0
  %717 = vmatprep.subr.mxu0 0.0
  %718 = vmatpush2.msra.mxu0 0.0
  %719 = vmatprep.subr.mxu0 0.0
  %720 = vmatpush2.msra.mxu0 0.0
  %721 = vmatprep.subr.mxu0 0.0
  %722 = vmatpush2.msra.mxu0 0.0
  %723 = vmatprep.subr.mxu0 0.0
  %724 = vmatpush2.msra.mxu0 0.0
  %725 = vmatprep.subr.mxu0 0.0
  %726 = vmatpush2.msra.mxu0 0.0
  %727 = vmatprep.subr.mxu0 0.0
  %728 = vmatpush2.msra.mxu0 0.0
  %729 = vmatprep.subr.mxu0 0.0
  %730 = vmatpush2.msra.mxu0 0.0
  %731 = vmatprep.subr.mxu0 0.0
  %732 = vmatpush2.msra.mxu0 0.0
  %733 = vmatprep.subr.mxu0 0.0
  %734 = vmatpush2.msra.mxu0 0.0
  %735 = vmatprep.subr.mxu0 0.0
  %736 = vmatpush2.msra.mxu0 0.0
  %737 = vmatprep.subr.mxu0 0.0
  %738 = vmatpush2.msra.mxu0 0.0
  %739 = vmatprep.subr.mxu0 0.0
  %740 = vmatpush2.msra.mxu0 0.0
  %741 = vmatprep.subr.mxu0 0.0
  %742 = vmatpush2.msra.mxu0 0.0
  %743 = vmatprep.subr.mxu0 0.0
  %744 = vmatpush2.msra.mxu0 0.0
  %745 = vmatprep.mubr.f32.mxu0 0.0
  %746 = vmatmul.mubr.f32.gmra.mxu0 %v527
  %v747 = vpop.f32.mrf.mxu0
  %v748 = vadd.f32 0.0, %v747
  %v749 = vpop.f32.mrf.mxu0
  %750 = vdwg.mxu0
  %v751 = vadd.f32 %v356, %v606
  %v752 = vadd.f32 %v358, %v608
  %v753 = vadd.f32 %v427, %v677
  %v754 = vadd.f32 %v429, %v679
  %v755 = vadd.f32 %v498, %v748
  %v756 = vld [vmem:[%s0] sm:$0xff]
  %v757 = vld [vmem:[%s0 + $0x8] sm:$0xff]
  %v758 = vld [vmem:[%s0 + $0x10] sm:$0xf]
  %s759 = scalar_lea.vmem %s1, 12
  %v760 = vld [vmem:[%s759] sm:$0xf]
  %v764 = vcombine.high %v756, %v756
  %v765 = vcombine.high %v757, %v757
  %766 = vrot.lane.b32.xlu0 %v756, 110
  %v767 = vpop.permute.xlu0 %766
  %768 = vrot.lane.b32.xlu0 %v764, 110
  %v769 = vpop.permute.xlu0 %768
  %770 = vrot.lane.b32.xlu0 %v757, 110
  %v771 = vpop.permute.xlu0 %770
  %772 = vrot.lane.b32.xlu0 %v765, 110
  %v773 = vpop.permute.xlu0 %772
  %774 = vrot.lane.b32.xlu0 %v758, 110
  %v775 = vpop.permute.xlu0 %774
  %vm776 = vcmask 900096
  %v777 = vsel %vm776, %v767, %v769
  %v778 = vsel %vm776, %v769, %v771
  %v779 = vsel %vm776, %v771, %v773
  %v780 = vsel %vm776, %v773, %v775
  %v782 = vsel %vm49, %v760, 0
  %v784 = vsel %vm53, %v777, 0
  %v786 = vsel %vm53, %v778, 0
  %v788 = vsel %vm53, %v779, 0
  %v790 = vsel %vm53, %v780, 0
  %v792 = vsel %vm53, %v775, 0
  %794 = vmatprep.subr.mxu0 0.0
  %795 = vmatpush1.msra.mxu0 0.0
  %796 = vmatprep.subr.mxu0 0.0
  %797 = vmatpush1.msra.mxu0 0.0
  %798 = vmatprep.subr.mxu0 0.0
  %799 = vmatpush1.msra.mxu0 0.0
  %800 = vmatprep.subr.mxu0 0.0
  %801 = vmatpush1.msra.mxu0 0.0
  %802 = vmatprep.subr.mxu0 0.0
  %803 = vmatpush1.msra.mxu0 0.0
  %804 = vmatprep.subr.mxu0 0.0
  %805 = vmatpush1.msra.mxu0 0.0
  %806 = vmatprep.subr.mxu0 0.0
  %807 = vmatpush1.msra.mxu0 0.0
  %808 = vmatprep.subr.mxu0 0.0
  %809 = vmatpush1.msra.mxu0 0.0
  %810 = vmatprep.subr.mxu0 0.0
  %811 = vmatpush1.msra.mxu0 0.0
  %812 = vmatprep.subr.mxu0 0.0
  %813 = vmatpush1.msra.mxu0 0.0
  %814 = vmatprep.subr.mxu0 0.0
  %815 = vmatpush1.msra.mxu0 0.0
  %816 = vmatprep.subr.mxu0 0.0
  %817 = vmatpush1.msra.mxu0 0.0
  %818 = vmatprep.subr.mxu0 0.0
  %819 = vmatpush1.msra.mxu0 0.0
  %820 = vmatprep.subr.mxu0 0.0
  %821 = vmatpush1.msra.mxu0 0.0
  %822 = vmatprep.subr.mxu0 0.0
  %823 = vmatpush1.msra.mxu0 0.0
  %824 = vmatprep.subr.mxu0 %v786
  %825 = vmatpush1.msra.mxu0 %v784
  %826 = vmatprep.subr.mxu0 0.0
  %827 = vmatpush2.msra.mxu0 0.0
  %828 = vmatprep.subr.mxu0 0.0
  %829 = vmatpush2.msra.mxu0 0.0
  %830 = vmatprep.subr.mxu0 0.0
  %831 = vmatpush2.msra.mxu0 0.0
  %832 = vmatprep.subr.mxu0 0.0
  %833 = vmatpush2.msra.mxu0 0.0
  %834 = vmatprep.subr.mxu0 0.0
  %835 = vmatpush2.msra.mxu0 0.0
  %836 = vmatprep.subr.mxu0 0.0
  %837 = vmatpush2.msra.mxu0 0.0
  %838 = vmatprep.subr.mxu0 0.0
  %839 = vmatpush2.msra.mxu0 0.0
  %840 = vmatprep.subr.mxu0 0.0
  %841 = vmatpush2.msra.mxu0 0.0
  %842 = vmatprep.subr.mxu0 0.0
  %843 = vmatpush2.msra.mxu0 0.0
  %844 = vmatprep.subr.mxu0 0.0
  %845 = vmatpush2.msra.mxu0 0.0
  %846 = vmatprep.subr.mxu0 0.0
  %847 = vmatpush2.msra.mxu0 0.0
  %848 = vmatprep.subr.mxu0 0.0
  %849 = vmatpush2.msra.mxu0 0.0
  %850 = vmatprep.subr.mxu0 0.0
  %851 = vmatpush2.msra.mxu0 0.0
  %852 = vmatprep.subr.mxu0 0.0
  %853 = vmatpush2.msra.mxu0 0.0
  %854 = vmatprep.subr.mxu0 0.0
  %855 = vmatpush2.msra.mxu0 0.0
  %856 = vmatprep.subr.mxu0 0.0
  %857 = vmatpush2.msra.mxu0 0.0
  %858 = vmatprep.mubr.f32.mxu0 0.0
  %859 = vmatmul.mubr.f32.gmra.mxu0 %v782
  %v860 = vpop.f32.mrf.mxu0
  %v861 = vadd.f32 0.0, %v860
  %v862 = vpop.f32.mrf.mxu0
  %v863 = vadd.f32 0.0, %v862
  %864 = vdwg.mxu0
  %865 = vmatprep.subr.mxu0 0.0
  %866 = vmatpush1.msra.mxu0 0.0
  %867 = vmatprep.subr.mxu0 0.0
  %868 = vmatpush1.msra.mxu0 0.0
  %869 = vmatprep.subr.mxu0 0.0
  %870 = vmatpush1.msra.mxu0 0.0
  %871 = vmatprep.subr.mxu0 0.0
  %872 = vmatpush1.msra.mxu0 0.0
  %873 = vmatprep.subr.mxu0 0.0
  %874 = vmatpush1.msra.mxu0 0.0
  %875 = vmatprep.subr.mxu0 0.0
  %876 = vmatpush1.msra.mxu0 0.0
  %877 = vmatprep.subr.mxu0 0.0
  %878 = vmatpush1.msra.mxu0 0.0
  %879 = vmatprep.subr.mxu0 0.0
  %880 = vmatpush1.msra.mxu0 0.0
  %881 = vmatprep.subr.mxu0 0.0
  %882 = vmatpush1.msra.mxu0 0.0
  %883 = vmatprep.subr.mxu0 0.0
  %884 = vmatpush1.msra.mxu0 0.0
  %885 = vmatprep.subr.mxu0 0.0
  %886 = vmatpush1.msra.mxu0 0.0
  %887 = vmatprep.subr.mxu0 0.0
  %888 = vmatpush1.msra.mxu0 0.0
  %889 = vmatprep.subr.mxu0 0.0
  %890 = vmatpush1.msra.mxu0 0.0
  %891 = vmatprep.subr.mxu0 0.0
  %892 = vmatpush1.msra.mxu0 0.0
  %893 = vmatprep.subr.mxu0 0.0
  %894 = vmatpush1.msra.mxu0 0.0
  %895 = vmatprep.subr.mxu0 %v790
  %896 = vmatpush1.msra.mxu0 %v788
  %897 = vmatprep.subr.mxu0 0.0
  %898 = vmatpush2.msra.mxu0 0.0
  %899 = vmatprep.subr.mxu0 0.0
  %900 = vmatpush2.msra.mxu0 0.0
  %901 = vmatprep.subr.mxu0 0.0
  %902 = vmatpush2.msra.mxu0 0.0
  %903 = vmatprep.subr.mxu0 0.0
  %904 = vmatpush2.msra.mxu0 0.0
  %905 = vmatprep.subr.mxu0 0.0
  %906 = vmatpush2.msra.mxu0 0.0
  %907 = vmatprep.subr.mxu0 0.0
  %908 = vmatpush2.msra.mxu0 0.0
  %909 = vmatprep.subr.mxu0 0.0
  %910 = vmatpush2.msra.mxu0 0.0
  %911 = vmatprep.subr.mxu0 0.0
  %912 = vmatpush2.msra.mxu0 0.0
  %913 = vmatprep.subr.mxu0 0.0
  %914 = vmatpush2.msra.mxu0 0.0
  %915 = vmatprep.subr.mxu0 0.0
  %916 = vmatpush2.msra.mxu0 0.0
  %917 = vmatprep.subr.mxu0 0.0
  %918 = vmatpush2.msra.mxu0 0.0
  %919 = vmatprep.subr.mxu0 0.0
  %920 = vmatpush2.msra.mxu0 0.0
  %921 = vmatprep.subr.mxu0 0.0
  %922 = vmatpush2.msra.mxu0 0.0
  %923 = vmatprep.subr.mxu0 0.0
  %924 = vmatpush2.msra.mxu0 0.0
  %925 = vmatprep.subr.mxu0 0.0
  %926 = vmatpush2.msra.mxu0 0.0
  %927 = vmatprep.subr.mxu0 0.0
  %928 = vmatpush2.msra.mxu0 0.0
  %929 = vmatprep.mubr.f32.mxu0 0.0
  %930 = vmatmul.mubr.f32.gmra.mxu0 %v782
  %v931 = vpop.f32.mrf.mxu0
  %v932 = vadd.f32 0.0, %v931
  %v933 = vpop.f32.mrf.mxu0
  %v934 = vadd.f32 0.0, %v933
  %935 = vdwg.mxu0
  %936 = vmatprep.subr.mxu0 0.0
  %937 = vmatpush1.msra.mxu0 0.0
  %938 = vmatprep.subr.mxu0 0.0
  %939 = vmatpush1.msra.mxu0 0.0
  %940 = vmatprep.subr.mxu0 0.0
  %941 = vmatpush1.msra.mxu0 0.0
  %942 = vmatprep.subr.mxu0 0.0
  %943 = vmatpush1.msra.mxu0 0.0
  %944 = vmatprep.subr.mxu0 0.0
  %945 = vmatpush1.msra.mxu0 0.0
  %946 = vmatprep.subr.mxu0 0.0
  %947 = vmatpush1.msra.mxu0 0.0
  %948 = vmatprep.subr.mxu0 0.0
  %949 = vmatpush1.msra.mxu0 0.0
  %950 = vmatprep.subr.mxu0 0.0
  %951 = vmatpush1.msra.mxu0 0.0
  %952 = vmatprep.subr.mxu0 0.0
  %953 = vmatpush1.msra.mxu0 0.0
  %954 = vmatprep.subr.mxu0 0.0
  %955 = vmatpush1.msra.mxu0 0.0
  %956 = vmatprep.subr.mxu0 0.0
  %957 = vmatpush1.msra.mxu0 0.0
  %958 = vmatprep.subr.mxu0 0.0
  %959 = vmatpush1.msra.mxu0 0.0
  %960 = vmatprep.subr.mxu0 0.0
  %961 = vmatpush1.msra.mxu0 0.0
  %962 = vmatprep.subr.mxu0 0.0
  %963 = vmatpush1.msra.mxu0 0.0
  %964 = vmatprep.subr.mxu0 0.0
  %965 = vmatpush1.msra.mxu0 0.0
  %966 = vmatprep.subr.mxu0 0.0
  %967 = vmatpush1.msra.mxu0 %v792
  %968 = vmatprep.subr.mxu0 0.0
  %969 = vmatpush2.msra.mxu0 0.0
  %970 = vmatprep.subr.mxu0 0.0
  %971 = vmatpush2.msra.mxu0 0.0
  %972 = vmatprep.subr.mxu0 0.0
  %973 = vmatpush2.msra.mxu0 0.0
  %974 = vmatprep.subr.mxu0 0.0
  %975 = vmatpush2.msra.mxu0 0.0
  %976 = vmatprep.subr.mxu0 0.0
  %977 = vmatpush2.msra.mxu0 0.0
  %978 = vmatprep.subr.mxu0 0.0
  %979 = vmatpush2.msra.mxu0 0.0
  %980 = vmatprep.subr.mxu0 0.0
  %981 = vmatpush2.msra.mxu0 0.0
  %982 = vmatprep.subr.mxu0 0.0
  %983 = vmatpush2.msra.mxu0 0.0
  %984 = vmatprep.subr.mxu0 0.0
  %985 = vmatpush2.msra.mxu0 0.0
  %986 = vmatprep.subr.mxu0 0.0
  %987 = vmatpush2.msra.mxu0 0.0
  %988 = vmatprep.subr.mxu0 0.0
  %989 = vmatpush2.msra.mxu0 0.0
  %990 = vmatprep.subr.mxu0 0.0
  %991 = vmatpush2.msra.mxu0 0.0
  %992 = vmatprep.subr.mxu0 0.0
  %993 = vmatpush2.msra.mxu0 0.0
  %994 = vmatprep.subr.mxu0 0.0
  %995 = vmatpush2.msra.mxu0 0.0
  %996 = vmatprep.subr.mxu0 0.0
  %997 = vmatpush2.msra.mxu0 0.0
  %998 = vmatprep.subr.mxu0 0.0
  %999 = vmatpush2.msra.mxu0 0.0
  %1000 = vmatprep.mubr.f32.mxu0 0.0
  %1001 = vmatmul.mubr.f32.gmra.mxu0 %v782
  %v1002 = vpop.f32.mrf.mxu0
  %v1003 = vadd.f32 0.0, %v1002
  %v1004 = vpop.f32.mrf.mxu0
  %1005 = vdwg.mxu0
  %v1006 = vadd.f32 %v751, %v861
  %v1007 = vadd.f32 %v752, %v863
  %v1008 = vadd.f32 %v753, %v932
  %v1009 = vadd.f32 %v754, %v934
  %v1010 = vadd.f32 %v755, %v1003
  %v1011 = vld [vmem:[%s0] sm:$0xff]
  %v1012 = vld [vmem:[%s0 + $0x8] sm:$0xff]
  %v1013 = vld [vmem:[%s0 + $0x10] sm:$0xf]
  %s1014 = scalar_lea.vmem %s1, 16
  %v1015 = vld [vmem:[%s1014] sm:$0xf]
  %v1019 = vcombine.high %v1011, %v1011
  %v1020 = vcombine.high %v1012, %v1012
  %1021 = vrot.lane.b32.xlu0 %v1011, 109
  %v1022 = vpop.permute.xlu0 %1021
  %1023 = vrot.lane.b32.xlu0 %v1019, 109
  %v1024 = vpop.permute.xlu0 %1023
  %1025 = vrot.lane.b32.xlu0 %v1012, 109
  %v1026 = vpop.permute.xlu0 %1025
  %1027 = vrot.lane.b32.xlu0 %v1020, 109
  %v1028 = vpop.permute.xlu0 %1027
  %1029 = vrot.lane.b32.xlu0 %v1013, 109
  %v1030 = vpop.permute.xlu0 %1029
  %vm1031 = vcmask 891904
  %v1032 = vsel %vm1031, %v1022, %v1024
  %v1033 = vsel %vm1031, %v1024, %v1026
  %v1034 = vsel %vm1031, %v1026, %v1028
  %v1035 = vsel %vm1031, %v1028, %v1030
  %v1037 = vsel %vm49, %v1015, 0
  %v1039 = vsel %vm53, %v1032, 0
  %v1041 = vsel %vm53, %v1033, 0
  %v1043 = vsel %vm53, %v1034, 0
  %v1045 = vsel %vm53, %v1035, 0
  %v1047 = vsel %vm53, %v1030, 0
  %1049 = vmatprep.subr.mxu0 0.0
  %1050 = vmatpush1.msra.mxu0 0.0
  %1051 = vmatprep.subr.mxu0 0.0
  %1052 = vmatpush1.msra.mxu0 0.0
  %1053 = vmatprep.subr.mxu0 0.0
  %1054 = vmatpush1.msra.mxu0 0.0
  %1055 = vmatprep.subr.mxu0 0.0
  %1056 = vmatpush1.msra.mxu0 0.0
  %1057 = vmatprep.subr.mxu0 0.0
  %1058 = vmatpush1.msra.mxu0 0.0
  %1059 = vmatprep.subr.mxu0 0.0
  %1060 = vmatpush1.msra.mxu0 0.0
  %1061 = vmatprep.subr.mxu0 0.0
  %1062 = vmatpush1.msra.mxu0 0.0
  %1063 = vmatprep.subr.mxu0 0.0
  %1064 = vmatpush1.msra.mxu0 0.0
  %1065 = vmatprep.subr.mxu0 0.0
  %1066 = vmatpush1.msra.mxu0 0.0
  %1067 = vmatprep.subr.mxu0 0.0
  %1068 = vmatpush1.msra.mxu0 0.0
  %1069 = vmatprep.subr.mxu0 0.0
  %1070 = vmatpush1.msra.mxu0 0.0
  %1071 = vmatprep.subr.mxu0 0.0
  %1072 = vmatpush1.msra.mxu0 0.0
  %1073 = vmatprep.subr.mxu0 0.0
  %1074 = vmatpush1.msra.mxu0 0.0
  %1075 = vmatprep.subr.mxu0 0.0
  %1076 = vmatpush1.msra.mxu0 0.0
  %1077 = vmatprep.subr.mxu0 0.0
  %1078 = vmatpush1.msra.mxu0 0.0
  %1079 = vmatprep.subr.mxu0 %v1041
  %1080 = vmatpush1.msra.mxu0 %v1039
  %1081 = vmatprep.subr.mxu0 0.0
  %1082 = vmatpush2.msra.mxu0 0.0
  %1083 = vmatprep.subr.mxu0 0.0
  %1084 = vmatpush2.msra.mxu0 0.0
  %1085 = vmatprep.subr.mxu0 0.0
  %1086 = vmatpush2.msra.mxu0 0.0
  %1087 = vmatprep.subr.mxu0 0.0
  %1088 = vmatpush2.msra.mxu0 0.0
  %1089 = vmatprep.subr.mxu0 0.0
  %1090 = vmatpush2.msra.mxu0 0.0
  %1091 = vmatprep.subr.mxu0 0.0
  %1092 = vmatpush2.msra.mxu0 0.0
  %1093 = vmatprep.subr.mxu0 0.0
  %1094 = vmatpush2.msra.mxu0 0.0
  %1095 = vmatprep.subr.mxu0 0.0
  %1096 = vmatpush2.msra.mxu0 0.0
  %1097 = vmatprep.subr.mxu0 0.0
  %1098 = vmatpush2.msra.mxu0 0.0
  %1099 = vmatprep.subr.mxu0 0.0
  %1100 = vmatpush2.msra.mxu0 0.0
  %1101 = vmatprep.subr.mxu0 0.0
  %1102 = vmatpush2.msra.mxu0 0.0
  %1103 = vmatprep.subr.mxu0 0.0
  %1104 = vmatpush2.msra.mxu0 0.0
  %1105 = vmatprep.subr.mxu0 0.0
  %1106 = vmatpush2.msra.mxu0 0.0
  %1107 = vmatprep.subr.mxu0 0.0
  %1108 = vmatpush2.msra.mxu0 0.0
  %1109 = vmatprep.subr.mxu0 0.0
  %1110 = vmatpush2.msra.mxu0 0.0
  %1111 = vmatprep.subr.mxu0 0.0
  %1112 = vmatpush2.msra.mxu0 0.0
  %1113 = vmatprep.mubr.f32.mxu0 0.0
  %1114 = vmatmul.mubr.f32.gmra.mxu0 %v1037
  %v1115 = vpop.f32.mrf.mxu0
  %v1116 = vadd.f32 0.0, %v1115
  %v1117 = vpop.f32.mrf.mxu0
  %v1118 = vadd.f32 0.0, %v1117
  %1119 = vdwg.mxu0
  %1120 = vmatprep.subr.mxu0 0.0
  %1121 = vmatpush1.msra.mxu0 0.0
  %1122 = vmatprep.subr.mxu0 0.0
  %1123 = vmatpush1.msra.mxu0 0.0
  %1124 = vmatprep.subr.mxu0 0.0
  %1125 = vmatpush1.msra.mxu0 0.0
  %1126 = vmatprep.subr.mxu0 0.0
  %1127 = vmatpush1.msra.mxu0 0.0
  %1128 = vmatprep.subr.mxu0 0.0
  %1129 = vmatpush1.msra.mxu0 0.0
  %1130 = vmatprep.subr.mxu0 0.0
  %1131 = vmatpush1.msra.mxu0 0.0
  %1132 = vmatprep.subr.mxu0 0.0
  %1133 = vmatpush1.msra.mxu0 0.0
  %1134 = vmatprep.subr.mxu0 0.0
  %1135 = vmatpush1.msra.mxu0 0.0
  %1136 = vmatprep.subr.mxu0 0.0
  %1137 = vmatpush1.msra.mxu0 0.0
  %1138 = vmatprep.subr.mxu0 0.0
  %1139 = vmatpush1.msra.mxu0 0.0
  %1140 = vmatprep.subr.mxu0 0.0
  %1141 = vmatpush1.msra.mxu0 0.0
  %1142 = vmatprep.subr.mxu0 0.0
  %1143 = vmatpush1.msra.mxu0 0.0
  %1144 = vmatprep.subr.mxu0 0.0
  %1145 = vmatpush1.msra.mxu0 0.0
  %1146 = vmatprep.subr.mxu0 0.0
  %1147 = vmatpush1.msra.mxu0 0.0
  %1148 = vmatprep.subr.mxu0 0.0
  %1149 = vmatpush1.msra.mxu0 0.0
  %1150 = vmatprep.subr.mxu0 %v1045
  %1151 = vmatpush1.msra.mxu0 %v1043
  %1152 = vmatprep.subr.mxu0 0.0
  %1153 = vmatpush2.msra.mxu0 0.0
  %1154 = vmatprep.subr.mxu0 0.0
  %1155 = vmatpush2.msra.mxu0 0.0
  %1156 = vmatprep.subr.mxu0 0.0
  %1157 = vmatpush2.msra.mxu0 0.0
  %1158 = vmatprep.subr.mxu0 0.0
  %1159 = vmatpush2.msra.mxu0 0.0
  %1160 = vmatprep.subr.mxu0 0.0
  %1161 = vmatpush2.msra.mxu0 0.0
  %1162 = vmatprep.subr.mxu0 0.0
  %1163 = vmatpush2.msra.mxu0 0.0
  %1164 = vmatprep.subr.mxu0 0.0
  %1165 = vmatpush2.msra.mxu0 0.0
  %1166 = vmatprep.subr.mxu0 0.0
  %1167 = vmatpush2.msra.mxu0 0.0
  %1168 = vmatprep.subr.mxu0 0.0
  %1169 = vmatpush2.msra.mxu0 0.0
  %1170 = vmatprep.subr.mxu0 0.0
  %1171 = vmatpush2.msra.mxu0 0.0
  %1172 = vmatprep.subr.mxu0 0.0
  %1173 = vmatpush2.msra.mxu0 0.0
  %1174 = vmatprep.subr.mxu0 0.0
  %1175 = vmatpush2.msra.mxu0 0.0
  %1176 = vmatprep.subr.mxu0 0.0
  %1177 = vmatpush2.msra.mxu0 0.0
  %1178 = vmatprep.subr.mxu0 0.0
  %1179 = vmatpush2.msra.mxu0 0.0
  %1180 = vmatprep.subr.mxu0 0.0
  %1181 = vmatpush2.msra.mxu0 0.0
  %1182 = vmatprep.subr.mxu0 0.0
  %1183 = vmatpush2.msra.mxu0 0.0
  %1184 = vmatprep.mubr.f32.mxu0 0.0
  %1185 = vmatmul.mubr.f32.gmra.mxu0 %v1037
  %v1186 = vpop.f32.mrf.mxu0
  %v1187 = vadd.f32 0.0, %v1186
  %v1188 = vpop.f32.mrf.mxu0
  %v1189 = vadd.f32 0.0, %v1188
  %1190 = vdwg.mxu0
  %1191 = vmatprep.subr.mxu0 0.0
  %1192 = vmatpush1.msra.mxu0 0.0
  %1193 = vmatprep.subr.mxu0 0.0
  %1194 = vmatpush1.msra.mxu0 0.0
  %1195 = vmatprep.subr.mxu0 0.0
  %1196 = vmatpush1.msra.mxu0 0.0
  %1197 = vmatprep.subr.mxu0 0.0
  %1198 = vmatpush1.msra.mxu0 0.0
  %1199 = vmatprep.subr.mxu0 0.0
  %1200 = vmatpush1.msra.mxu0 0.0
  %1201 = vmatprep.subr.mxu0 0.0
  %1202 = vmatpush1.msra.mxu0 0.0
  %1203 = vmatprep.subr.mxu0 0.0
  %1204 = vmatpush1.msra.mxu0 0.0
  %1205 = vmatprep.subr.mxu0 0.0
  %1206 = vmatpush1.msra.mxu0 0.0
  %1207 = vmatprep.subr.mxu0 0.0
  %1208 = vmatpush1.msra.mxu0 0.0
  %1209 = vmatprep.subr.mxu0 0.0
  %1210 = vmatpush1.msra.mxu0 0.0
  %1211 = vmatprep.subr.mxu0 0.0
  %1212 = vmatpush1.msra.mxu0 0.0
  %1213 = vmatprep.subr.mxu0 0.0
  %1214 = vmatpush1.msra.mxu0 0.0
  %1215 = vmatprep.subr.mxu0 0.0
  %1216 = vmatpush1.msra.mxu0 0.0
  %1217 = vmatprep.subr.mxu0 0.0
  %1218 = vmatpush1.msra.mxu0 0.0
  %1219 = vmatprep.subr.mxu0 0.0
  %1220 = vmatpush1.msra.mxu0 0.0
  %1221 = vmatprep.subr.mxu0 0.0
  %1222 = vmatpush1.msra.mxu0 %v1047
  %1223 = vmatprep.subr.mxu0 0.0
  %1224 = vmatpush2.msra.mxu0 0.0
  %1225 = vmatprep.subr.mxu0 0.0
  %1226 = vmatpush2.msra.mxu0 0.0
  %1227 = vmatprep.subr.mxu0 0.0
  %1228 = vmatpush2.msra.mxu0 0.0
  %1229 = vmatprep.subr.mxu0 0.0
  %1230 = vmatpush2.msra.mxu0 0.0
  %1231 = vmatprep.subr.mxu0 0.0
  %1232 = vmatpush2.msra.mxu0 0.0
  %1233 = vmatprep.subr.mxu0 0.0
  %1234 = vmatpush2.msra.mxu0 0.0
  %1235 = vmatprep.subr.mxu0 0.0
  %1236 = vmatpush2.msra.mxu0 0.0
  %1237 = vmatprep.subr.mxu0 0.0
  %1238 = vmatpush2.msra.mxu0 0.0
  %1239 = vmatprep.subr.mxu0 0.0
  %1240 = vmatpush2.msra.mxu0 0.0
  %1241 = vmatprep.subr.mxu0 0.0
  %1242 = vmatpush2.msra.mxu0 0.0
  %1243 = vmatprep.subr.mxu0 0.0
  %1244 = vmatpush2.msra.mxu0 0.0
  %1245 = vmatprep.subr.mxu0 0.0
  %1246 = vmatpush2.msra.mxu0 0.0
  %1247 = vmatprep.subr.mxu0 0.0
  %1248 = vmatpush2.msra.mxu0 0.0
  %1249 = vmatprep.subr.mxu0 0.0
  %1250 = vmatpush2.msra.mxu0 0.0
  %1251 = vmatprep.subr.mxu0 0.0
  %1252 = vmatpush2.msra.mxu0 0.0
  %1253 = vmatprep.subr.mxu0 0.0
  %1254 = vmatpush2.msra.mxu0 0.0
  %1255 = vmatprep.mubr.f32.mxu0 0.0
  %1256 = vmatmul.mubr.f32.gmra.mxu0 %v1037
  %v1257 = vpop.f32.mrf.mxu0
  %v1258 = vadd.f32 0.0, %v1257
  %v1259 = vpop.f32.mrf.mxu0
  %1260 = vdwg.mxu0
  %v1261 = vadd.f32 %v1006, %v1116
  %v1262 = vadd.f32 %v1007, %v1118
  %v1263 = vadd.f32 %v1008, %v1187
  %v1264 = vadd.f32 %v1009, %v1189
  %v1265 = vadd.f32 %v1010, %v1258
  %v1266 = vld [vmem:[%s0] sm:$0xff]
  %v1267 = vld [vmem:[%s0 + $0x8] sm:$0xff]
  %v1268 = vld [vmem:[%s0 + $0x10] sm:$0xf]
  %s1269 = scalar_lea.vmem %s1, 20
  %v1270 = vld [vmem:[%s1269] sm:$0xf]
  %v1274 = vcombine.high %v1266, %v1266
  %v1275 = vcombine.high %v1267, %v1267
  %1276 = vrot.lane.b32.xlu0 %v1266, 108
  %v1277 = vpop.permute.xlu0 %1276
  %1278 = vrot.lane.b32.xlu0 %v1274, 108
  %v1279 = vpop.permute.xlu0 %1278
  %1280 = vrot.lane.b32.xlu0 %v1267, 108
  %v1281 = vpop.permute.xlu0 %1280
  %1282 = vrot.lane.b32.xlu0 %v1275, 108
  %v1283 = vpop.permute.xlu0 %1282
  %1284 = vrot.lane.b32.xlu0 %v1268, 108
  %v1285 = vpop.permute.xlu0 %1284
  %vm1286 = vcmask 883712
  %v1287 = vsel %vm1286, %v1277, %v1279
  %v1288 = vsel %vm1286, %v1279, %v1281
  %v1289 = vsel %vm1286, %v1281, %v1283
  %v1290 = vsel %vm1286, %v1283, %v1285
  %v1292 = vsel %vm49, %v1270, 0
  %v1294 = vsel %vm53, %v1287, 0
  %v1296 = vsel %vm53, %v1288, 0
  %v1298 = vsel %vm53, %v1289, 0
  %v1300 = vsel %vm53, %v1290, 0
  %v1302 = vsel %vm53, %v1285, 0
  %1304 = vmatprep.subr.mxu0 0.0
  %1305 = vmatpush1.msra.mxu0 0.0
  %1306 = vmatprep.subr.mxu0 0.0
  %1307 = vmatpush1.msra.mxu0 0.0
  %1308 = vmatprep.subr.mxu0 0.0
  %1309 = vmatpush1.msra.mxu0 0.0
  %1310 = vmatprep.subr.mxu0 0.0
  %1311 = vmatpush1.msra.mxu0 0.0
  %1312 = vmatprep.subr.mxu0 0.0
  %1313 = vmatpush1.msra.mxu0 0.0
  %1314 = vmatprep.subr.mxu0 0.0
  %1315 = vmatpush1.msra.mxu0 0.0
  %1316 = vmatprep.subr.mxu0 0.0
  %1317 = vmatpush1.msra.mxu0 0.0
  %1318 = vmatprep.subr.mxu0 0.0
  %1319 = vmatpush1.msra.mxu0 0.0
  %1320 = vmatprep.subr.mxu0 0.0
  %1321 = vmatpush1.msra.mxu0 0.0
  %1322 = vmatprep.subr.mxu0 0.0
  %1323 = vmatpush1.msra.mxu0 0.0
  %1324 = vmatprep.subr.mxu0 0.0
  %1325 = vmatpush1.msra.mxu0 0.0
  %1326 = vmatprep.subr.mxu0 0.0
  %1327 = vmatpush1.msra.mxu0 0.0
  %1328 = vmatprep.subr.mxu0 0.0
  %1329 = vmatpush1.msra.mxu0 0.0
  %1330 = vmatprep.subr.mxu0 0.0
  %1331 = vmatpush1.msra.mxu0 0.0
  %1332 = vmatprep.subr.mxu0 0.0
  %1333 = vmatpush1.msra.mxu0 0.0
  %1334 = vmatprep.subr.mxu0 %v1296
  %1335 = vmatpush1.msra.mxu0 %v1294
  %1336 = vmatprep.subr.mxu0 0.0
  %1337 = vmatpush2.msra.mxu0 0.0
  %1338 = vmatprep.subr.mxu0 0.0
  %1339 = vmatpush2.msra.mxu0 0.0
  %1340 = vmatprep.subr.mxu0 0.0
  %1341 = vmatpush2.msra.mxu0 0.0
  %1342 = vmatprep.subr.mxu0 0.0
  %1343 = vmatpush2.msra.mxu0 0.0
  %1344 = vmatprep.subr.mxu0 0.0
  %1345 = vmatpush2.msra.mxu0 0.0
  %1346 = vmatprep.subr.mxu0 0.0
  %1347 = vmatpush2.msra.mxu0 0.0
  %1348 = vmatprep.subr.mxu0 0.0
  %1349 = vmatpush2.msra.mxu0 0.0
  %1350 = vmatprep.subr.mxu0 0.0
  %1351 = vmatpush2.msra.mxu0 0.0
  %1352 = vmatprep.subr.mxu0 0.0
  %1353 = vmatpush2.msra.mxu0 0.0
  %1354 = vmatprep.subr.mxu0 0.0
  %1355 = vmatpush2.msra.mxu0 0.0
  %1356 = vmatprep.subr.mxu0 0.0
  %1357 = vmatpush2.msra.mxu0 0.0
  %1358 = vmatprep.subr.mxu0 0.0
  %1359 = vmatpush2.msra.mxu0 0.0
  %1360 = vmatprep.subr.mxu0 0.0
  %1361 = vmatpush2.msra.mxu0 0.0
  %1362 = vmatprep.subr.mxu0 0.0
  %1363 = vmatpush2.msra.mxu0 0.0
  %1364 = vmatprep.subr.mxu0 0.0
  %1365 = vmatpush2.msra.mxu0 0.0
  %1366 = vmatprep.subr.mxu0 0.0
  %1367 = vmatpush2.msra.mxu0 0.0
  %1368 = vmatprep.mubr.f32.mxu0 0.0
  %1369 = vmatmul.mubr.f32.gmra.mxu0 %v1292
  %v1370 = vpop.f32.mrf.mxu0
  %v1371 = vadd.f32 0.0, %v1370
  %v1372 = vpop.f32.mrf.mxu0
  %v1373 = vadd.f32 0.0, %v1372
  %1374 = vdwg.mxu0
  %1375 = vmatprep.subr.mxu0 0.0
  %1376 = vmatpush1.msra.mxu0 0.0
  %1377 = vmatprep.subr.mxu0 0.0
  %1378 = vmatpush1.msra.mxu0 0.0
  %1379 = vmatprep.subr.mxu0 0.0
  %1380 = vmatpush1.msra.mxu0 0.0
  %1381 = vmatprep.subr.mxu0 0.0
  %1382 = vmatpush1.msra.mxu0 0.0
  %1383 = vmatprep.subr.mxu0 0.0
  %1384 = vmatpush1.msra.mxu0 0.0
  %1385 = vmatprep.subr.mxu0 0.0
  %1386 = vmatpush1.msra.mxu0 0.0
  %1387 = vmatprep.subr.mxu0 0.0
  %1388 = vmatpush1.msra.mxu0 0.0
  %1389 = vmatprep.subr.mxu0 0.0
  %1390 = vmatpush1.msra.mxu0 0.0
  %1391 = vmatprep.subr.mxu0 0.0
  %1392 = vmatpush1.msra.mxu0 0.0
  %1393 = vmatprep.subr.mxu0 0.0
  %1394 = vmatpush1.msra.mxu0 0.0
  %1395 = vmatprep.subr.mxu0 0.0
  %1396 = vmatpush1.msra.mxu0 0.0
  %1397 = vmatprep.subr.mxu0 0.0
  %1398 = vmatpush1.msra.mxu0 0.0
  %1399 = vmatprep.subr.mxu0 0.0
  %1400 = vmatpush1.msra.mxu0 0.0
  %1401 = vmatprep.subr.mxu0 0.0
  %1402 = vmatpush1.msra.mxu0 0.0
  %1403 = vmatprep.subr.mxu0 0.0
  %1404 = vmatpush1.msra.mxu0 0.0
  %1405 = vmatprep.subr.mxu0 %v1300
  %1406 = vmatpush1.msra.mxu0 %v1298
  %1407 = vmatprep.subr.mxu0 0.0
  %1408 = vmatpush2.msra.mxu0 0.0
  %1409 = vmatprep.subr.mxu0 0.0
  %1410 = vmatpush2.msra.mxu0 0.0
  %1411 = vmatprep.subr.mxu0 0.0
  %1412 = vmatpush2.msra.mxu0 0.0
  %1413 = vmatprep.subr.mxu0 0.0
  %1414 = vmatpush2.msra.mxu0 0.0
  %1415 = vmatprep.subr.mxu0 0.0
  %1416 = vmatpush2.msra.mxu0 0.0
  %1417 = vmatprep.subr.mxu0 0.0
  %1418 = vmatpush2.msra.mxu0 0.0
  %1419 = vmatprep.subr.mxu0 0.0
  %1420 = vmatpush2.msra.mxu0 0.0
  %1421 = vmatprep.subr.mxu0 0.0
  %1422 = vmatpush2.msra.mxu0 0.0
  %1423 = vmatprep.subr.mxu0 0.0
  %1424 = vmatpush2.msra.mxu0 0.0
  %1425 = vmatprep.subr.mxu0 0.0
  %1426 = vmatpush2.msra.mxu0 0.0
  %1427 = vmatprep.subr.mxu0 0.0
  %1428 = vmatpush2.msra.mxu0 0.0
  %1429 = vmatprep.subr.mxu0 0.0
  %1430 = vmatpush2.msra.mxu0 0.0
  %1431 = vmatprep.subr.mxu0 0.0
  %1432 = vmatpush2.msra.mxu0 0.0
  %1433 = vmatprep.subr.mxu0 0.0
  %1434 = vmatpush2.msra.mxu0 0.0
  %1435 = vmatprep.subr.mxu0 0.0
  %1436 = vmatpush2.msra.mxu0 0.0
  %1437 = vmatprep.subr.mxu0 0.0
  %1438 = vmatpush2.msra.mxu0 0.0
  %1439 = vmatprep.mubr.f32.mxu0 0.0
  %1440 = vmatmul.mubr.f32.gmra.mxu0 %v1292
  %v1441 = vpop.f32.mrf.mxu0
  %v1442 = vadd.f32 0.0, %v1441
  %v1443 = vpop.f32.mrf.mxu0
  %v1444 = vadd.f32 0.0, %v1443
  %1445 = vdwg.mxu0
  %1446 = vmatprep.subr.mxu0 0.0
  %1447 = vmatpush1.msra.mxu0 0.0
  %1448 = vmatprep.subr.mxu0 0.0
  %1449 = vmatpush1.msra.mxu0 0.0
  %1450 = vmatprep.subr.mxu0 0.0
  %1451 = vmatpush1.msra.mxu0 0.0
  %1452 = vmatprep.subr.mxu0 0.0
  %1453 = vmatpush1.msra.mxu0 0.0
  %1454 = vmatprep.subr.mxu0 0.0
  %1455 = vmatpush1.msra.mxu0 0.0
  %1456 = vmatprep.subr.mxu0 0.0
  %1457 = vmatpush1.msra.mxu0 0.0
  %1458 = vmatprep.subr.mxu0 0.0
  %1459 = vmatpush1.msra.mxu0 0.0
  %1460 = vmatprep.subr.mxu0 0.0
  %1461 = vmatpush1.msra.mxu0 0.0
  %1462 = vmatprep.subr.mxu0 0.0
  %1463 = vmatpush1.msra.mxu0 0.0
  %1464 = vmatprep.subr.mxu0 0.0
  %1465 = vmatpush1.msra.mxu0 0.0
  %1466 = vmatprep.subr.mxu0 0.0
  %1467 = vmatpush1.msra.mxu0 0.0
  %1468 = vmatprep.subr.mxu0 0.0
  %1469 = vmatpush1.msra.mxu0 0.0
  %1470 = vmatprep.subr.mxu0 0.0
  %1471 = vmatpush1.msra.mxu0 0.0
  %1472 = vmatprep.subr.mxu0 0.0
  %1473 = vmatpush1.msra.mxu0 0.0
  %1474 = vmatprep.subr.mxu0 0.0
  %1475 = vmatpush1.msra.mxu0 0.0
  %1476 = vmatprep.subr.mxu0 0.0
  %1477 = vmatpush1.msra.mxu0 %v1302
  %1478 = vmatprep.subr.mxu0 0.0
  %1479 = vmatpush2.msra.mxu0 0.0
  %1480 = vmatprep.subr.mxu0 0.0
  %1481 = vmatpush2.msra.mxu0 0.0
  %1482 = vmatprep.subr.mxu0 0.0
  %1483 = vmatpush2.msra.mxu0 0.0
  %1484 = vmatprep.subr.mxu0 0.0
  %1485 = vmatpush2.msra.mxu0 0.0
  %1486 = vmatprep.subr.mxu0 0.0
  %1487 = vmatpush2.msra.mxu0 0.0
  %1488 = vmatprep.subr.mxu0 0.0
  %1489 = vmatpush2.msra.mxu0 0.0
  %1490 = vmatprep.subr.mxu0 0.0
  %1491 = vmatpush2.msra.mxu0 0.0
  %1492 = vmatprep.subr.mxu0 0.0
  %1493 = vmatpush2.msra.mxu0 0.0
  %1494 = vmatprep.subr.mxu0 0.0
  %1495 = vmatpush2.msra.mxu0 0.0
  %1496 = vmatprep.subr.mxu0 0.0
  %1497 = vmatpush2.msra.mxu0 0.0
  %1498 = vmatprep.subr.mxu0 0.0
  %1499 = vmatpush2.msra.mxu0 0.0
  %1500 = vmatprep.subr.mxu0 0.0
  %1501 = vmatpush2.msra.mxu0 0.0
  %1502 = vmatprep.subr.mxu0 0.0
  %1503 = vmatpush2.msra.mxu0 0.0
  %1504 = vmatprep.subr.mxu0 0.0
  %1505 = vmatpush2.msra.mxu0 0.0
  %1506 = vmatprep.subr.mxu0 0.0
  %1507 = vmatpush2.msra.mxu0 0.0
  %1508 = vmatprep.subr.mxu0 0.0
  %1509 = vmatpush2.msra.mxu0 0.0
  %1510 = vmatprep.mubr.f32.mxu0 0.0
  %1511 = vmatmul.mubr.f32.gmra.mxu0 %v1292
  %v1512 = vpop.f32.mrf.mxu0
  %v1513 = vadd.f32 0.0, %v1512
  %v1514 = vpop.f32.mrf.mxu0
  %1515 = vdwg.mxu0
  %v1516 = vadd.f32 %v1261, %v1371
  %v1517 = vadd.f32 %v1262, %v1373
  %v1518 = vadd.f32 %v1263, %v1442
  %v1519 = vadd.f32 %v1264, %v1444
  %v1520 = vadd.f32 %v1265, %v1513
  %v1521 = vld [vmem:[%s0] sm:$0xff]
  %v1522 = vld [vmem:[%s0 + $0x8] sm:$0xff]
  %v1523 = vld [vmem:[%s0 + $0x10] sm:$0xff]
  %s1524 = scalar_lea.vmem %s1, 24
  %v1525 = vld [vmem:[%s1524] sm:$0xf]
  %v1529 = vcombine.high %v1521, %v1521
  %v1530 = vcombine.high %v1522, %v1522
  %v1531 = vcombine.high %v1523, %v1523
  %1532 = vrot.lane.b32.xlu0 %v1521, 92
  %v1533 = vpop.permute.xlu0 %1532
  %1534 = vrot.lane.b32.xlu0 %v1529, 92
  %v1535 = vpop.permute.xlu0 %1534
  %1536 = vrot.lane.b32.xlu0 %v1522, 92
  %v1537 = vpop.permute.xlu0 %1536
  %1538 = vrot.lane.b32.xlu0 %v1530, 92
  %v1539 = vpop.permute.xlu0 %1538
  %1540 = vrot.lane.b32.xlu0 %v1523, 92
  %v1541 = vpop.permute.xlu0 %1540
  %1542 = vrot.lane.b32.xlu0 %v1531, 92
  %v1543 = vpop.permute.xlu0 %1542
  %vm1544 = vcmask 752640
  %v1545 = vsel %vm1544, %v1533, %v1535
  %v1546 = vsel %vm1544, %v1535, %v1537
  %v1547 = vsel %vm1544, %v1537, %v1539
  %v1548 = vsel %vm1544, %v1539, %v1541
  %v1549 = vsel %vm1544, %v1541, %v1543
  %v1551 = vsel %vm49, %v1525, 0
  %v1553 = vsel %vm53, %v1545, 0
  %v1555 = vsel %vm53, %v1546, 0
  %v1557 = vsel %vm53, %v1547, 0
  %v1559 = vsel %vm53, %v1548, 0
  %v1561 = vsel %vm53, %v1549, 0
  %1563 = vmatprep.subr.mxu0 0.0
  %1564 = vmatpush1.msra.mxu0 0.0
  %1565 = vmatprep.subr.mxu0 0.0
  %1566 = vmatpush1.msra.mxu0 0.0
  %1567 = vmatprep.subr.mxu0 0.0
  %1568 = vmatpush1.msra.mxu0 0.0
  %1569 = vmatprep.subr.mxu0 0.0
  %1570 = vmatpush1.msra.mxu0 0.0
  %1571 = vmatprep.subr.mxu0 0.0
  %1572 = vmatpush1.msra.mxu0 0.0
  %1573 = vmatprep.subr.mxu0 0.0
  %1574 = vmatpush1.msra.mxu0 0.0
  %1575 = vmatprep.subr.mxu0 0.0
  %1576 = vmatpush1.msra.mxu0 0.0
  %1577 = vmatprep.subr.mxu0 0.0
  %1578 = vmatpush1.msra.mxu0 0.0
  %1579 = vmatprep.subr.mxu0 0.0
  %1580 = vmatpush1.msra.mxu0 0.0
  %1581 = vmatprep.subr.mxu0 0.0
  %1582 = vmatpush1.msra.mxu0 0.0
  %1583 = vmatprep.subr.mxu0 0.0
  %1584 = vmatpush1.msra.mxu0 0.0
  %1585 = vmatprep.subr.mxu0 0.0
  %1586 = vmatpush1.msra.mxu0 0.0
  %1587 = vmatprep.subr.mxu0 0.0
  %1588 = vmatpush1.msra.mxu0 0.0
  %1589 = vmatprep.subr.mxu0 0.0
  %1590 = vmatpush1.msra.mxu0 0.0
  %1591 = vmatprep.subr.mxu0 0.0
  %1592 = vmatpush1.msra.mxu0 0.0
  %1593 = vmatprep.subr.mxu0 %v1555
  %1594 = vmatpush1.msra.mxu0 %v1553
  %1595 = vmatprep.subr.mxu0 0.0
  %1596 = vmatpush2.msra.mxu0 0.0
  %1597 = vmatprep.subr.mxu0 0.0
  %1598 = vmatpush2.msra.mxu0 0.0
  %1599 = vmatprep.subr.mxu0 0.0
  %1600 = vmatpush2.msra.mxu0 0.0
  %1601 = vmatprep.subr.mxu0 0.0
  %1602 = vmatpush2.msra.mxu0 0.0
  %1603 = vmatprep.subr.mxu0 0.0
  %1604 = vmatpush2.msra.mxu0 0.0
  %1605 = vmatprep.subr.mxu0 0.0
  %1606 = vmatpush2.msra.mxu0 0.0
  %1607 = vmatprep.subr.mxu0 0.0
  %1608 = vmatpush2.msra.mxu0 0.0
  %1609 = vmatprep.subr.mxu0 0.0
  %1610 = vmatpush2.msra.mxu0 0.0
  %1611 = vmatprep.subr.mxu0 0.0
  %1612 = vmatpush2.msra.mxu0 0.0
  %1613 = vmatprep.subr.mxu0 0.0
  %1614 = vmatpush2.msra.mxu0 0.0
  %1615 = vmatprep.subr.mxu0 0.0
  %1616 = vmatpush2.msra.mxu0 0.0
  %1617 = vmatprep.subr.mxu0 0.0
  %1618 = vmatpush2.msra.mxu0 0.0
  %1619 = vmatprep.subr.mxu0 0.0
  %1620 = vmatpush2.msra.mxu0 0.0
  %1621 = vmatprep.subr.mxu0 0.0
  %1622 = vmatpush2.msra.mxu0 0.0
  %1623 = vmatprep.subr.mxu0 0.0
  %1624 = vmatpush2.msra.mxu0 0.0
  %1625 = vmatprep.subr.mxu0 0.0
  %1626 = vmatpush2.msra.mxu0 0.0
  %1627 = vmatprep.mubr.f32.mxu0 0.0
  %1628 = vmatmul.mubr.f32.gmra.mxu0 %v1551
  %v1629 = vpop.f32.mrf.mxu0
  %v1630 = vadd.f32 0.0, %v1629
  %v1631 = vpop.f32.mrf.mxu0
  %v1632 = vadd.f32 0.0, %v1631
  %1633 = vdwg.mxu0
  %1634 = vmatprep.subr.mxu0 0.0
  %1635 = vmatpush1.msra.mxu0 0.0
  %1636 = vmatprep.subr.mxu0 0.0
  %1637 = vmatpush1.msra.mxu0 0.0
  %1638 = vmatprep.subr.mxu0 0.0
  %1639 = vmatpush1.msra.mxu0 0.0
  %1640 = vmatprep.subr.mxu0 0.0
  %1641 = vmatpush1.msra.mxu0 0.0
  %1642 = vmatprep.subr.mxu0 0.0
  %1643 = vmatpush1.msra.mxu0 0.0
  %1644 = vmatprep.subr.mxu0 0.0
  %1645 = vmatpush1.msra.mxu0 0.0
  %1646 = vmatprep.subr.mxu0 0.0
  %1647 = vmatpush1.msra.mxu0 0.0
  %1648 = vmatprep.subr.mxu0 0.0
  %1649 = vmatpush1.msra.mxu0 0.0
  %1650 = vmatprep.subr.mxu0 0.0
  %1651 = vmatpush1.msra.mxu0 0.0
  %1652 = vmatprep.subr.mxu0 0.0
  %1653 = vmatpush1.msra.mxu0 0.0
  %1654 = vmatprep.subr.mxu0 0.0
  %1655 = vmatpush1.msra.mxu0 0.0
  %1656 = vmatprep.subr.mxu0 0.0
  %1657 = vmatpush1.msra.mxu0 0.0
  %1658 = vmatprep.subr.mxu0 0.0
  %1659 = vmatpush1.msra.mxu0 0.0
  %1660 = vmatprep.subr.mxu0 0.0
  %1661 = vmatpush1.msra.mxu0 0.0
  %1662 = vmatprep.subr.mxu0 0.0
  %1663 = vmatpush1.msra.mxu0 0.0
  %1664 = vmatprep.subr.mxu0 %v1559
  %1665 = vmatpush1.msra.mxu0 %v1557
  %1666 = vmatprep.subr.mxu0 0.0
  %1667 = vmatpush2.msra.mxu0 0.0
  %1668 = vmatprep.subr.mxu0 0.0
  %1669 = vmatpush2.msra.mxu0 0.0
  %1670 = vmatprep.subr.mxu0 0.0
  %1671 = vmatpush2.msra.mxu0 0.0
  %1672 = vmatprep.subr.mxu0 0.0
  %1673 = vmatpush2.msra.mxu0 0.0
  %1674 = vmatprep.subr.mxu0 0.0
  %1675 = vmatpush2.msra.mxu0 0.0
  %1676 = vmatprep.subr.mxu0 0.0
  %1677 = vmatpush2.msra.mxu0 0.0
  %1678 = vmatprep.subr.mxu0 0.0
  %1679 = vmatpush2.msra.mxu0 0.0
  %1680 = vmatprep.subr.mxu0 0.0
  %1681 = vmatpush2.msra.mxu0 0.0
  %1682 = vmatprep.subr.mxu0 0.0
  %1683 = vmatpush2.msra.mxu0 0.0
  %1684 = vmatprep.subr.mxu0 0.0
  %1685 = vmatpush2.msra.mxu0 0.0
  %1686 = vmatprep.subr.mxu0 0.0
  %1687 = vmatpush2.msra.mxu0 0.0
  %1688 = vmatprep.subr.mxu0 0.0
  %1689 = vmatpush2.msra.mxu0 0.0
  %1690 = vmatprep.subr.mxu0 0.0
  %1691 = vmatpush2.msra.mxu0 0.0
  %1692 = vmatprep.subr.mxu0 0.0
  %1693 = vmatpush2.msra.mxu0 0.0
  %1694 = vmatprep.subr.mxu0 0.0
  %1695 = vmatpush2.msra.mxu0 0.0
  %1696 = vmatprep.subr.mxu0 0.0
  %1697 = vmatpush2.msra.mxu0 0.0
  %1698 = vmatprep.mubr.f32.mxu0 0.0
  %1699 = vmatmul.mubr.f32.gmra.mxu0 %v1551
  %v1700 = vpop.f32.mrf.mxu0
  %v1701 = vadd.f32 0.0, %v1700
  %v1702 = vpop.f32.mrf.mxu0
  %v1703 = vadd.f32 0.0, %v1702
  %1704 = vdwg.mxu0
  %1705 = vmatprep.subr.mxu0 0.0
  %1706 = vmatpush1.msra.mxu0 0.0
  %1707 = vmatprep.subr.mxu0 0.0
  %1708 = vmatpush1.msra.mxu0 0.0
  %1709 = vmatprep.subr.mxu0 0.0
  %1710 = vmatpush1.msra.mxu0 0.0
  %1711 = vmatprep.subr.mxu0 0.0
  %1712 = vmatpush1.msra.mxu0 0.0
  %1713 = vmatprep.subr.mxu0 0.0
  %1714 = vmatpush1.msra.mxu0 0.0
  %1715 = vmatprep.subr.mxu0 0.0
  %1716 = vmatpush1.msra.mxu0 0.0
  %1717 = vmatprep.subr.mxu0 0.0
  %1718 = vmatpush1.msra.mxu0 0.0
  %1719 = vmatprep.subr.mxu0 0.0
  %1720 = vmatpush1.msra.mxu0 0.0
  %1721 = vmatprep.subr.mxu0 0.0
  %1722 = vmatpush1.msra.mxu0 0.0
  %1723 = vmatprep.subr.mxu0 0.0
  %1724 = vmatpush1.msra.mxu0 0.0
  %1725 = vmatprep.subr.mxu0 0.0
  %1726 = vmatpush1.msra.mxu0 0.0
  %1727 = vmatprep.subr.mxu0 0.0
  %1728 = vmatpush1.msra.mxu0 0.0
  %1729 = vmatprep.subr.mxu0 0.0
  %1730 = vmatpush1.msra.mxu0 0.0
  %1731 = vmatprep.subr.mxu0 0.0
  %1732 = vmatpush1.msra.mxu0 0.0
  %1733 = vmatprep.subr.mxu0 0.0
  %1734 = vmatpush1.msra.mxu0 0.0
  %1735 = vmatprep.subr.mxu0 0.0
  %1736 = vmatpush1.msra.mxu0 %v1561
  %1737 = vmatprep.subr.mxu0 0.0
  %1738 = vmatpush2.msra.mxu0 0.0
  %1739 = vmatprep.subr.mxu0 0.0
  %1740 = vmatpush2.msra.mxu0 0.0
  %1741 = vmatprep.subr.mxu0 0.0
  %1742 = vmatpush2.msra.mxu0 0.0
  %1743 = vmatprep.subr.mxu0 0.0
  %1744 = vmatpush2.msra.mxu0 0.0
  %1745 = vmatprep.subr.mxu0 0.0
  %1746 = vmatpush2.msra.mxu0 0.0
  %1747 = vmatprep.subr.mxu0 0.0
  %1748 = vmatpush2.msra.mxu0 0.0
  %1749 = vmatprep.subr.mxu0 0.0
  %1750 = vmatpush2.msra.mxu0 0.0
  %1751 = vmatprep.subr.mxu0 0.0
  %1752 = vmatpush2.msra.mxu0 0.0
  %1753 = vmatprep.subr.mxu0 0.0
  %1754 = vmatpush2.msra.mxu0 0.0
  %1755 = vmatprep.subr.mxu0 0.0
  %1756 = vmatpush2.msra.mxu0 0.0
  %1757 = vmatprep.subr.mxu0 0.0
  %1758 = vmatpush2.msra.mxu0 0.0
  %1759 = vmatprep.subr.mxu0 0.0
  %1760 = vmatpush2.msra.mxu0 0.0
  %1761 = vmatprep.subr.mxu0 0.0
  %1762 = vmatpush2.msra.mxu0 0.0
  %1763 = vmatprep.subr.mxu0 0.0
  %1764 = vmatpush2.msra.mxu0 0.0
  %1765 = vmatprep.subr.mxu0 0.0
  %1766 = vmatpush2.msra.mxu0 0.0
  %1767 = vmatprep.subr.mxu0 0.0
  %1768 = vmatpush2.msra.mxu0 0.0
  %1769 = vmatprep.mubr.f32.mxu0 0.0
  %1770 = vmatmul.mubr.f32.gmra.mxu0 %v1551
  %v1771 = vpop.f32.mrf.mxu0
  %v1772 = vadd.f32 0.0, %v1771
  %v1773 = vpop.f32.mrf.mxu0
  %1774 = vdwg.mxu0
  %v1775 = vadd.f32 %v1516, %v1630
  %v1776 = vadd.f32 %v1517, %v1632
  %v1777 = vadd.f32 %v1518, %v1701
  %v1778 = vadd.f32 %v1519, %v1703
  %v1779 = vadd.f32 %v1520, %v1772
  %v1780 = vld [vmem:[%s0] sm:$0xff]
  %v1781 = vld [vmem:[%s0 + $0x8] sm:$0xff]
  %v1782 = vld [vmem:[%s0 + $0x10] sm:$0xff]
  %s1783 = scalar_lea.vmem %s1, 28
  %v1784 = vld [vmem:[%s1783] sm:$0xf]
  %v1788 = vcombine.high %v1780, %v1780
  %v1789 = vcombine.high %v1781, %v1781
  %v1790 = vcombine.high %v1782, %v1782
  %1791 = vrot.lane.b32.xlu0 %v1780, 91
  %v1792 = vpop.permute.xlu0 %1791
  %1793 = vrot.lane.b32.xlu0 %v1788, 91
  %v1794 = vpop.permute.xlu0 %1793
  %1795 = vrot.lane.b32.xlu0 %v1781, 91
  %v1796 = vpop.permute.xlu0 %1795
  %1797 = vrot.lane.b32.xlu0 %v1789, 91
  %v1798 = vpop.permute.xlu0 %1797
  %1799 = vrot.lane.b32.xlu0 %v1782, 91
  %v1800 = vpop.permute.xlu0 %1799
  %1801 = vrot.lane.b32.xlu0 %v1790, 91
  %v1802 = vpop.permute.xlu0 %1801
  %vm1803 = vcmask 744448
  %v1804 = vsel %vm1803, %v1792, %v1794
  %v1805 = vsel %vm1803, %v1794, %v1796
  %v1806 = vsel %vm1803, %v1796, %v1798
  %v1807 = vsel %vm1803, %v1798, %v1800
  %v1808 = vsel %vm1803, %v1800, %v1802
  %v1810 = vsel %vm49, %v1784, 0
  %v1812 = vsel %vm53, %v1804, 0
  %v1814 = vsel %vm53, %v1805, 0
  %v1816 = vsel %vm53, %v1806, 0
  %v1818 = vsel %vm53, %v1807, 0
  %v1820 = vsel %vm53, %v1808, 0
  %1822 = vmatprep.subr.mxu0 0.0
  %1823 = vmatpush1.msra.mxu0 0.0
  %1824 = vmatprep.subr.mxu0 0.0
  %1825 = vmatpush1.msra.mxu0 0.0
  %1826 = vmatprep.subr.mxu0 0.0
  %1827 = vmatpush1.msra.mxu0 0.0
  %1828 = vmatprep.subr.mxu0 0.0
  %1829 = vmatpush1.msra.mxu0 0.0
  %1830 = vmatprep.subr.mxu0 0.0
  %1831 = vmatpush1.msra.mxu0 0.0
  %1832 = vmatprep.subr.mxu0 0.0
  %1833 = vmatpush1.msra.mxu0 0.0
  %1834 = vmatprep.subr.mxu0 0.0
  %1835 = vmatpush1.msra.mxu0 0.0
  %1836 = vmatprep.subr.mxu0 0.0
  %1837 = vmatpush1.msra.mxu0 0.0
  %1838 = vmatprep.subr.mxu0 0.0
  %1839 = vmatpush1.msra.mxu0 0.0
  %1840 = vmatprep.subr.mxu0 0.0
  %1841 = vmatpush1.msra.mxu0 0.0
  %1842 = vmatprep.subr.mxu0 0.0
  %1843 = vmatpush1.msra.mxu0 0.0
  %1844 = vmatprep.subr.mxu0 0.0
  %1845 = vmatpush1.msra.mxu0 0.0
  %1846 = vmatprep.subr.mxu0 0.0
  %1847 = vmatpush1.msra.mxu0 0.0
  %1848 = vmatprep.subr.mxu0 0.0
  %1849 = vmatpush1.msra.mxu0 0.0
  %1850 = vmatprep.subr.mxu0 0.0
  %1851 = vmatpush1.msra.mxu0 0.0
  %1852 = vmatprep.subr.mxu0 %v1814
  %1853 = vmatpush1.msra.mxu0 %v1812
  %1854 = vmatprep.subr.mxu0 0.0
  %1855 = vmatpush2.msra.mxu0 0.0
  %1856 = vmatprep.subr.mxu0 0.0
  %1857 = vmatpush2.msra.mxu0 0.0
  %1858 = vmatprep.subr.mxu0 0.0
  %1859 = vmatpush2.msra.mxu0 0.0
  %1860 = vmatprep.subr.mxu0 0.0
  %1861 = vmatpush2.msra.mxu0 0.0
  %1862 = vmatprep.subr.mxu0 0.0
  %1863 = vmatpush2.msra.mxu0 0.0
  %1864 = vmatprep.subr.mxu0 0.0
  %1865 = vmatpush2.msra.mxu0 0.0
  %1866 = vmatprep.subr.mxu0 0.0
  %1867 = vmatpush2.msra.mxu0 0.0
  %1868 = vmatprep.subr.mxu0 0.0
  %1869 = vmatpush2.msra.mxu0 0.0
  %1870 = vmatprep.subr.mxu0 0.0
  %1871 = vmatpush2.msra.mxu0 0.0
  %1872 = vmatprep.subr.mxu0 0.0
  %1873 = vmatpush2.msra.mxu0 0.0
  %1874 = vmatprep.subr.mxu0 0.0
  %1875 = vmatpush2.msra.mxu0 0.0
  %1876 = vmatprep.subr.mxu0 0.0
  %1877 = vmatpush2.msra.mxu0 0.0
  %1878 = vmatprep.subr.mxu0 0.0
  %1879 = vmatpush2.msra.mxu0 0.0
  %1880 = vmatprep.subr.mxu0 0.0
  %1881 = vmatpush2.msra.mxu0 0.0
  %1882 = vmatprep.subr.mxu0 0.0
  %1883 = vmatpush2.msra.mxu0 0.0
  %1884 = vmatprep.subr.mxu0 0.0
  %1885 = vmatpush2.msra.mxu0 0.0
  %1886 = vmatprep.mubr.f32.mxu0 0.0
  %1887 = vmatmul.mubr.f32.gmra.mxu0 %v1810
  %v1888 = vpop.f32.mrf.mxu0
  %v1889 = vadd.f32 0.0, %v1888
  %v1890 = vpop.f32.mrf.mxu0
  %v1891 = vadd.f32 0.0, %v1890
  %1892 = vdwg.mxu0
  %1893 = vmatprep.subr.mxu0 0.0
  %1894 = vmatpush1.msra.mxu0 0.0
  %1895 = vmatprep.subr.mxu0 0.0
  %1896 = vmatpush1.msra.mxu0 0.0
  %1897 = vmatprep.subr.mxu0 0.0
  %1898 = vmatpush1.msra.mxu0 0.0
  %1899 = vmatprep.subr.mxu0 0.0
  %1900 = vmatpush1.msra.mxu0 0.0
  %1901 = vmatprep.subr.mxu0 0.0
  %1902 = vmatpush1.msra.mxu0 0.0
  %1903 = vmatprep.subr.mxu0 0.0
  %1904 = vmatpush1.msra.mxu0 0.0
  %1905 = vmatprep.subr.mxu0 0.0
  %1906 = vmatpush1.msra.mxu0 0.0
  %1907 = vmatprep.subr.mxu0 0.0
  %1908 = vmatpush1.msra.mxu0 0.0
  %1909 = vmatprep.subr.mxu0 0.0
  %1910 = vmatpush1.msra.mxu0 0.0
  %1911 = vmatprep.subr.mxu0 0.0
  %1912 = vmatpush1.msra.mxu0 0.0
  %1913 = vmatprep.subr.mxu0 0.0
  %1914 = vmatpush1.msra.mxu0 0.0
  %1915 = vmatprep.subr.mxu0 0.0
  %1916 = vmatpush1.msra.mxu0 0.0
  %1917 = vmatprep.subr.mxu0 0.0
  %1918 = vmatpush1.msra.mxu0 0.0
  %1919 = vmatprep.subr.mxu0 0.0
  %1920 = vmatpush1.msra.mxu0 0.0
  %1921 = vmatprep.subr.mxu0 0.0
  %1922 = vmatpush1.msra.mxu0 0.0
  %1923 = vmatprep.subr.mxu0 %v1818
  %1924 = vmatpush1.msra.mxu0 %v1816
  %1925 = vmatprep.subr.mxu0 0.0
  %1926 = vmatpush2.msra.mxu0 0.0
  %1927 = vmatprep.subr.mxu0 0.0
  %1928 = vmatpush2.msra.mxu0 0.0
  %1929 = vmatprep.subr.mxu0 0.0
  %1930 = vmatpush2.msra.mxu0 0.0
  %1931 = vmatprep.subr.mxu0 0.0
  %1932 = vmatpush2.msra.mxu0 0.0
  %1933 = vmatprep.subr.mxu0 0.0
  %1934 = vmatpush2.msra.mxu0 0.0
  %1935 = vmatprep.subr.mxu0 0.0
  %1936 = vmatpush2.msra.mxu0 0.0
  %1937 = vmatprep.subr.mxu0 0.0
  %1938 = vmatpush2.msra.mxu0 0.0
  %1939 = vmatprep.subr.mxu0 0.0
  %1940 = vmatpush2.msra.mxu0 0.0
  %1941 = vmatprep.subr.mxu0 0.0
  %1942 = vmatpush2.msra.mxu0 0.0
  %1943 = vmatprep.subr.mxu0 0.0
  %1944 = vmatpush2.msra.mxu0 0.0
  %1945 = vmatprep.subr.mxu0 0.0
  %1946 = vmatpush2.msra.mxu0 0.0
  %1947 = vmatprep.subr.mxu0 0.0
  %1948 = vmatpush2.msra.mxu0 0.0
  %1949 = vmatprep.subr.mxu0 0.0
  %1950 = vmatpush2.msra.mxu0 0.0
  %1951 = vmatprep.subr.mxu0 0.0
  %1952 = vmatpush2.msra.mxu0 0.0
  %1953 = vmatprep.subr.mxu0 0.0
  %1954 = vmatpush2.msra.mxu0 0.0
  %1955 = vmatprep.subr.mxu0 0.0
  %1956 = vmatpush2.msra.mxu0 0.0
  %1957 = vmatprep.mubr.f32.mxu0 0.0
  %1958 = vmatmul.mubr.f32.gmra.mxu0 %v1810
  %v1959 = vpop.f32.mrf.mxu0
  %v1960 = vadd.f32 0.0, %v1959
  %v1961 = vpop.f32.mrf.mxu0
  %v1962 = vadd.f32 0.0, %v1961
  %1963 = vdwg.mxu0
  %1964 = vmatprep.subr.mxu0 0.0
  %1965 = vmatpush1.msra.mxu0 0.0
  %1966 = vmatprep.subr.mxu0 0.0
  %1967 = vmatpush1.msra.mxu0 0.0
  %1968 = vmatprep.subr.mxu0 0.0
  %1969 = vmatpush1.msra.mxu0 0.0
  %1970 = vmatprep.subr.mxu0 0.0
  %1971 = vmatpush1.msra.mxu0 0.0
  %1972 = vmatprep.subr.mxu0 0.0
  %1973 = vmatpush1.msra.mxu0 0.0
  %1974 = vmatprep.subr.mxu0 0.0
  %1975 = vmatpush1.msra.mxu0 0.0
  %1976 = vmatprep.subr.mxu0 0.0
  %1977 = vmatpush1.msra.mxu0 0.0
  %1978 = vmatprep.subr.mxu0 0.0
  %1979 = vmatpush1.msra.mxu0 0.0
  %1980 = vmatprep.subr.mxu0 0.0
  %1981 = vmatpush1.msra.mxu0 0.0
  %1982 = vmatprep.subr.mxu0 0.0
  %1983 = vmatpush1.msra.mxu0 0.0
  %1984 = vmatprep.subr.mxu0 0.0
  %1985 = vmatpush1.msra.mxu0 0.0
  %1986 = vmatprep.subr.mxu0 0.0
  %1987 = vmatpush1.msra.mxu0 0.0
  %1988 = vmatprep.subr.mxu0 0.0
  %1989 = vmatpush1.msra.mxu0 0.0
  %1990 = vmatprep.subr.mxu0 0.0
  %1991 = vmatpush1.msra.mxu0 0.0
  %1992 = vmatprep.subr.mxu0 0.0
  %1993 = vmatpush1.msra.mxu0 0.0
  %1994 = vmatprep.subr.mxu0 0.0
  %1995 = vmatpush1.msra.mxu0 %v1820
  %1996 = vmatprep.subr.mxu0 0.0
  %1997 = vmatpush2.msra.mxu0 0.0
  %1998 = vmatprep.subr.mxu0 0.0
  %1999 = vmatpush2.msra.mxu0 0.0
  %2000 = vmatprep.subr.mxu0 0.0
  %2001 = vmatpush2.msra.mxu0 0.0
  %2002 = vmatprep.subr.mxu0 0.0
  %2003 = vmatpush2.msra.mxu0 0.0
  %2004 = vmatprep.subr.mxu0 0.0
  %2005 = vmatpush2.msra.mxu0 0.0
  %2006 = vmatprep.subr.mxu0 0.0
  %2007 = vmatpush2.msra.mxu0 0.0
  %2008 = vmatprep.subr.mxu0 0.0
  %2009 = vmatpush2.msra.mxu0 0.0
  %2010 = vmatprep.subr.mxu0 0.0
  %2011 = vmatpush2.msra.mxu0 0.0
  %2012 = vmatprep.subr.mxu0 0.0
  %2013 = vmatpush2.msra.mxu0 0.0
  %2014 = vmatprep.subr.mxu0 0.0
  %2015 = vmatpush2.msra.mxu0 0.0
  %2016 = vmatprep.subr.mxu0 0.0
  %2017 = vmatpush2.msra.mxu0 0.0
  %2018 = vmatprep.subr.mxu0 0.0
  %2019 = vmatpush2.msra.mxu0 0.0
  %2020 = vmatprep.subr.mxu0 0.0
  %2021 = vmatpush2.msra.mxu0 0.0
  %2022 = vmatprep.subr.mxu0 0.0
  %2023 = vmatpush2.msra.mxu0 0.0
  %2024 = vmatprep.subr.mxu0 0.0
  %2025 = vmatpush2.msra.mxu0 0.0
  %2026 = vmatprep.subr.mxu0 0.0
  %2027 = vmatpush2.msra.mxu0 0.0
  %2028 = vmatprep.mubr.f32.mxu0 0.0
  %2029 = vmatmul.mubr.f32.gmra.mxu0 %v1810
  %v2030 = vpop.f32.mrf.mxu0
  %v2031 = vadd.f32 0.0, %v2030
  %v2032 = vpop.f32.mrf.mxu0
  %2033 = vdwg.mxu0
  %v2034 = vadd.f32 %v1775, %v1889
  %v2035 = vadd.f32 %v1776, %v1891
  %v2036 = vadd.f32 %v1777, %v1960
  %v2037 = vadd.f32 %v1778, %v1962
  %v2038 = vadd.f32 %v1779, %v2031
  %v2039 = vld [vmem:[%s0] sm:$0xff]
  %v2040 = vld [vmem:[%s0 + $0x8] sm:$0xff]
  %v2041 = vld [vmem:[%s0 + $0x10] sm:$0xff]
  %s2042 = scalar_lea.vmem %s1, 32
  %v2043 = vld [vmem:[%s2042] sm:$0xf]
  %v2047 = vcombine.high %v2039, %v2039
  %v2048 = vcombine.high %v2040, %v2040
  %v2049 = vcombine.high %v2041, %v2041
  %2050 = vrot.lane.b32.xlu0 %v2039, 90
  %v2051 = vpop.permute.xlu0 %2050
  %2052 = vrot.lane.b32.xlu0 %v2047, 90
  %v2053 = vpop.permute.xlu0 %2052
  %2054 = vrot.lane.b32.xlu0 %v2040, 90
  %v2055 = vpop.permute.xlu0 %2054
  %2056 = vrot.lane.b32.xlu0 %v2048, 90
  %v2057 = vpop.permute.xlu0 %2056
  %2058 = vrot.lane.b32.xlu0 %v2041, 90
  %v2059 = vpop.permute.xlu0 %2058
  %2060 = vrot.lane.b32.xlu0 %v2049, 90
  %v2061 = vpop.permute.xlu0 %2060
  %vm2062 = vcmask 736256
  %v2063 = vsel %vm2062, %v2051, %v2053
  %v2064 = vsel %vm2062, %v2053, %v2055
  %v2065 = vsel %vm2062, %v2055, %v2057
  %v2066 = vsel %vm2062, %v2057, %v2059
  %v2067 = vsel %vm2062, %v2059, %v2061
  %v2069 = vsel %vm49, %v2043, 0
  %v2071 = vsel %vm53, %v2063, 0
  %v2073 = vsel %vm53, %v2064, 0
  %v2075 = vsel %vm53, %v2065, 0
  %v2077 = vsel %vm53, %v2066, 0
  %v2079 = vsel %vm53, %v2067, 0
  %2081 = vmatprep.subr.mxu0 0.0
  %2082 = vmatpush1.msra.mxu0 0.0
  %2083 = vmatprep.subr.mxu0 0.0
  %2084 = vmatpush1.msra.mxu0 0.0
  %2085 = vmatprep.subr.mxu0 0.0
  %2086 = vmatpush1.msra.mxu0 0.0
  %2087 = vmatprep.subr.mxu0 0.0
  %2088 = vmatpush1.msra.mxu0 0.0
  %2089 = vmatprep.subr.mxu0 0.0
  %2090 = vmatpush1.msra.mxu0 0.0
  %2091 = vmatprep.subr.mxu0 0.0
  %2092 = vmatpush1.msra.mxu0 0.0
  %2093 = vmatprep.subr.mxu0 0.0
  %2094 = vmatpush1.msra.mxu0 0.0
  %2095 = vmatprep.subr.mxu0 0.0
  %2096 = vmatpush1.msra.mxu0 0.0
  %2097 = vmatprep.subr.mxu0 0.0
  %2098 = vmatpush1.msra.mxu0 0.0
  %2099 = vmatprep.subr.mxu0 0.0
  %2100 = vmatpush1.msra.mxu0 0.0
  %2101 = vmatprep.subr.mxu0 0.0
  %2102 = vmatpush1.msra.mxu0 0.0
  %2103 = vmatprep.subr.mxu0 0.0
  %2104 = vmatpush1.msra.mxu0 0.0
  %2105 = vmatprep.subr.mxu0 0.0
  %2106 = vmatpush1.msra.mxu0 0.0
  %2107 = vmatprep.subr.mxu0 0.0
  %2108 = vmatpush1.msra.mxu0 0.0
  %2109 = vmatprep.subr.mxu0 0.0
  %2110 = vmatpush1.msra.mxu0 0.0
  %2111 = vmatprep.subr.mxu0 %v2073
  %2112 = vmatpush1.msra.mxu0 %v2071
  %2113 = vmatprep.subr.mxu0 0.0
  %2114 = vmatpush2.msra.mxu0 0.0
  %2115 = vmatprep.subr.mxu0 0.0
  %2116 = vmatpush2.msra.mxu0 0.0
  %2117 = vmatprep.subr.mxu0 0.0
  %2118 = vmatpush2.msra.mxu0 0.0
  %2119 = vmatprep.subr.mxu0 0.0
  %2120 = vmatpush2.msra.mxu0 0.0
  %2121 = vmatprep.subr.mxu0 0.0
  %2122 = vmatpush2.msra.mxu0 0.0
  %2123 = vmatprep.subr.mxu0 0.0
  %2124 = vmatpush2.msra.mxu0 0.0
  %2125 = vmatprep.subr.mxu0 0.0
  %2126 = vmatpush2.msra.mxu0 0.0
  %2127 = vmatprep.subr.mxu0 0.0
  %2128 = vmatpush2.msra.mxu0 0.0
  %2129 = vmatprep.subr.mxu0 0.0
  %2130 = vmatpush2.msra.mxu0 0.0
  %2131 = vmatprep.subr.mxu0 0.0
  %2132 = vmatpush2.msra.mxu0 0.0
  %2133 = vmatprep.subr.mxu0 0.0
  %2134 = vmatpush2.msra.mxu0 0.0
  %2135 = vmatprep.subr.mxu0 0.0
  %2136 = vmatpush2.msra.mxu0 0.0
  %2137 = vmatprep.subr.mxu0 0.0
  %2138 = vmatpush2.msra.mxu0 0.0
  %2139 = vmatprep.subr.mxu0 0.0
  %2140 = vmatpush2.msra.mxu0 0.0
  %2141 = vmatprep.subr.mxu0 0.0
  %2142 = vmatpush2.msra.mxu0 0.0
  %2143 = vmatprep.subr.mxu0 0.0
  %2144 = vmatpush2.msra.mxu0 0.0
  %2145 = vmatprep.mubr.f32.mxu0 0.0
  %2146 = vmatmul.mubr.f32.gmra.mxu0 %v2069
  %v2147 = vpop.f32.mrf.mxu0
  %v2148 = vadd.f32 0.0, %v2147
  %v2149 = vpop.f32.mrf.mxu0
  %v2150 = vadd.f32 0.0, %v2149
  %2151 = vdwg.mxu0
  %2152 = vmatprep.subr.mxu0 0.0
  %2153 = vmatpush1.msra.mxu0 0.0
  %2154 = vmatprep.subr.mxu0 0.0
  %2155 = vmatpush1.msra.mxu0 0.0
  %2156 = vmatprep.subr.mxu0 0.0
  %2157 = vmatpush1.msra.mxu0 0.0
  %2158 = vmatprep.subr.mxu0 0.0
  %2159 = vmatpush1.msra.mxu0 0.0
  %2160 = vmatprep.subr.mxu0 0.0
  %2161 = vmatpush1.msra.mxu0 0.0
  %2162 = vmatprep.subr.mxu0 0.0
  %2163 = vmatpush1.msra.mxu0 0.0
  %2164 = vmatprep.subr.mxu0 0.0
  %2165 = vmatpush1.msra.mxu0 0.0
  %2166 = vmatprep.subr.mxu0 0.0
  %2167 = vmatpush1.msra.mxu0 0.0
  %2168 = vmatprep.subr.mxu0 0.0
  %2169 = vmatpush1.msra.mxu0 0.0
  %2170 = vmatprep.subr.mxu0 0.0
  %2171 = vmatpush1.msra.mxu0 0.0
  %2172 = vmatprep.subr.mxu0 0.0
  %2173 = vmatpush1.msra.mxu0 0.0
  %2174 = vmatprep.subr.mxu0 0.0
  %2175 = vmatpush1.msra.mxu0 0.0
  %2176 = vmatprep.subr.mxu0 0.0
  %2177 = vmatpush1.msra.mxu0 0.0
  %2178 = vmatprep.subr.mxu0 0.0
  %2179 = vmatpush1.msra.mxu0 0.0
  %2180 = vmatprep.subr.mxu0 0.0
  %2181 = vmatpush1.msra.mxu0 0.0
  %2182 = vmatprep.subr.mxu0 %v2077
  %2183 = vmatpush1.msra.mxu0 %v2075
  %2184 = vmatprep.subr.mxu0 0.0
  %2185 = vmatpush2.msra.mxu0 0.0
  %2186 = vmatprep.subr.mxu0 0.0
  %2187 = vmatpush2.msra.mxu0 0.0
  %2188 = vmatprep.subr.mxu0 0.0
  %2189 = vmatpush2.msra.mxu0 0.0
  %2190 = vmatprep.subr.mxu0 0.0
  %2191 = vmatpush2.msra.mxu0 0.0
  %2192 = vmatprep.subr.mxu0 0.0
  %2193 = vmatpush2.msra.mxu0 0.0
  %2194 = vmatprep.subr.mxu0 0.0
  %2195 = vmatpush2.msra.mxu0 0.0
  %2196 = vmatprep.subr.mxu0 0.0
  %2197 = vmatpush2.msra.mxu0 0.0
  %2198 = vmatprep.subr.mxu0 0.0
  %2199 = vmatpush2.msra.mxu0 0.0
  %2200 = vmatprep.subr.mxu0 0.0
  %2201 = vmatpush2.msra.mxu0 0.0
  %2202 = vmatprep.subr.mxu0 0.0
  %2203 = vmatpush2.msra.mxu0 0.0
  %2204 = vmatprep.subr.mxu0 0.0
  %2205 = vmatpush2.msra.mxu0 0.0
  %2206 = vmatprep.subr.mxu0 0.0
  %2207 = vmatpush2.msra.mxu0 0.0
  %2208 = vmatprep.subr.mxu0 0.0
  %2209 = vmatpush2.msra.mxu0 0.0
  %2210 = vmatprep.subr.mxu0 0.0
  %2211 = vmatpush2.msra.mxu0 0.0
  %2212 = vmatprep.subr.mxu0 0.0
  %2213 = vmatpush2.msra.mxu0 0.0
  %2214 = vmatprep.subr.mxu0 0.0
  %2215 = vmatpush2.msra.mxu0 0.0
  %2216 = vmatprep.mubr.f32.mxu0 0.0
  %2217 = vmatmul.mubr.f32.gmra.mxu0 %v2069
  %v2218 = vpop.f32.mrf.mxu0
  %v2219 = vadd.f32 0.0, %v2218
  %v2220 = vpop.f32.mrf.mxu0
  %v2221 = vadd.f32 0.0, %v2220
  %2222 = vdwg.mxu0
  %2223 = vmatprep.subr.mxu0 0.0
  %2224 = vmatpush1.msra.mxu0 0.0
  %2225 = vmatprep.subr.mxu0 0.0
  %2226 = vmatpush1.msra.mxu0 0.0
  %2227 = vmatprep.subr.mxu0 0.0
  %2228 = vmatpush1.msra.mxu0 0.0
  %2229 = vmatprep.subr.mxu0 0.0
  %2230 = vmatpush1.msra.mxu0 0.0
  %2231 = vmatprep.subr.mxu0 0.0
  %2232 = vmatpush1.msra.mxu0 0.0
  %2233 = vmatprep.subr.mxu0 0.0
  %2234 = vmatpush1.msra.mxu0 0.0
  %2235 = vmatprep.subr.mxu0 0.0
  %2236 = vmatpush1.msra.mxu0 0.0
  %2237 = vmatprep.subr.mxu0 0.0
  %2238 = vmatpush1.msra.mxu0 0.0
  %2239 = vmatprep.subr.mxu0 0.0
  %2240 = vmatpush1.msra.mxu0 0.0
  %2241 = vmatprep.subr.mxu0 0.0
  %2242 = vmatpush1.msra.mxu0 0.0
  %2243 = vmatprep.subr.mxu0 0.0
  %2244 = vmatpush1.msra.mxu0 0.0
  %2245 = vmatprep.subr.mxu0 0.0
  %2246 = vmatpush1.msra.mxu0 0.0
  %2247 = vmatprep.subr.mxu0 0.0
  %2248 = vmatpush1.msra.mxu0 0.0
  %2249 = vmatprep.subr.mxu0 0.0
  %2250 = vmatpush1.msra.mxu0 0.0
  %2251 = vmatprep.subr.mxu0 0.0
  %2252 = vmatpush1.msra.mxu0 0.0
  %2253 = vmatprep.subr.mxu0 0.0
  %2254 = vmatpush1.msra.mxu0 %v2079
  %2255 = vmatprep.subr.mxu0 0.0
  %2256 = vmatpush2.msra.mxu0 0.0
  %2257 = vmatprep.subr.mxu0 0.0
  %2258 = vmatpush2.msra.mxu0 0.0
  %2259 = vmatprep.subr.mxu0 0.0
  %2260 = vmatpush2.msra.mxu0 0.0
  %2261 = vmatprep.subr.mxu0 0.0
  %2262 = vmatpush2.msra.mxu0 0.0
  %2263 = vmatprep.subr.mxu0 0.0
  %2264 = vmatpush2.msra.mxu0 0.0
  %2265 = vmatprep.subr.mxu0 0.0
  %2266 = vmatpush2.msra.mxu0 0.0
  %2267 = vmatprep.subr.mxu0 0.0
  %2268 = vmatpush2.msra.mxu0 0.0
  %2269 = vmatprep.subr.mxu0 0.0
  %2270 = vmatpush2.msra.mxu0 0.0
  %2271 = vmatprep.subr.mxu0 0.0
  %2272 = vmatpush2.msra.mxu0 0.0
  %2273 = vmatprep.subr.mxu0 0.0
  %2274 = vmatpush2.msra.mxu0 0.0
  %2275 = vmatprep.subr.mxu0 0.0
  %2276 = vmatpush2.msra.mxu0 0.0
  %2277 = vmatprep.subr.mxu0 0.0
  %2278 = vmatpush2.msra.mxu0 0.0
  %2279 = vmatprep.subr.mxu0 0.0
  %2280 = vmatpush2.msra.mxu0 0.0
  %2281 = vmatprep.subr.mxu0 0.0
  %2282 = vmatpush2.msra.mxu0 0.0
  %2283 = vmatprep.subr.mxu0 0.0
  %2284 = vmatpush2.msra.mxu0 0.0
  %2285 = vmatprep.subr.mxu0 0.0
  %2286 = vmatpush2.msra.mxu0 0.0
  %2287 = vmatprep.mubr.f32.mxu0 0.0
  %2288 = vmatmul.mubr.f32.gmra.mxu0 %v2069
  %v2289 = vpop.f32.mrf.mxu0
  %v2290 = vadd.f32 0.0, %v2289
  %v2291 = vpop.f32.mrf.mxu0
  %2292 = vdwg.mxu0
  %v2293 = vadd.f32 %v2034, %v2148
  %v2294 = vadd.f32 %v2035, %v2150
  %v2295 = vadd.f32 %v2036, %v2219
  %v2296 = vadd.f32 %v2037, %v2221
  %v2297 = vadd.f32 %v2038, %v2290
  %v2298 = vld [vmem:[%s3] sm:$0xff]
  %v2299 = vld [vmem:[%s3 + $0x8] sm:$0xff]
  %v2300 = vld [vmem:[%s3 + $0x10] sm:$0xf]
  %v2303 = vcombine.high %v2298, %v2298
  %v2304 = vcombine.high %v2299, %v2299
  %v2307 = vadd.f32 %v2293, %v2298
  %v2308 = vadd.f32 %v2294, %v2303
  %v2309 = vadd.f32 %v2295, %v2299
  %v2310 = vadd.f32 %v2296, %v2304
  %v2311 = vadd.f32 %v2297, %v2300
  %v2312 = vxor.u32 %v2307, 2147483648
  %v2313 = vxor.u32 %v2308, 2147483648
  %v2314 = vxor.u32 %v2309, 2147483648
  %v2315 = vxor.u32 %v2310, 2147483648
  %v2316 = vxor.u32 %v2311, 2147483648
  %v2317 = vmul.f32 %v2312, 1.442695
  %v2318 = vpow.pop %v2317
  %v2319 = vmul.f32 %v2313, 1.442695
  %v2320 = vpow.pop %v2319
  %v2321 = vmul.f32 %v2314, 1.442695
  %v2322 = vpow.pop %v2321
  %v2323 = vmul.f32 %v2315, 1.442695
  %v2324 = vpow.pop %v2323
  %v2325 = vmul.f32 %v2316, 1.442695
  %v2326 = vpow.pop %v2325
  %v2327 = vadd.f32 %v2318, 1.0
  %v2328 = vadd.f32 %v2320, 1.0
  %v2329 = vadd.f32 %v2322, 1.0
  %v2330 = vadd.f32 %v2324, 1.0
  %v2331 = vadd.f32 %v2326, 1.0
  %v2332 = vrcp.pop %v2327
  %v2333 = vmul.f32 1.0, %v2332
  %v2334 = vrcp.pop %v2328
  %v2335 = vmul.f32 1.0, %v2334
  %v2336 = vrcp.pop %v2329
  %v2337 = vmul.f32 1.0, %v2336
  %v2338 = vrcp.pop %v2330
  %v2339 = vmul.f32 1.0, %v2338
  %v2340 = vrcp.pop %v2331
  %v2341 = vmul.f32 1.0, %v2340
  %v2342 = vmul.f32 %v2307, %v2333
  %v2343 = vmul.f32 %v2308, %v2335
  %v2344 = vmul.f32 %v2309, %v2337
  %v2345 = vmul.f32 %v2310, %v2339
  %v2346 = vmul.f32 %v2311, %v2341
  %v2347 = vld [vmem:[%s5] sm:$0x1f]
  %v2349 = vlaneseq
  %v2350 = vshrl.u32 %v2349, 7
  %v2351 = vsub.s32 0, %v2350
  %v2352 = vrot.slane %v2347, %v2351
  %v2353 = vlaneseq
  %v2354 = vshrl.u32 %v2353, 7
  %v2355 = vsub.s32 1, %v2354
  %v2356 = vrot.slane %v2347, %v2355
  %v2357 = vlaneseq
  %v2358 = vshrl.u32 %v2357, 7
  %v2359 = vsub.s32 2, %v2358
  %v2360 = vrot.slane %v2347, %v2359
  %v2361 = vlaneseq
  %v2362 = vshrl.u32 %v2361, 7
  %v2363 = vsub.s32 3, %v2362
  %v2364 = vrot.slane %v2347, %v2363
  %v2365 = vlaneseq
  %v2366 = vshrl.u32 %v2365, 7
  %v2367 = vsub.s32 4, %v2366
  %v2368 = vrot.slane %v2347, %v2367
  %v2374 = vmul.f32 %v2342, %v2352
  %v2375 = vmul.f32 %v2343, %v2356
  %v2376 = vmul.f32 %v2344, %v2360
  %v2377 = vmul.f32 %v2345, %v2364
  %v2378 = vmul.f32 %v2346, %v2368
  %vm2379 = vcmask 150528
  %2380 = vst.msk [vmem:[#allocation2] sm:$0xf] %vm2379, 0.0
  %vm2381 = vcmask 1044392
  %vm2382 = vcmask 64516
  %vm2383 = vmor %vm2382, %vm2381
  %2384 = vst.msk [vmem:[#allocation2 + $0x10] sm:$0xff] %vm2383, 0.0
  %v2390 = vcombine.low %v2374, %v2375
  %v2391 = vcombine.low %v2376, %v2377
  %2392 = vrot.lane.b32.xlu0 %v2390, 19
  %v2393 = vpop.permute.xlu0 %2392
  %2394 = vrot.lane.b32.xlu0 %v2391, 19
  %v2395 = vpop.permute.xlu0 %2394
  %2396 = vrot.lane.b32.xlu0 %v2378, 19
  %v2397 = vpop.permute.xlu0 %2396
  %v2398 = vrot.slane %v2393, 4
  %v2399 = vrot.slane %v2395, 4
  %vm2400 = vcmask 154624
  %v2401 = vsel %vm2400, %v2398, %v2393
  %v2402 = vsel %vm53, %v2398, %v2399
  %v2403 = vsel %vm2400, %v2402, %v2395
  %v2404 = vsel %vm2400, %v2399, %v2397
  %vm2408 = vcmask 1043608
  %vm2409 = vcmask 1047556
  %vm2410 = vmor %vm2409, %vm2408
  %2411 = vst.msk [vmem:[#allocation2] sm:$0xff] %vm2410, %v2401
  %2412 = vst [vmem:[#allocation2 + $0x8] sm:$0xff] %v2403
  %vm2413 = vcmask 953344
  %2414 = vst.msk [vmem:[#allocation2 + $0x10] sm:$0xf] %vm2413, %v2404
  %v2415 = vld [vmem:[#allocation2] sm:$0xff]
  %v2416 = vld [vmem:[#allocation2 + $0x8] sm:$0xff]
  %v2417 = vld [vmem:[#allocation2 + $0x10] sm:$0xf]
  %v2418 = vld [vmem:[%s2] sm:$0xf]
  %s2419 = scalar_lea.vmem %s2, 4
  %v2420 = vld [vmem:[%s2419] sm:$0xf]
  %v2424 = vcombine.high %v2415, %v2415
  %v2425 = vcombine.high %v2416, %v2416
  %2426 = vrot.lane.b32.xlu0 %v2415, 127
  %v2427 = vpop.permute.xlu0 %2426
  %2428 = vrot.lane.b32.xlu0 %v2424, 127
  %v2429 = vpop.permute.xlu0 %2428
  %2430 = vrot.lane.b32.xlu0 %v2416, 127
  %v2431 = vpop.permute.xlu0 %2430
  %2432 = vrot.lane.b32.xlu0 %v2425, 127
  %v2433 = vpop.permute.xlu0 %2432
  %2434 = vrot.lane.b32.xlu0 %v2417, 127
  %v2435 = vpop.permute.xlu0 %2434
  %v2436 = vsel %vm44, %v2427, %v2429
  %v2437 = vsel %vm44, %v2429, %v2431
  %v2438 = vsel %vm44, %v2431, %v2433
  %v2439 = vsel %vm44, %v2433, %v2435
  %v2441 = vsel %vm49, %v2420, 0
  %v2443 = vsel %vm53, %v2436, 0
  %v2445 = vsel %vm53, %v2437, 0
  %v2447 = vsel %vm53, %v2438, 0
  %v2449 = vsel %vm53, %v2439, 0
  %v2451 = vsel %vm53, %v2435, 0
  %2453 = vmatprep.subr.mxu0 0.0
  %2454 = vmatpush1.msra.mxu0 0.0
  %2455 = vmatprep.subr.mxu0 0.0
  %2456 = vmatpush1.msra.mxu0 0.0
  %2457 = vmatprep.subr.mxu0 0.0
  %2458 = vmatpush1.msra.mxu0 0.0
  %2459 = vmatprep.subr.mxu0 0.0
  %2460 = vmatpush1.msra.mxu0 0.0
  %2461 = vmatprep.subr.mxu0 0.0
  %2462 = vmatpush1.msra.mxu0 0.0
  %2463 = vmatprep.subr.mxu0 0.0
  %2464 = vmatpush1.msra.mxu0 0.0
  %2465 = vmatprep.subr.mxu0 0.0
  %2466 = vmatpush1.msra.mxu0 0.0
  %2467 = vmatprep.subr.mxu0 0.0
  %2468 = vmatpush1.msra.mxu0 0.0
  %2469 = vmatprep.subr.mxu0 0.0
  %2470 = vmatpush1.msra.mxu0 0.0
  %2471 = vmatprep.subr.mxu0 0.0
  %2472 = vmatpush1.msra.mxu0 0.0
  %2473 = vmatprep.subr.mxu0 0.0
  %2474 = vmatpush1.msra.mxu0 0.0
  %2475 = vmatprep.subr.mxu0 0.0
  %2476 = vmatpush1.msra.mxu0 0.0
  %2477 = vmatprep.subr.mxu0 0.0
  %2478 = vmatpush1.msra.mxu0 0.0
  %2479 = vmatprep.subr.mxu0 0.0
  %2480 = vmatpush1.msra.mxu0 0.0
  %2481 = vmatprep.subr.mxu0 0.0
  %2482 = vmatpush1.msra.mxu0 0.0
  %2483 = vmatprep.subr.mxu0 %v2445
  %2484 = vmatpush1.msra.mxu0 %v2443
  %2485 = vmatprep.subr.mxu0 0.0
  %2486 = vmatpush2.msra.mxu0 0.0
  %2487 = vmatprep.subr.mxu0 0.0
  %2488 = vmatpush2.msra.mxu0 0.0
  %2489 = vmatprep.subr.mxu0 0.0
  %2490 = vmatpush2.msra.mxu0 0.0
  %2491 = vmatprep.subr.mxu0 0.0
  %2492 = vmatpush2.msra.mxu0 0.0
  %2493 = vmatprep.subr.mxu0 0.0
  %2494 = vmatpush2.msra.mxu0 0.0
  %2495 = vmatprep.subr.mxu0 0.0
  %2496 = vmatpush2.msra.mxu0 0.0
  %2497 = vmatprep.subr.mxu0 0.0
  %2498 = vmatpush2.msra.mxu0 0.0
  %2499 = vmatprep.subr.mxu0 0.0
  %2500 = vmatpush2.msra.mxu0 0.0
  %2501 = vmatprep.subr.mxu0 0.0
  %2502 = vmatpush2.msra.mxu0 0.0
  %2503 = vmatprep.subr.mxu0 0.0
  %2504 = vmatpush2.msra.mxu0 0.0
  %2505 = vmatprep.subr.mxu0 0.0
  %2506 = vmatpush2.msra.mxu0 0.0
  %2507 = vmatprep.subr.mxu0 0.0
  %2508 = vmatpush2.msra.mxu0 0.0
  %2509 = vmatprep.subr.mxu0 0.0
  %2510 = vmatpush2.msra.mxu0 0.0
  %2511 = vmatprep.subr.mxu0 0.0
  %2512 = vmatpush2.msra.mxu0 0.0
  %2513 = vmatprep.subr.mxu0 0.0
  %2514 = vmatpush2.msra.mxu0 0.0
  %2515 = vmatprep.subr.mxu0 0.0
  %2516 = vmatpush2.msra.mxu0 0.0
  %2517 = vmatprep.mubr.f32.mxu0 0.0
  %2518 = vmatmul.mubr.f32.gmra.mxu0 %v2441
  %v2519 = vpop.f32.mrf.mxu0
  %v2520 = vadd.f32 0.0, %v2519
  %v2521 = vpop.f32.mrf.mxu0
  %v2522 = vadd.f32 0.0, %v2521
  %2523 = vdwg.mxu0
  %2524 = vmatprep.subr.mxu0 0.0
  %2525 = vmatpush1.msra.mxu0 0.0
  %2526 = vmatprep.subr.mxu0 0.0
  %2527 = vmatpush1.msra.mxu0 0.0
  %2528 = vmatprep.subr.mxu0 0.0
  %2529 = vmatpush1.msra.mxu0 0.0
  %2530 = vmatprep.subr.mxu0 0.0
  %2531 = vmatpush1.msra.mxu0 0.0
  %2532 = vmatprep.subr.mxu0 0.0
  %2533 = vmatpush1.msra.mxu0 0.0
  %2534 = vmatprep.subr.mxu0 0.0
  %2535 = vmatpush1.msra.mxu0 0.0
  %2536 = vmatprep.subr.mxu0 0.0
  %2537 = vmatpush1.msra.mxu0 0.0
  %2538 = vmatprep.subr.mxu0 0.0
  %2539 = vmatpush1.msra.mxu0 0.0
  %2540 = vmatprep.subr.mxu0 0.0
  %2541 = vmatpush1.msra.mxu0 0.0
  %2542 = vmatprep.subr.mxu0 0.0
  %2543 = vmatpush1.msra.mxu0 0.0
  %2544 = vmatprep.subr.mxu0 0.0
  %2545 = vmatpush1.msra.mxu0 0.0
  %2546 = vmatprep.subr.mxu0 0.0
  %2547 = vmatpush1.msra.mxu0 0.0
  %2548 = vmatprep.subr.mxu0 0.0
  %2549 = vmatpush1.msra.mxu0 0.0
  %2550 = vmatprep.subr.mxu0 0.0
  %2551 = vmatpush1.msra.mxu0 0.0
  %2552 = vmatprep.subr.mxu0 0.0
  %2553 = vmatpush1.msra.mxu0 0.0
  %2554 = vmatprep.subr.mxu0 %v2449
  %2555 = vmatpush1.msra.mxu0 %v2447
  %2556 = vmatprep.subr.mxu0 0.0
  %2557 = vmatpush2.msra.mxu0 0.0
  %2558 = vmatprep.subr.mxu0 0.0
  %2559 = vmatpush2.msra.mxu0 0.0
  %2560 = vmatprep.subr.mxu0 0.0
  %2561 = vmatpush2.msra.mxu0 0.0
  %2562 = vmatprep.subr.mxu0 0.0
  %2563 = vmatpush2.msra.mxu0 0.0
  %2564 = vmatprep.subr.mxu0 0.0
  %2565 = vmatpush2.msra.mxu0 0.0
  %2566 = vmatprep.subr.mxu0 0.0
  %2567 = vmatpush2.msra.mxu0 0.0
  %2568 = vmatprep.subr.mxu0 0.0
  %2569 = vmatpush2.msra.mxu0 0.0
  %2570 = vmatprep.subr.mxu0 0.0
  %2571 = vmatpush2.msra.mxu0 0.0
  %2572 = vmatprep.subr.mxu0 0.0
  %2573 = vmatpush2.msra.mxu0 0.0
  %2574 = vmatprep.subr.mxu0 0.0
  %2575 = vmatpush2.msra.mxu0 0.0
  %2576 = vmatprep.subr.mxu0 0.0
  %2577 = vmatpush2.msra.mxu0 0.0
  %2578 = vmatprep.subr.mxu0 0.0
  %2579 = vmatpush2.msra.mxu0 0.0
  %2580 = vmatprep.subr.mxu0 0.0
  %2581 = vmatpush2.msra.mxu0 0.0
  %2582 = vmatprep.subr.mxu0 0.0
  %2583 = vmatpush2.msra.mxu0 0.0
  %2584 = vmatprep.subr.mxu0 0.0
  %2585 = vmatpush2.msra.mxu0 0.0
  %2586 = vmatprep.subr.mxu0 0.0
  %2587 = vmatpush2.msra.mxu0 0.0
  %2588 = vmatprep.mubr.f32.mxu0 0.0
  %2589 = vmatmul.mubr.f32.gmra.mxu0 %v2441
  %v2590 = vpop.f32.mrf.mxu0
  %v2591 = vadd.f32 0.0, %v2590
  %v2592 = vpop.f32.mrf.mxu0
  %v2593 = vadd.f32 0.0, %v2592
  %2594 = vdwg.mxu0
  %2595 = vmatprep.subr.mxu0 0.0
  %2596 = vmatpush1.msra.mxu0 0.0
  %2597 = vmatprep.subr.mxu0 0.0
  %2598 = vmatpush1.msra.mxu0 0.0
  %2599 = vmatprep.subr.mxu0 0.0
  %2600 = vmatpush1.msra.mxu0 0.0
  %2601 = vmatprep.subr.mxu0 0.0
  %2602 = vmatpush1.msra.mxu0 0.0
  %2603 = vmatprep.subr.mxu0 0.0
  %2604 = vmatpush1.msra.mxu0 0.0
  %2605 = vmatprep.subr.mxu0 0.0
  %2606 = vmatpush1.msra.mxu0 0.0
  %2607 = vmatprep.subr.mxu0 0.0
  %2608 = vmatpush1.msra.mxu0 0.0
  %2609 = vmatprep.subr.mxu0 0.0
  %2610 = vmatpush1.msra.mxu0 0.0
  %2611 = vmatprep.subr.mxu0 0.0
  %2612 = vmatpush1.msra.mxu0 0.0
  %2613 = vmatprep.subr.mxu0 0.0
  %2614 = vmatpush1.msra.mxu0 0.0
  %2615 = vmatprep.subr.mxu0 0.0
  %2616 = vmatpush1.msra.mxu0 0.0
  %2617 = vmatprep.subr.mxu0 0.0
  %2618 = vmatpush1.msra.mxu0 0.0
  %2619 = vmatprep.subr.mxu0 0.0
  %2620 = vmatpush1.msra.mxu0 0.0
  %2621 = vmatprep.subr.mxu0 0.0
  %2622 = vmatpush1.msra.mxu0 0.0
  %2623 = vmatprep.subr.mxu0 0.0
  %2624 = vmatpush1.msra.mxu0 0.0
  %2625 = vmatprep.subr.mxu0 0.0
  %2626 = vmatpush1.msra.mxu0 %v2451
  %2627 = vmatprep.subr.mxu0 0.0
  %2628 = vmatpush2.msra.mxu0 0.0
  %2629 = vmatprep.subr.mxu0 0.0
  %2630 = vmatpush2.msra.mxu0 0.0
  %2631 = vmatprep.subr.mxu0 0.0
  %2632 = vmatpush2.msra.mxu0 0.0
  %2633 = vmatprep.subr.mxu0 0.0
  %2634 = vmatpush2.msra.mxu0 0.0
  %2635 = vmatprep.subr.mxu0 0.0
  %2636 = vmatpush2.msra.mxu0 0.0
  %2637 = vmatprep.subr.mxu0 0.0
  %2638 = vmatpush2.msra.mxu0 0.0
  %2639 = vmatprep.subr.mxu0 0.0
  %2640 = vmatpush2.msra.mxu0 0.0
  %2641 = vmatprep.subr.mxu0 0.0
  %2642 = vmatpush2.msra.mxu0 0.0
  %2643 = vmatprep.subr.mxu0 0.0
  %2644 = vmatpush2.msra.mxu0 0.0
  %2645 = vmatprep.subr.mxu0 0.0
  %2646 = vmatpush2.msra.mxu0 0.0
  %2647 = vmatprep.subr.mxu0 0.0
  %2648 = vmatpush2.msra.mxu0 0.0
  %2649 = vmatprep.subr.mxu0 0.0
  %2650 = vmatpush2.msra.mxu0 0.0
  %2651 = vmatprep.subr.mxu0 0.0
  %2652 = vmatpush2.msra.mxu0 0.0
  %2653 = vmatprep.subr.mxu0 0.0
  %2654 = vmatpush2.msra.mxu0 0.0
  %2655 = vmatprep.subr.mxu0 0.0
  %2656 = vmatpush2.msra.mxu0 0.0
  %2657 = vmatprep.subr.mxu0 0.0
  %2658 = vmatpush2.msra.mxu0 0.0
  %2659 = vmatprep.mubr.f32.mxu0 0.0
  %2660 = vmatmul.mubr.f32.gmra.mxu0 %v2441
  %v2661 = vpop.f32.mrf.mxu0
  %v2662 = vadd.f32 0.0, %v2661
  %v2663 = vpop.f32.mrf.mxu0
  %2664 = vdwg.mxu0
  %v2666 = vsel %vm49, %v2418, 0
  %v2668 = vsel %vm53, %v2415, 0
  %v2670 = vsel %vm53, %v2424, 0
  %v2672 = vsel %vm53, %v2416, 0
  %v2674 = vsel %vm53, %v2425, 0
  %v2676 = vsel %vm53, %v2417, 0
  %2678 = vmatprep.subr.mxu0 0.0
  %2679 = vmatpush1.msra.mxu0 0.0
  %2680 = vmatprep.subr.mxu0 0.0
  %2681 = vmatpush1.msra.mxu0 0.0
  %2682 = vmatprep.subr.mxu0 0.0
  %2683 = vmatpush1.msra.mxu0 0.0
  %2684 = vmatprep.subr.mxu0 0.0
  %2685 = vmatpush1.msra.mxu0 0.0
  %2686 = vmatprep.subr.mxu0 0.0
  %2687 = vmatpush1.msra.mxu0 0.0
  %2688 = vmatprep.subr.mxu0 0.0
  %2689 = vmatpush1.msra.mxu0 0.0
  %2690 = vmatprep.subr.mxu0 0.0
  %2691 = vmatpush1.msra.mxu0 0.0
  %2692 = vmatprep.subr.mxu0 0.0
  %2693 = vmatpush1.msra.mxu0 0.0
  %2694 = vmatprep.subr.mxu0 0.0
  %2695 = vmatpush1.msra.mxu0 0.0
  %2696 = vmatprep.subr.mxu0 0.0
  %2697 = vmatpush1.msra.mxu0 0.0
  %2698 = vmatprep.subr.mxu0 0.0
  %2699 = vmatpush1.msra.mxu0 0.0
  %2700 = vmatprep.subr.mxu0 0.0
  %2701 = vmatpush1.msra.mxu0 0.0
  %2702 = vmatprep.subr.mxu0 0.0
  %2703 = vmatpush1.msra.mxu0 0.0
  %2704 = vmatprep.subr.mxu0 0.0
  %2705 = vmatpush1.msra.mxu0 0.0
  %2706 = vmatprep.subr.mxu0 0.0
  %2707 = vmatpush1.msra.mxu0 0.0
  %2708 = vmatprep.subr.mxu0 %v2670
  %2709 = vmatpush1.msra.mxu0 %v2668
  %2710 = vmatprep.subr.mxu0 0.0
  %2711 = vmatpush2.msra.mxu0 0.0
  %2712 = vmatprep.subr.mxu0 0.0
  %2713 = vmatpush2.msra.mxu0 0.0
  %2714 = vmatprep.subr.mxu0 0.0
  %2715 = vmatpush2.msra.mxu0 0.0
  %2716 = vmatprep.subr.mxu0 0.0
  %2717 = vmatpush2.msra.mxu0 0.0
  %2718 = vmatprep.subr.mxu0 0.0
  %2719 = vmatpush2.msra.mxu0 0.0
  %2720 = vmatprep.subr.mxu0 0.0
  %2721 = vmatpush2.msra.mxu0 0.0
  %2722 = vmatprep.subr.mxu0 0.0
  %2723 = vmatpush2.msra.mxu0 0.0
  %2724 = vmatprep.subr.mxu0 0.0
  %2725 = vmatpush2.msra.mxu0 0.0
  %2726 = vmatprep.subr.mxu0 0.0
  %2727 = vmatpush2.msra.mxu0 0.0
  %2728 = vmatprep.subr.mxu0 0.0
  %2729 = vmatpush2.msra.mxu0 0.0
  %2730 = vmatprep.subr.mxu0 0.0
  %2731 = vmatpush2.msra.mxu0 0.0
  %2732 = vmatprep.subr.mxu0 0.0
  %2733 = vmatpush2.msra.mxu0 0.0
  %2734 = vmatprep.subr.mxu0 0.0
  %2735 = vmatpush2.msra.mxu0 0.0
  %2736 = vmatprep.subr.mxu0 0.0
  %2737 = vmatpush2.msra.mxu0 0.0
  %2738 = vmatprep.subr.mxu0 0.0
  %2739 = vmatpush2.msra.mxu0 0.0
  %2740 = vmatprep.subr.mxu0 0.0
  %2741 = vmatpush2.msra.mxu0 0.0
  %2742 = vmatprep.mubr.f32.mxu0 0.0
  %2743 = vmatmul.mubr.f32.gmra.mxu0 %v2666
  %v2744 = vpop.f32.mrf.mxu0
  %v2745 = vadd.f32 %v2520, %v2744
  %v2746 = vpop.f32.mrf.mxu0
  %v2747 = vadd.f32 %v2522, %v2746
  %2748 = vdwg.mxu0
  %2749 = vmatprep.subr.mxu0 0.0
  %2750 = vmatpush1.msra.mxu0 0.0
  %2751 = vmatprep.subr.mxu0 0.0
  %2752 = vmatpush1.msra.mxu0 0.0
  %2753 = vmatprep.subr.mxu0 0.0
  %2754 = vmatpush1.msra.mxu0 0.0
  %2755 = vmatprep.subr.mxu0 0.0
  %2756 = vmatpush1.msra.mxu0 0.0
  %2757 = vmatprep.subr.mxu0 0.0
  %2758 = vmatpush1.msra.mxu0 0.0
  %2759 = vmatprep.subr.mxu0 0.0
  %2760 = vmatpush1.msra.mxu0 0.0
  %2761 = vmatprep.subr.mxu0 0.0
  %2762 = vmatpush1.msra.mxu0 0.0
  %2763 = vmatprep.subr.mxu0 0.0
  %2764 = vmatpush1.msra.mxu0 0.0
  %2765 = vmatprep.subr.mxu0 0.0
  %2766 = vmatpush1.msra.mxu0 0.0
  %2767 = vmatprep.subr.mxu0 0.0
  %2768 = vmatpush1.msra.mxu0 0.0
  %2769 = vmatprep.subr.mxu0 0.0
  %2770 = vmatpush1.msra.mxu0 0.0
  %2771 = vmatprep.subr.mxu0 0.0
  %2772 = vmatpush1.msra.mxu0 0.0
  %2773 = vmatprep.subr.mxu0 0.0
  %2774 = vmatpush1.msra.mxu0 0.0
  %2775 = vmatprep.subr.mxu0 0.0
  %2776 = vmatpush1.msra.mxu0 0.0
  %2777 = vmatprep.subr.mxu0 0.0
  %2778 = vmatpush1.msra.mxu0 0.0
  %2779 = vmatprep.subr.mxu0 %v2674
  %2780 = vmatpush1.msra.mxu0 %v2672
  %2781 = vmatprep.subr.mxu0 0.0
  %2782 = vmatpush2.msra.mxu0 0.0
  %2783 = vmatprep.subr.mxu0 0.0
  %2784 = vmatpush2.msra.mxu0 0.0
  %2785 = vmatprep.subr.mxu0 0.0
  %2786 = vmatpush2.msra.mxu0 0.0
  %2787 = vmatprep.subr.mxu0 0.0
  %2788 = vmatpush2.msra.mxu0 0.0
  %2789 = vmatprep.subr.mxu0 0.0
  %2790 = vmatpush2.msra.mxu0 0.0
  %2791 = vmatprep.subr.mxu0 0.0
  %2792 = vmatpush2.msra.mxu0 0.0
  %2793 = vmatprep.subr.mxu0 0.0
  %2794 = vmatpush2.msra.mxu0 0.0
  %2795 = vmatprep.subr.mxu0 0.0
  %2796 = vmatpush2.msra.mxu0 0.0
  %2797 = vmatprep.subr.mxu0 0.0
  %2798 = vmatpush2.msra.mxu0 0.0
  %2799 = vmatprep.subr.mxu0 0.0
  %2800 = vmatpush2.msra.mxu0 0.0
  %2801 = vmatprep.subr.mxu0 0.0
  %2802 = vmatpush2.msra.mxu0 0.0
  %2803 = vmatprep.subr.mxu0 0.0
  %2804 = vmatpush2.msra.mxu0 0.0
  %2805 = vmatprep.subr.mxu0 0.0
  %2806 = vmatpush2.msra.mxu0 0.0
  %2807 = vmatprep.subr.mxu0 0.0
  %2808 = vmatpush2.msra.mxu0 0.0
  %2809 = vmatprep.subr.mxu0 0.0
  %2810 = vmatpush2.msra.mxu0 0.0
  %2811 = vmatprep.subr.mxu0 0.0
  %2812 = vmatpush2.msra.mxu0 0.0
  %2813 = vmatprep.mubr.f32.mxu0 0.0
  %2814 = vmatmul.mubr.f32.gmra.mxu0 %v2666
  %v2815 = vpop.f32.mrf.mxu0
  %v2816 = vadd.f32 %v2591, %v2815
  %v2817 = vpop.f32.mrf.mxu0
  %v2818 = vadd.f32 %v2593, %v2817
  %2819 = vdwg.mxu0
  %2820 = vmatprep.subr.mxu0 0.0
  %2821 = vmatpush1.msra.mxu0 0.0
  %2822 = vmatprep.subr.mxu0 0.0
  %2823 = vmatpush1.msra.mxu0 0.0
  %2824 = vmatprep.subr.mxu0 0.0
  %2825 = vmatpush1.msra.mxu0 0.0
  %2826 = vmatprep.subr.mxu0 0.0
  %2827 = vmatpush1.msra.mxu0 0.0
  %2828 = vmatprep.subr.mxu0 0.0
  %2829 = vmatpush1.msra.mxu0 0.0
  %2830 = vmatprep.subr.mxu0 0.0
  %2831 = vmatpush1.msra.mxu0 0.0
  %2832 = vmatprep.subr.mxu0 0.0
  %2833 = vmatpush1.msra.mxu0 0.0
  %2834 = vmatprep.subr.mxu0 0.0
  %2835 = vmatpush1.msra.mxu0 0.0
  %2836 = vmatprep.subr.mxu0 0.0
  %2837 = vmatpush1.msra.mxu0 0.0
  %2838 = vmatprep.subr.mxu0 0.0
  %2839 = vmatpush1.msra.mxu0 0.0
  %2840 = vmatprep.subr.mxu0 0.0
  %2841 = vmatpush1.msra.mxu0 0.0
  %2842 = vmatprep.subr.mxu0 0.0
  %2843 = vmatpush1.msra.mxu0 0.0
  %2844 = vmatprep.subr.mxu0 0.0
  %2845 = vmatpush1.msra.mxu0 0.0
  %2846 = vmatprep.subr.mxu0 0.0
  %2847 = vmatpush1.msra.mxu0 0.0
  %2848 = vmatprep.subr.mxu0 0.0
  %2849 = vmatpush1.msra.mxu0 0.0
  %2850 = vmatprep.subr.mxu0 0.0
  %2851 = vmatpush1.msra.mxu0 %v2676
  %2852 = vmatprep.subr.mxu0 0.0
  %2853 = vmatpush2.msra.mxu0 0.0
  %2854 = vmatprep.subr.mxu0 0.0
  %2855 = vmatpush2.msra.mxu0 0.0
  %2856 = vmatprep.subr.mxu0 0.0
  %2857 = vmatpush2.msra.mxu0 0.0
  %2858 = vmatprep.subr.mxu0 0.0
  %2859 = vmatpush2.msra.mxu0 0.0
  %2860 = vmatprep.subr.mxu0 0.0
  %2861 = vmatpush2.msra.mxu0 0.0
  %2862 = vmatprep.subr.mxu0 0.0
  %2863 = vmatpush2.msra.mxu0 0.0
  %2864 = vmatprep.subr.mxu0 0.0
  %2865 = vmatpush2.msra.mxu0 0.0
  %2866 = vmatprep.subr.mxu0 0.0
  %2867 = vmatpush2.msra.mxu0 0.0
  %2868 = vmatprep.subr.mxu0 0.0
  %2869 = vmatpush2.msra.mxu0 0.0
  %2870 = vmatprep.subr.mxu0 0.0
  %2871 = vmatpush2.msra.mxu0 0.0
  %2872 = vmatprep.subr.mxu0 0.0
  %2873 = vmatpush2.msra.mxu0 0.0
  %2874 = vmatprep.subr.mxu0 0.0
  %2875 = vmatpush2.msra.mxu0 0.0
  %2876 = vmatprep.subr.mxu0 0.0
  %2877 = vmatpush2.msra.mxu0 0.0
  %2878 = vmatprep.subr.mxu0 0.0
  %2879 = vmatpush2.msra.mxu0 0.0
  %2880 = vmatprep.subr.mxu0 0.0
  %2881 = vmatpush2.msra.mxu0 0.0
  %2882 = vmatprep.subr.mxu0 0.0
  %2883 = vmatpush2.msra.mxu0 0.0
  %2884 = vmatprep.mubr.f32.mxu0 0.0
  %2885 = vmatmul.mubr.f32.gmra.mxu0 %v2666
  %v2886 = vpop.f32.mrf.mxu0
  %v2887 = vadd.f32 %v2662, %v2886
  %v2888 = vpop.f32.mrf.mxu0
  %2889 = vdwg.mxu0
  %v2890 = vld [vmem:[#allocation2] sm:$0xff]
  %v2891 = vld [vmem:[#allocation2 + $0x8] sm:$0xff]
  %v2892 = vld [vmem:[#allocation2 + $0x10] sm:$0xf]
  %s2893 = scalar_lea.vmem %s2, 8
  %v2894 = vld [vmem:[%s2893] sm:$0xf]
  %v2898 = vcombine.high %v2890, %v2890
  %v2899 = vcombine.high %v2891, %v2891
  %2900 = vrot.lane.b32.xlu0 %v2890, 126
  %v2901 = vpop.permute.xlu0 %2900
  %2902 = vrot.lane.b32.xlu0 %v2898, 126
  %v2903 = vpop.permute.xlu0 %2902
  %2904 = vrot.lane.b32.xlu0 %v2891, 126
  %v2905 = vpop.permute.xlu0 %2904
  %2906 = vrot.lane.b32.xlu0 %v2899, 126
  %v2907 = vpop.permute.xlu0 %2906
  %2908 = vrot.lane.b32.xlu0 %v2892, 126
  %v2909 = vpop.permute.xlu0 %2908
  %v2910 = vsel %vm521, %v2901, %v2903
  %v2911 = vsel %vm521, %v2903, %v2905
  %v2912 = vsel %vm521, %v2905, %v2907
  %v2913 = vsel %vm521, %v2907, %v2909
  %v2915 = vsel %vm49, %v2894, 0
  %v2917 = vsel %vm53, %v2910, 0
  %v2919 = vsel %vm53, %v2911, 0
  %v2921 = vsel %vm53, %v2912, 0
  %v2923 = vsel %vm53, %v2913, 0
  %v2925 = vsel %vm53, %v2909, 0
  %2927 = vmatprep.subr.mxu0 0.0
  %2928 = vmatpush1.msra.mxu0 0.0
  %2929 = vmatprep.subr.mxu0 0.0
  %2930 = vmatpush1.msra.mxu0 0.0
  %2931 = vmatprep.subr.mxu0 0.0
  %2932 = vmatpush1.msra.mxu0 0.0
  %2933 = vmatprep.subr.mxu0 0.0
  %2934 = vmatpush1.msra.mxu0 0.0
  %2935 = vmatprep.subr.mxu0 0.0
  %2936 = vmatpush1.msra.mxu0 0.0
  %2937 = vmatprep.subr.mxu0 0.0
  %2938 = vmatpush1.msra.mxu0 0.0
  %2939 = vmatprep.subr.mxu0 0.0
  %2940 = vmatpush1.msra.mxu0 0.0
  %2941 = vmatprep.subr.mxu0 0.0
  %2942 = vmatpush1.msra.mxu0 0.0
  %2943 = vmatprep.subr.mxu0 0.0
  %2944 = vmatpush1.msra.mxu0 0.0
  %2945 = vmatprep.subr.mxu0 0.0
  %2946 = vmatpush1.msra.mxu0 0.0
  %2947 = vmatprep.subr.mxu0 0.0
  %2948 = vmatpush1.msra.mxu0 0.0
  %2949 = vmatprep.subr.mxu0 0.0
  %2950 = vmatpush1.msra.mxu0 0.0
  %2951 = vmatprep.subr.mxu0 0.0
  %2952 = vmatpush1.msra.mxu0 0.0
  %2953 = vmatprep.subr.mxu0 0.0
  %2954 = vmatpush1.msra.mxu0 0.0
  %2955 = vmatprep.subr.mxu0 0.0
  %2956 = vmatpush1.msra.mxu0 0.0
  %2957 = vmatprep.subr.mxu0 %v2919
  %2958 = vmatpush1.msra.mxu0 %v2917
  %2959 = vmatprep.subr.mxu0 0.0
  %2960 = vmatpush2.msra.mxu0 0.0
  %2961 = vmatprep.subr.mxu0 0.0
  %2962 = vmatpush2.msra.mxu0 0.0
  %2963 = vmatprep.subr.mxu0 0.0
  %2964 = vmatpush2.msra.mxu0 0.0
  %2965 = vmatprep.subr.mxu0 0.0
  %2966 = vmatpush2.msra.mxu0 0.0
  %2967 = vmatprep.subr.mxu0 0.0
  %2968 = vmatpush2.msra.mxu0 0.0
  %2969 = vmatprep.subr.mxu0 0.0
  %2970 = vmatpush2.msra.mxu0 0.0
  %2971 = vmatprep.subr.mxu0 0.0
  %2972 = vmatpush2.msra.mxu0 0.0
  %2973 = vmatprep.subr.mxu0 0.0
  %2974 = vmatpush2.msra.mxu0 0.0
  %2975 = vmatprep.subr.mxu0 0.0
  %2976 = vmatpush2.msra.mxu0 0.0
  %2977 = vmatprep.subr.mxu0 0.0
  %2978 = vmatpush2.msra.mxu0 0.0
  %2979 = vmatprep.subr.mxu0 0.0
  %2980 = vmatpush2.msra.mxu0 0.0
  %2981 = vmatprep.subr.mxu0 0.0
  %2982 = vmatpush2.msra.mxu0 0.0
  %2983 = vmatprep.subr.mxu0 0.0
  %2984 = vmatpush2.msra.mxu0 0.0
  %2985 = vmatprep.subr.mxu0 0.0
  %2986 = vmatpush2.msra.mxu0 0.0
  %2987 = vmatprep.subr.mxu0 0.0
  %2988 = vmatpush2.msra.mxu0 0.0
  %2989 = vmatprep.subr.mxu0 0.0
  %2990 = vmatpush2.msra.mxu0 0.0
  %2991 = vmatprep.mubr.f32.mxu0 0.0
  %2992 = vmatmul.mubr.f32.gmra.mxu0 %v2915
  %v2993 = vpop.f32.mrf.mxu0
  %v2994 = vadd.f32 0.0, %v2993
  %v2995 = vpop.f32.mrf.mxu0
  %v2996 = vadd.f32 0.0, %v2995
  %2997 = vdwg.mxu0
  %2998 = vmatprep.subr.mxu0 0.0
  %2999 = vmatpush1.msra.mxu0 0.0
  %3000 = vmatprep.subr.mxu0 0.0
  %3001 = vmatpush1.msra.mxu0 0.0
  %3002 = vmatprep.subr.mxu0 0.0
  %3003 = vmatpush1.msra.mxu0 0.0
  %3004 = vmatprep.subr.mxu0 0.0
  %3005 = vmatpush1.msra.mxu0 0.0
  %3006 = vmatprep.subr.mxu0 0.0
  %3007 = vmatpush1.msra.mxu0 0.0
  %3008 = vmatprep.subr.mxu0 0.0
  %3009 = vmatpush1.msra.mxu0 0.0
  %3010 = vmatprep.subr.mxu0 0.0
  %3011 = vmatpush1.msra.mxu0 0.0
  %3012 = vmatprep.subr.mxu0 0.0
  %3013 = vmatpush1.msra.mxu0 0.0
  %3014 = vmatprep.subr.mxu0 0.0
  %3015 = vmatpush1.msra.mxu0 0.0
  %3016 = vmatprep.subr.mxu0 0.0
  %3017 = vmatpush1.msra.mxu0 0.0
  %3018 = vmatprep.subr.mxu0 0.0
  %3019 = vmatpush1.msra.mxu0 0.0
  %3020 = vmatprep.subr.mxu0 0.0
  %3021 = vmatpush1.msra.mxu0 0.0
  %3022 = vmatprep.subr.mxu0 0.0
  %3023 = vmatpush1.msra.mxu0 0.0
  %3024 = vmatprep.subr.mxu0 0.0
  %3025 = vmatpush1.msra.mxu0 0.0
  %3026 = vmatprep.subr.mxu0 0.0
  %3027 = vmatpush1.msra.mxu0 0.0
  %3028 = vmatprep.subr.mxu0 %v2923
  %3029 = vmatpush1.msra.mxu0 %v2921
  %3030 = vmatprep.subr.mxu0 0.0
  %3031 = vmatpush2.msra.mxu0 0.0
  %3032 = vmatprep.subr.mxu0 0.0
  %3033 = vmatpush2.msra.mxu0 0.0
  %3034 = vmatprep.subr.mxu0 0.0
  %3035 = vmatpush2.msra.mxu0 0.0
  %3036 = vmatprep.subr.mxu0 0.0
  %3037 = vmatpush2.msra.mxu0 0.0
  %3038 = vmatprep.subr.mxu0 0.0
  %3039 = vmatpush2.msra.mxu0 0.0
  %3040 = vmatprep.subr.mxu0 0.0
  %3041 = vmatpush2.msra.mxu0 0.0
  %3042 = vmatprep.subr.mxu0 0.0
  %3043 = vmatpush2.msra.mxu0 0.0
  %3044 = vmatprep.subr.mxu0 0.0
  %3045 = vmatpush2.msra.mxu0 0.0
  %3046 = vmatprep.subr.mxu0 0.0
  %3047 = vmatpush2.msra.mxu0 0.0
  %3048 = vmatprep.subr.mxu0 0.0
  %3049 = vmatpush2.msra.mxu0 0.0
  %3050 = vmatprep.subr.mxu0 0.0
  %3051 = vmatpush2.msra.mxu0 0.0
  %3052 = vmatprep.subr.mxu0 0.0
  %3053 = vmatpush2.msra.mxu0 0.0
  %3054 = vmatprep.subr.mxu0 0.0
  %3055 = vmatpush2.msra.mxu0 0.0
  %3056 = vmatprep.subr.mxu0 0.0
  %3057 = vmatpush2.msra.mxu0 0.0
  %3058 = vmatprep.subr.mxu0 0.0
  %3059 = vmatpush2.msra.mxu0 0.0
  %3060 = vmatprep.subr.mxu0 0.0
  %3061 = vmatpush2.msra.mxu0 0.0
  %3062 = vmatprep.mubr.f32.mxu0 0.0
  %3063 = vmatmul.mubr.f32.gmra.mxu0 %v2915
  %v3064 = vpop.f32.mrf.mxu0
  %v3065 = vadd.f32 0.0, %v3064
  %v3066 = vpop.f32.mrf.mxu0
  %v3067 = vadd.f32 0.0, %v3066
  %3068 = vdwg.mxu0
  %3069 = vmatprep.subr.mxu0 0.0
  %3070 = vmatpush1.msra.mxu0 0.0
  %3071 = vmatprep.subr.mxu0 0.0
  %3072 = vmatpush1.msra.mxu0 0.0
  %3073 = vmatprep.subr.mxu0 0.0
  %3074 = vmatpush1.msra.mxu0 0.0
  %3075 = vmatprep.subr.mxu0 0.0
  %3076 = vmatpush1.msra.mxu0 0.0
  %3077 = vmatprep.subr.mxu0 0.0
  %3078 = vmatpush1.msra.mxu0 0.0
  %3079 = vmatprep.subr.mxu0 0.0
  %3080 = vmatpush1.msra.mxu0 0.0
  %3081 = vmatprep.subr.mxu0 0.0
  %3082 = vmatpush1.msra.mxu0 0.0
  %3083 = vmatprep.subr.mxu0 0.0
  %3084 = vmatpush1.msra.mxu0 0.0
  %3085 = vmatprep.subr.mxu0 0.0
  %3086 = vmatpush1.msra.mxu0 0.0
  %3087 = vmatprep.subr.mxu0 0.0
  %3088 = vmatpush1.msra.mxu0 0.0
  %3089 = vmatprep.subr.mxu0 0.0
  %3090 = vmatpush1.msra.mxu0 0.0
  %3091 = vmatprep.subr.mxu0 0.0
  %3092 = vmatpush1.msra.mxu0 0.0
  %3093 = vmatprep.subr.mxu0 0.0
  %3094 = vmatpush1.msra.mxu0 0.0
  %3095 = vmatprep.subr.mxu0 0.0
  %3096 = vmatpush1.msra.mxu0 0.0
  %3097 = vmatprep.subr.mxu0 0.0
  %3098 = vmatpush1.msra.mxu0 0.0
  %3099 = vmatprep.subr.mxu0 0.0
  %3100 = vmatpush1.msra.mxu0 %v2925
  %3101 = vmatprep.subr.mxu0 0.0
  %3102 = vmatpush2.msra.mxu0 0.0
  %3103 = vmatprep.subr.mxu0 0.0
  %3104 = vmatpush2.msra.mxu0 0.0
  %3105 = vmatprep.subr.mxu0 0.0
  %3106 = vmatpush2.msra.mxu0 0.0
  %3107 = vmatprep.subr.mxu0 0.0
  %3108 = vmatpush2.msra.mxu0 0.0
  %3109 = vmatprep.subr.mxu0 0.0
  %3110 = vmatpush2.msra.mxu0 0.0
  %3111 = vmatprep.subr.mxu0 0.0
  %3112 = vmatpush2.msra.mxu0 0.0
  %3113 = vmatprep.subr.mxu0 0.0
  %3114 = vmatpush2.msra.mxu0 0.0
  %3115 = vmatprep.subr.mxu0 0.0
  %3116 = vmatpush2.msra.mxu0 0.0
  %3117 = vmatprep.subr.mxu0 0.0
  %3118 = vmatpush2.msra.mxu0 0.0
  %3119 = vmatprep.subr.mxu0 0.0
  %3120 = vmatpush2.msra.mxu0 0.0
  %3121 = vmatprep.subr.mxu0 0.0
  %3122 = vmatpush2.msra.mxu0 0.0
  %3123 = vmatprep.subr.mxu0 0.0
  %3124 = vmatpush2.msra.mxu0 0.0
  %3125 = vmatprep.subr.mxu0 0.0
  %3126 = vmatpush2.msra.mxu0 0.0
  %3127 = vmatprep.subr.mxu0 0.0
  %3128 = vmatpush2.msra.mxu0 0.0
  %3129 = vmatprep.subr.mxu0 0.0
  %3130 = vmatpush2.msra.mxu0 0.0
  %3131 = vmatprep.subr.mxu0 0.0
  %3132 = vmatpush2.msra.mxu0 0.0
  %3133 = vmatprep.mubr.f32.mxu0 0.0
  %3134 = vmatmul.mubr.f32.gmra.mxu0 %v2915
  %v3135 = vpop.f32.mrf.mxu0
  %v3136 = vadd.f32 0.0, %v3135
  %v3137 = vpop.f32.mrf.mxu0
  %3138 = vdwg.mxu0
  %v3139 = vadd.f32 %v2745, %v2994
  %v3140 = vadd.f32 %v2747, %v2996
  %v3141 = vadd.f32 %v2816, %v3065
  %v3142 = vadd.f32 %v2818, %v3067
  %v3143 = vadd.f32 %v2887, %v3136
  %v3144 = vld [vmem:[#allocation2] sm:$0xff]
  %v3145 = vld [vmem:[#allocation2 + $0x8] sm:$0xff]
  %v3146 = vld [vmem:[#allocation2 + $0x10] sm:$0xf]
  %s3147 = scalar_lea.vmem %s2, 12
  %v3148 = vld [vmem:[%s3147] sm:$0xf]
  %v3152 = vcombine.high %v3144, %v3144
  %v3153 = vcombine.high %v3145, %v3145
  %3154 = vrot.lane.b32.xlu0 %v3144, 110
  %v3155 = vpop.permute.xlu0 %3154
  %3156 = vrot.lane.b32.xlu0 %v3152, 110
  %v3157 = vpop.permute.xlu0 %3156
  %3158 = vrot.lane.b32.xlu0 %v3145, 110
  %v3159 = vpop.permute.xlu0 %3158
  %3160 = vrot.lane.b32.xlu0 %v3153, 110
  %v3161 = vpop.permute.xlu0 %3160
  %3162 = vrot.lane.b32.xlu0 %v3146, 110
  %v3163 = vpop.permute.xlu0 %3162
  %v3164 = vsel %vm776, %v3155, %v3157
  %v3165 = vsel %vm776, %v3157, %v3159
  %v3166 = vsel %vm776, %v3159, %v3161
  %v3167 = vsel %vm776, %v3161, %v3163
  %v3169 = vsel %vm49, %v3148, 0
  %v3171 = vsel %vm53, %v3164, 0
  %v3173 = vsel %vm53, %v3165, 0
  %v3175 = vsel %vm53, %v3166, 0
  %v3177 = vsel %vm53, %v3167, 0
  %v3179 = vsel %vm53, %v3163, 0
  %3181 = vmatprep.subr.mxu0 0.0
  %3182 = vmatpush1.msra.mxu0 0.0
  %3183 = vmatprep.subr.mxu0 0.0
  %3184 = vmatpush1.msra.mxu0 0.0
  %3185 = vmatprep.subr.mxu0 0.0
  %3186 = vmatpush1.msra.mxu0 0.0
  %3187 = vmatprep.subr.mxu0 0.0
  %3188 = vmatpush1.msra.mxu0 0.0
  %3189 = vmatprep.subr.mxu0 0.0
  %3190 = vmatpush1.msra.mxu0 0.0
  %3191 = vmatprep.subr.mxu0 0.0
  %3192 = vmatpush1.msra.mxu0 0.0
  %3193 = vmatprep.subr.mxu0 0.0
  %3194 = vmatpush1.msra.mxu0 0.0
  %3195 = vmatprep.subr.mxu0 0.0
  %3196 = vmatpush1.msra.mxu0 0.0
  %3197 = vmatprep.subr.mxu0 0.0
  %3198 = vmatpush1.msra.mxu0 0.0
  %3199 = vmatprep.subr.mxu0 0.0
  %3200 = vmatpush1.msra.mxu0 0.0
  %3201 = vmatprep.subr.mxu0 0.0
  %3202 = vmatpush1.msra.mxu0 0.0
  %3203 = vmatprep.subr.mxu0 0.0
  %3204 = vmatpush1.msra.mxu0 0.0
  %3205 = vmatprep.subr.mxu0 0.0
  %3206 = vmatpush1.msra.mxu0 0.0
  %3207 = vmatprep.subr.mxu0 0.0
  %3208 = vmatpush1.msra.mxu0 0.0
  %3209 = vmatprep.subr.mxu0 0.0
  %3210 = vmatpush1.msra.mxu0 0.0
  %3211 = vmatprep.subr.mxu0 %v3173
  %3212 = vmatpush1.msra.mxu0 %v3171
  %3213 = vmatprep.subr.mxu0 0.0
  %3214 = vmatpush2.msra.mxu0 0.0
  %3215 = vmatprep.subr.mxu0 0.0
  %3216 = vmatpush2.msra.mxu0 0.0
  %3217 = vmatprep.subr.mxu0 0.0
  %3218 = vmatpush2.msra.mxu0 0.0
  %3219 = vmatprep.subr.mxu0 0.0
  %3220 = vmatpush2.msra.mxu0 0.0
  %3221 = vmatprep.subr.mxu0 0.0
  %3222 = vmatpush2.msra.mxu0 0.0
  %3223 = vmatprep.subr.mxu0 0.0
  %3224 = vmatpush2.msra.mxu0 0.0
  %3225 = vmatprep.subr.mxu0 0.0
  %3226 = vmatpush2.msra.mxu0 0.0
  %3227 = vmatprep.subr.mxu0 0.0
  %3228 = vmatpush2.msra.mxu0 0.0
  %3229 = vmatprep.subr.mxu0 0.0
  %3230 = vmatpush2.msra.mxu0 0.0
  %3231 = vmatprep.subr.mxu0 0.0
  %3232 = vmatpush2.msra.mxu0 0.0
  %3233 = vmatprep.subr.mxu0 0.0
  %3234 = vmatpush2.msra.mxu0 0.0
  %3235 = vmatprep.subr.mxu0 0.0
  %3236 = vmatpush2.msra.mxu0 0.0
  %3237 = vmatprep.subr.mxu0 0.0
  %3238 = vmatpush2.msra.mxu0 0.0
  %3239 = vmatprep.subr.mxu0 0.0
  %3240 = vmatpush2.msra.mxu0 0.0
  %3241 = vmatprep.subr.mxu0 0.0
  %3242 = vmatpush2.msra.mxu0 0.0
  %3243 = vmatprep.subr.mxu0 0.0
  %3244 = vmatpush2.msra.mxu0 0.0
  %3245 = vmatprep.mubr.f32.mxu0 0.0
  %3246 = vmatmul.mubr.f32.gmra.mxu0 %v3169
  %v3247 = vpop.f32.mrf.mxu0
  %v3248 = vadd.f32 0.0, %v3247
  %v3249 = vpop.f32.mrf.mxu0
  %v3250 = vadd.f32 0.0, %v3249
  %3251 = vdwg.mxu0
  %3252 = vmatprep.subr.mxu0 0.0
  %3253 = vmatpush1.msra.mxu0 0.0
  %3254 = vmatprep.subr.mxu0 0.0
  %3255 = vmatpush1.msra.mxu0 0.0
  %3256 = vmatprep.subr.mxu0 0.0
  %3257 = vmatpush1.msra.mxu0 0.0
  %3258 = vmatprep.subr.mxu0 0.0
  %3259 = vmatpush1.msra.mxu0 0.0
  %3260 = vmatprep.subr.mxu0 0.0
  %3261 = vmatpush1.msra.mxu0 0.0
  %3262 = vmatprep.subr.mxu0 0.0
  %3263 = vmatpush1.msra.mxu0 0.0
  %3264 = vmatprep.subr.mxu0 0.0
  %3265 = vmatpush1.msra.mxu0 0.0
  %3266 = vmatprep.subr.mxu0 0.0
  %3267 = vmatpush1.msra.mxu0 0.0
  %3268 = vmatprep.subr.mxu0 0.0
  %3269 = vmatpush1.msra.mxu0 0.0
  %3270 = vmatprep.subr.mxu0 0.0
  %3271 = vmatpush1.msra.mxu0 0.0
  %3272 = vmatprep.subr.mxu0 0.0
  %3273 = vmatpush1.msra.mxu0 0.0
  %3274 = vmatprep.subr.mxu0 0.0
  %3275 = vmatpush1.msra.mxu0 0.0
  %3276 = vmatprep.subr.mxu0 0.0
  %3277 = vmatpush1.msra.mxu0 0.0
  %3278 = vmatprep.subr.mxu0 0.0
  %3279 = vmatpush1.msra.mxu0 0.0
  %3280 = vmatprep.subr.mxu0 0.0
  %3281 = vmatpush1.msra.mxu0 0.0
  %3282 = vmatprep.subr.mxu0 %v3177
  %3283 = vmatpush1.msra.mxu0 %v3175
  %3284 = vmatprep.subr.mxu0 0.0
  %3285 = vmatpush2.msra.mxu0 0.0
  %3286 = vmatprep.subr.mxu0 0.0
  %3287 = vmatpush2.msra.mxu0 0.0
  %3288 = vmatprep.subr.mxu0 0.0
  %3289 = vmatpush2.msra.mxu0 0.0
  %3290 = vmatprep.subr.mxu0 0.0
  %3291 = vmatpush2.msra.mxu0 0.0
  %3292 = vmatprep.subr.mxu0 0.0
  %3293 = vmatpush2.msra.mxu0 0.0
  %3294 = vmatprep.subr.mxu0 0.0
  %3295 = vmatpush2.msra.mxu0 0.0
  %3296 = vmatprep.subr.mxu0 0.0
  %3297 = vmatpush2.msra.mxu0 0.0
  %3298 = vmatprep.subr.mxu0 0.0
  %3299 = vmatpush2.msra.mxu0 0.0
  %3300 = vmatprep.subr.mxu0 0.0
  %3301 = vmatpush2.msra.mxu0 0.0
  %3302 = vmatprep.subr.mxu0 0.0
  %3303 = vmatpush2.msra.mxu0 0.0
  %3304 = vmatprep.subr.mxu0 0.0
  %3305 = vmatpush2.msra.mxu0 0.0
  %3306 = vmatprep.subr.mxu0 0.0
  %3307 = vmatpush2.msra.mxu0 0.0
  %3308 = vmatprep.subr.mxu0 0.0
  %3309 = vmatpush2.msra.mxu0 0.0
  %3310 = vmatprep.subr.mxu0 0.0
  %3311 = vmatpush2.msra.mxu0 0.0
  %3312 = vmatprep.subr.mxu0 0.0
  %3313 = vmatpush2.msra.mxu0 0.0
  %3314 = vmatprep.subr.mxu0 0.0
  %3315 = vmatpush2.msra.mxu0 0.0
  %3316 = vmatprep.mubr.f32.mxu0 0.0
  %3317 = vmatmul.mubr.f32.gmra.mxu0 %v3169
  %v3318 = vpop.f32.mrf.mxu0
  %v3319 = vadd.f32 0.0, %v3318
  %v3320 = vpop.f32.mrf.mxu0
  %v3321 = vadd.f32 0.0, %v3320
  %3322 = vdwg.mxu0
  %3323 = vmatprep.subr.mxu0 0.0
  %3324 = vmatpush1.msra.mxu0 0.0
  %3325 = vmatprep.subr.mxu0 0.0
  %3326 = vmatpush1.msra.mxu0 0.0
  %3327 = vmatprep.subr.mxu0 0.0
  %3328 = vmatpush1.msra.mxu0 0.0
  %3329 = vmatprep.subr.mxu0 0.0
  %3330 = vmatpush1.msra.mxu0 0.0
  %3331 = vmatprep.subr.mxu0 0.0
  %3332 = vmatpush1.msra.mxu0 0.0
  %3333 = vmatprep.subr.mxu0 0.0
  %3334 = vmatpush1.msra.mxu0 0.0
  %3335 = vmatprep.subr.mxu0 0.0
  %3336 = vmatpush1.msra.mxu0 0.0
  %3337 = vmatprep.subr.mxu0 0.0
  %3338 = vmatpush1.msra.mxu0 0.0
  %3339 = vmatprep.subr.mxu0 0.0
  %3340 = vmatpush1.msra.mxu0 0.0
  %3341 = vmatprep.subr.mxu0 0.0
  %3342 = vmatpush1.msra.mxu0 0.0
  %3343 = vmatprep.subr.mxu0 0.0
  %3344 = vmatpush1.msra.mxu0 0.0
  %3345 = vmatprep.subr.mxu0 0.0
  %3346 = vmatpush1.msra.mxu0 0.0
  %3347 = vmatprep.subr.mxu0 0.0
  %3348 = vmatpush1.msra.mxu0 0.0
  %3349 = vmatprep.subr.mxu0 0.0
  %3350 = vmatpush1.msra.mxu0 0.0
  %3351 = vmatprep.subr.mxu0 0.0
  %3352 = vmatpush1.msra.mxu0 0.0
  %3353 = vmatprep.subr.mxu0 0.0
  %3354 = vmatpush1.msra.mxu0 %v3179
  %3355 = vmatprep.subr.mxu0 0.0
  %3356 = vmatpush2.msra.mxu0 0.0
  %3357 = vmatprep.subr.mxu0 0.0
  %3358 = vmatpush2.msra.mxu0 0.0
  %3359 = vmatprep.subr.mxu0 0.0
  %3360 = vmatpush2.msra.mxu0 0.0
  %3361 = vmatprep.subr.mxu0 0.0
  %3362 = vmatpush2.msra.mxu0 0.0
  %3363 = vmatprep.subr.mxu0 0.0
  %3364 = vmatpush2.msra.mxu0 0.0
  %3365 = vmatprep.subr.mxu0 0.0
  %3366 = vmatpush2.msra.mxu0 0.0
  %3367 = vmatprep.subr.mxu0 0.0
  %3368 = vmatpush2.msra.mxu0 0.0
  %3369 = vmatprep.subr.mxu0 0.0
  %3370 = vmatpush2.msra.mxu0 0.0
  %3371 = vmatprep.subr.mxu0 0.0
  %3372 = vmatpush2.msra.mxu0 0.0
  %3373 = vmatprep.subr.mxu0 0.0
  %3374 = vmatpush2.msra.mxu0 0.0
  %3375 = vmatprep.subr.mxu0 0.0
  %3376 = vmatpush2.msra.mxu0 0.0
  %3377 = vmatprep.subr.mxu0 0.0
  %3378 = vmatpush2.msra.mxu0 0.0
  %3379 = vmatprep.subr.mxu0 0.0
  %3380 = vmatpush2.msra.mxu0 0.0
  %3381 = vmatprep.subr.mxu0 0.0
  %3382 = vmatpush2.msra.mxu0 0.0
  %3383 = vmatprep.subr.mxu0 0.0
  %3384 = vmatpush2.msra.mxu0 0.0
  %3385 = vmatprep.subr.mxu0 0.0
  %3386 = vmatpush2.msra.mxu0 0.0
  %3387 = vmatprep.mubr.f32.mxu0 0.0
  %3388 = vmatmul.mubr.f32.gmra.mxu0 %v3169
  %v3389 = vpop.f32.mrf.mxu0
  %v3390 = vadd.f32 0.0, %v3389
  %v3391 = vpop.f32.mrf.mxu0
  %3392 = vdwg.mxu0
  %v3393 = vadd.f32 %v3139, %v3248
  %v3394 = vadd.f32 %v3140, %v3250
  %v3395 = vadd.f32 %v3141, %v3319
  %v3396 = vadd.f32 %v3142, %v3321
  %v3397 = vadd.f32 %v3143, %v3390
  %v3398 = vld [vmem:[#allocation2] sm:$0xff]
  %v3399 = vld [vmem:[#allocation2 + $0x8] sm:$0xff]
  %v3400 = vld [vmem:[#allocation2 + $0x10] sm:$0xf]
  %s3401 = scalar_lea.vmem %s2, 16
  %v3402 = vld [vmem:[%s3401] sm:$0xf]
  %v3406 = vcombine.high %v3398, %v3398
  %v3407 = vcombine.high %v3399, %v3399
  %3408 = vrot.lane.b32.xlu0 %v3398, 109
  %v3409 = vpop.permute.xlu0 %3408
  %3410 = vrot.lane.b32.xlu0 %v3406, 109
  %v3411 = vpop.permute.xlu0 %3410
  %3412 = vrot.lane.b32.xlu0 %v3399, 109
  %v3413 = vpop.permute.xlu0 %3412
  %3414 = vrot.lane.b32.xlu0 %v3407, 109
  %v3415 = vpop.permute.xlu0 %3414
  %3416 = vrot.lane.b32.xlu0 %v3400, 109
  %v3417 = vpop.permute.xlu0 %3416
  %v3418 = vsel %vm1031, %v3409, %v3411
  %v3419 = vsel %vm1031, %v3411, %v3413
  %v3420 = vsel %vm1031, %v3413, %v3415
  %v3421 = vsel %vm1031, %v3415, %v3417
  %v3423 = vsel %vm49, %v3402, 0
  %v3425 = vsel %vm53, %v3418, 0
  %v3427 = vsel %vm53, %v3419, 0
  %v3429 = vsel %vm53, %v3420, 0
  %v3431 = vsel %vm53, %v3421, 0
  %v3433 = vsel %vm53, %v3417, 0
  %3435 = vmatprep.subr.mxu0 0.0
  %3436 = vmatpush1.msra.mxu0 0.0
  %3437 = vmatprep.subr.mxu0 0.0
  %3438 = vmatpush1.msra.mxu0 0.0
  %3439 = vmatprep.subr.mxu0 0.0
  %3440 = vmatpush1.msra.mxu0 0.0
  %3441 = vmatprep.subr.mxu0 0.0
  %3442 = vmatpush1.msra.mxu0 0.0
  %3443 = vmatprep.subr.mxu0 0.0
  %3444 = vmatpush1.msra.mxu0 0.0
  %3445 = vmatprep.subr.mxu0 0.0
  %3446 = vmatpush1.msra.mxu0 0.0
  %3447 = vmatprep.subr.mxu0 0.0
  %3448 = vmatpush1.msra.mxu0 0.0
  %3449 = vmatprep.subr.mxu0 0.0
  %3450 = vmatpush1.msra.mxu0 0.0
  %3451 = vmatprep.subr.mxu0 0.0
  %3452 = vmatpush1.msra.mxu0 0.0
  %3453 = vmatprep.subr.mxu0 0.0
  %3454 = vmatpush1.msra.mxu0 0.0
  %3455 = vmatprep.subr.mxu0 0.0
  %3456 = vmatpush1.msra.mxu0 0.0
  %3457 = vmatprep.subr.mxu0 0.0
  %3458 = vmatpush1.msra.mxu0 0.0
  %3459 = vmatprep.subr.mxu0 0.0
  %3460 = vmatpush1.msra.mxu0 0.0
  %3461 = vmatprep.subr.mxu0 0.0
  %3462 = vmatpush1.msra.mxu0 0.0
  %3463 = vmatprep.subr.mxu0 0.0
  %3464 = vmatpush1.msra.mxu0 0.0
  %3465 = vmatprep.subr.mxu0 %v3427
  %3466 = vmatpush1.msra.mxu0 %v3425
  %3467 = vmatprep.subr.mxu0 0.0
  %3468 = vmatpush2.msra.mxu0 0.0
  %3469 = vmatprep.subr.mxu0 0.0
  %3470 = vmatpush2.msra.mxu0 0.0
  %3471 = vmatprep.subr.mxu0 0.0
  %3472 = vmatpush2.msra.mxu0 0.0
  %3473 = vmatprep.subr.mxu0 0.0
  %3474 = vmatpush2.msra.mxu0 0.0
  %3475 = vmatprep.subr.mxu0 0.0
  %3476 = vmatpush2.msra.mxu0 0.0
  %3477 = vmatprep.subr.mxu0 0.0
  %3478 = vmatpush2.msra.mxu0 0.0
  %3479 = vmatprep.subr.mxu0 0.0
  %3480 = vmatpush2.msra.mxu0 0.0
  %3481 = vmatprep.subr.mxu0 0.0
  %3482 = vmatpush2.msra.mxu0 0.0
  %3483 = vmatprep.subr.mxu0 0.0
  %3484 = vmatpush2.msra.mxu0 0.0
  %3485 = vmatprep.subr.mxu0 0.0
  %3486 = vmatpush2.msra.mxu0 0.0
  %3487 = vmatprep.subr.mxu0 0.0
  %3488 = vmatpush2.msra.mxu0 0.0
  %3489 = vmatprep.subr.mxu0 0.0
  %3490 = vmatpush2.msra.mxu0 0.0
  %3491 = vmatprep.subr.mxu0 0.0
  %3492 = vmatpush2.msra.mxu0 0.0
  %3493 = vmatprep.subr.mxu0 0.0
  %3494 = vmatpush2.msra.mxu0 0.0
  %3495 = vmatprep.subr.mxu0 0.0
  %3496 = vmatpush2.msra.mxu0 0.0
  %3497 = vmatprep.subr.mxu0 0.0
  %3498 = vmatpush2.msra.mxu0 0.0
  %3499 = vmatprep.mubr.f32.mxu0 0.0
  %3500 = vmatmul.mubr.f32.gmra.mxu0 %v3423
  %v3501 = vpop.f32.mrf.mxu0
  %v3502 = vadd.f32 0.0, %v3501
  %v3503 = vpop.f32.mrf.mxu0
  %v3504 = vadd.f32 0.0, %v3503
  %3505 = vdwg.mxu0
  %3506 = vmatprep.subr.mxu0 0.0
  %3507 = vmatpush1.msra.mxu0 0.0
  %3508 = vmatprep.subr.mxu0 0.0
  %3509 = vmatpush1.msra.mxu0 0.0
  %3510 = vmatprep.subr.mxu0 0.0
  %3511 = vmatpush1.msra.mxu0 0.0
  %3512 = vmatprep.subr.mxu0 0.0
  %3513 = vmatpush1.msra.mxu0 0.0
  %3514 = vmatprep.subr.mxu0 0.0
  %3515 = vmatpush1.msra.mxu0 0.0
  %3516 = vmatprep.subr.mxu0 0.0
  %3517 = vmatpush1.msra.mxu0 0.0
  %3518 = vmatprep.subr.mxu0 0.0
  %3519 = vmatpush1.msra.mxu0 0.0
  %3520 = vmatprep.subr.mxu0 0.0
  %3521 = vmatpush1.msra.mxu0 0.0
  %3522 = vmatprep.subr.mxu0 0.0
  %3523 = vmatpush1.msra.mxu0 0.0
  %3524 = vmatprep.subr.mxu0 0.0
  %3525 = vmatpush1.msra.mxu0 0.0
  %3526 = vmatprep.subr.mxu0 0.0
  %3527 = vmatpush1.msra.mxu0 0.0
  %3528 = vmatprep.subr.mxu0 0.0
  %3529 = vmatpush1.msra.mxu0 0.0
  %3530 = vmatprep.subr.mxu0 0.0
  %3531 = vmatpush1.msra.mxu0 0.0
  %3532 = vmatprep.subr.mxu0 0.0
  %3533 = vmatpush1.msra.mxu0 0.0
  %3534 = vmatprep.subr.mxu0 0.0
  %3535 = vmatpush1.msra.mxu0 0.0
  %3536 = vmatprep.subr.mxu0 %v3431
  %3537 = vmatpush1.msra.mxu0 %v3429
  %3538 = vmatprep.subr.mxu0 0.0
  %3539 = vmatpush2.msra.mxu0 0.0
  %3540 = vmatprep.subr.mxu0 0.0
  %3541 = vmatpush2.msra.mxu0 0.0
  %3542 = vmatprep.subr.mxu0 0.0
  %3543 = vmatpush2.msra.mxu0 0.0
  %3544 = vmatprep.subr.mxu0 0.0
  %3545 = vmatpush2.msra.mxu0 0.0
  %3546 = vmatprep.subr.mxu0 0.0
  %3547 = vmatpush2.msra.mxu0 0.0
  %3548 = vmatprep.subr.mxu0 0.0
  %3549 = vmatpush2.msra.mxu0 0.0
  %3550 = vmatprep.subr.mxu0 0.0
  %3551 = vmatpush2.msra.mxu0 0.0
  %3552 = vmatprep.subr.mxu0 0.0
  %3553 = vmatpush2.msra.mxu0 0.0
  %3554 = vmatprep.subr.mxu0 0.0
  %3555 = vmatpush2.msra.mxu0 0.0
  %3556 = vmatprep.subr.mxu0 0.0
  %3557 = vmatpush2.msra.mxu0 0.0
  %3558 = vmatprep.subr.mxu0 0.0
  %3559 = vmatpush2.msra.mxu0 0.0
  %3560 = vmatprep.subr.mxu0 0.0
  %3561 = vmatpush2.msra.mxu0 0.0
  %3562 = vmatprep.subr.mxu0 0.0
  %3563 = vmatpush2.msra.mxu0 0.0
  %3564 = vmatprep.subr.mxu0 0.0
  %3565 = vmatpush2.msra.mxu0 0.0
  %3566 = vmatprep.subr.mxu0 0.0
  %3567 = vmatpush2.msra.mxu0 0.0
  %3568 = vmatprep.subr.mxu0 0.0
  %3569 = vmatpush2.msra.mxu0 0.0
  %3570 = vmatprep.mubr.f32.mxu0 0.0
  %3571 = vmatmul.mubr.f32.gmra.mxu0 %v3423
  %v3572 = vpop.f32.mrf.mxu0
  %v3573 = vadd.f32 0.0, %v3572
  %v3574 = vpop.f32.mrf.mxu0
  %v3575 = vadd.f32 0.0, %v3574
  %3576 = vdwg.mxu0
  %3577 = vmatprep.subr.mxu0 0.0
  %3578 = vmatpush1.msra.mxu0 0.0
  %3579 = vmatprep.subr.mxu0 0.0
  %3580 = vmatpush1.msra.mxu0 0.0
  %3581 = vmatprep.subr.mxu0 0.0
  %3582 = vmatpush1.msra.mxu0 0.0
  %3583 = vmatprep.subr.mxu0 0.0
  %3584 = vmatpush1.msra.mxu0 0.0
  %3585 = vmatprep.subr.mxu0 0.0
  %3586 = vmatpush1.msra.mxu0 0.0
  %3587 = vmatprep.subr.mxu0 0.0
  %3588 = vmatpush1.msra.mxu0 0.0
  %3589 = vmatprep.subr.mxu0 0.0
  %3590 = vmatpush1.msra.mxu0 0.0
  %3591 = vmatprep.subr.mxu0 0.0
  %3592 = vmatpush1.msra.mxu0 0.0
  %3593 = vmatprep.subr.mxu0 0.0
  %3594 = vmatpush1.msra.mxu0 0.0
  %3595 = vmatprep.subr.mxu0 0.0
  %3596 = vmatpush1.msra.mxu0 0.0
  %3597 = vmatprep.subr.mxu0 0.0
  %3598 = vmatpush1.msra.mxu0 0.0
  %3599 = vmatprep.subr.mxu0 0.0
  %3600 = vmatpush1.msra.mxu0 0.0
  %3601 = vmatprep.subr.mxu0 0.0
  %3602 = vmatpush1.msra.mxu0 0.0
  %3603 = vmatprep.subr.mxu0 0.0
  %3604 = vmatpush1.msra.mxu0 0.0
  %3605 = vmatprep.subr.mxu0 0.0
  %3606 = vmatpush1.msra.mxu0 0.0
  %3607 = vmatprep.subr.mxu0 0.0
  %3608 = vmatpush1.msra.mxu0 %v3433
  %3609 = vmatprep.subr.mxu0 0.0
  %3610 = vmatpush2.msra.mxu0 0.0
  %3611 = vmatprep.subr.mxu0 0.0
  %3612 = vmatpush2.msra.mxu0 0.0
  %3613 = vmatprep.subr.mxu0 0.0
  %3614 = vmatpush2.msra.mxu0 0.0
  %3615 = vmatprep.subr.mxu0 0.0
  %3616 = vmatpush2.msra.mxu0 0.0
  %3617 = vmatprep.subr.mxu0 0.0
  %3618 = vmatpush2.msra.mxu0 0.0
  %3619 = vmatprep.subr.mxu0 0.0
  %3620 = vmatpush2.msra.mxu0 0.0
  %3621 = vmatprep.subr.mxu0 0.0
  %3622 = vmatpush2.msra.mxu0 0.0
  %3623 = vmatprep.subr.mxu0 0.0
  %3624 = vmatpush2.msra.mxu0 0.0
  %3625 = vmatprep.subr.mxu0 0.0
  %3626 = vmatpush2.msra.mxu0 0.0
  %3627 = vmatprep.subr.mxu0 0.0
  %3628 = vmatpush2.msra.mxu0 0.0
  %3629 = vmatprep.subr.mxu0 0.0
  %3630 = vmatpush2.msra.mxu0 0.0
  %3631 = vmatprep.subr.mxu0 0.0
  %3632 = vmatpush2.msra.mxu0 0.0
  %3633 = vmatprep.subr.mxu0 0.0
  %3634 = vmatpush2.msra.mxu0 0.0
  %3635 = vmatprep.subr.mxu0 0.0
  %3636 = vmatpush2.msra.mxu0 0.0
  %3637 = vmatprep.subr.mxu0 0.0
  %3638 = vmatpush2.msra.mxu0 0.0
  %3639 = vmatprep.subr.mxu0 0.0
  %3640 = vmatpush2.msra.mxu0 0.0
  %3641 = vmatprep.mubr.f32.mxu0 0.0
  %3642 = vmatmul.mubr.f32.gmra.mxu0 %v3423
  %v3643 = vpop.f32.mrf.mxu0
  %v3644 = vadd.f32 0.0, %v3643
  %v3645 = vpop.f32.mrf.mxu0
  %3646 = vdwg.mxu0
  %v3647 = vadd.f32 %v3393, %v3502
  %v3648 = vadd.f32 %v3394, %v3504
  %v3649 = vadd.f32 %v3395, %v3573
  %v3650 = vadd.f32 %v3396, %v3575
  %v3651 = vadd.f32 %v3397, %v3644
  %v3652 = vld [vmem:[#allocation2] sm:$0xff]
  %v3653 = vld [vmem:[#allocation2 + $0x8] sm:$0xff]
  %v3654 = vld [vmem:[#allocation2 + $0x10] sm:$0xf]
  %s3655 = scalar_lea.vmem %s2, 20
  %v3656 = vld [vmem:[%s3655] sm:$0xf]
  %v3660 = vcombine.high %v3652, %v3652
  %v3661 = vcombine.high %v3653, %v3653
  %3662 = vrot.lane.b32.xlu0 %v3652, 108
  %v3663 = vpop.permute.xlu0 %3662
  %3664 = vrot.lane.b32.xlu0 %v3660, 108
  %v3665 = vpop.permute.xlu0 %3664
  %3666 = vrot.lane.b32.xlu0 %v3653, 108
  %v3667 = vpop.permute.xlu0 %3666
  %3668 = vrot.lane.b32.xlu0 %v3661, 108
  %v3669 = vpop.permute.xlu0 %3668
  %3670 = vrot.lane.b32.xlu0 %v3654, 108
  %v3671 = vpop.permute.xlu0 %3670
  %v3672 = vsel %vm1286, %v3663, %v3665
  %v3673 = vsel %vm1286, %v3665, %v3667
  %v3674 = vsel %vm1286, %v3667, %v3669
  %v3675 = vsel %vm1286, %v3669, %v3671
  %v3677 = vsel %vm49, %v3656, 0
  %v3679 = vsel %vm53, %v3672, 0
  %v3681 = vsel %vm53, %v3673, 0
  %v3683 = vsel %vm53, %v3674, 0
  %v3685 = vsel %vm53, %v3675, 0
  %v3687 = vsel %vm53, %v3671, 0
  %3689 = vmatprep.subr.mxu0 0.0
  %3690 = vmatpush1.msra.mxu0 0.0
  %3691 = vmatprep.subr.mxu0 0.0
  %3692 = vmatpush1.msra.mxu0 0.0
  %3693 = vmatprep.subr.mxu0 0.0
  %3694 = vmatpush1.msra.mxu0 0.0
  %3695 = vmatprep.subr.mxu0 0.0
  %3696 = vmatpush1.msra.mxu0 0.0
  %3697 = vmatprep.subr.mxu0 0.0
  %3698 = vmatpush1.msra.mxu0 0.0
  %3699 = vmatprep.subr.mxu0 0.0
  %3700 = vmatpush1.msra.mxu0 0.0
  %3701 = vmatprep.subr.mxu0 0.0
  %3702 = vmatpush1.msra.mxu0 0.0
  %3703 = vmatprep.subr.mxu0 0.0
  %3704 = vmatpush1.msra.mxu0 0.0
  %3705 = vmatprep.subr.mxu0 0.0
  %3706 = vmatpush1.msra.mxu0 0.0
  %3707 = vmatprep.subr.mxu0 0.0
  %3708 = vmatpush1.msra.mxu0 0.0
  %3709 = vmatprep.subr.mxu0 0.0
  %3710 = vmatpush1.msra.mxu0 0.0
  %3711 = vmatprep.subr.mxu0 0.0
  %3712 = vmatpush1.msra.mxu0 0.0
  %3713 = vmatprep.subr.mxu0 0.0
  %3714 = vmatpush1.msra.mxu0 0.0
  %3715 = vmatprep.subr.mxu0 0.0
  %3716 = vmatpush1.msra.mxu0 0.0
  %3717 = vmatprep.subr.mxu0 0.0
  %3718 = vmatpush1.msra.mxu0 0.0
  %3719 = vmatprep.subr.mxu0 %v3681
  %3720 = vmatpush1.msra.mxu0 %v3679
  %3721 = vmatprep.subr.mxu0 0.0
  %3722 = vmatpush2.msra.mxu0 0.0
  %3723 = vmatprep.subr.mxu0 0.0
  %3724 = vmatpush2.msra.mxu0 0.0
  %3725 = vmatprep.subr.mxu0 0.0
  %3726 = vmatpush2.msra.mxu0 0.0
  %3727 = vmatprep.subr.mxu0 0.0
  %3728 = vmatpush2.msra.mxu0 0.0
  %3729 = vmatprep.subr.mxu0 0.0
  %3730 = vmatpush2.msra.mxu0 0.0
  %3731 = vmatprep.subr.mxu0 0.0
  %3732 = vmatpush2.msra.mxu0 0.0
  %3733 = vmatprep.subr.mxu0 0.0
  %3734 = vmatpush2.msra.mxu0 0.0
  %3735 = vmatprep.subr.mxu0 0.0
  %3736 = vmatpush2.msra.mxu0 0.0
  %3737 = vmatprep.subr.mxu0 0.0
  %3738 = vmatpush2.msra.mxu0 0.0
  %3739 = vmatprep.subr.mxu0 0.0
  %3740 = vmatpush2.msra.mxu0 0.0
  %3741 = vmatprep.subr.mxu0 0.0
  %3742 = vmatpush2.msra.mxu0 0.0
  %3743 = vmatprep.subr.mxu0 0.0
  %3744 = vmatpush2.msra.mxu0 0.0
  %3745 = vmatprep.subr.mxu0 0.0
  %3746 = vmatpush2.msra.mxu0 0.0
  %3747 = vmatprep.subr.mxu0 0.0
  %3748 = vmatpush2.msra.mxu0 0.0
  %3749 = vmatprep.subr.mxu0 0.0
  %3750 = vmatpush2.msra.mxu0 0.0
  %3751 = vmatprep.subr.mxu0 0.0
  %3752 = vmatpush2.msra.mxu0 0.0
  %3753 = vmatprep.mubr.f32.mxu0 0.0
  %3754 = vmatmul.mubr.f32.gmra.mxu0 %v3677
  %v3755 = vpop.f32.mrf.mxu0
  %v3756 = vadd.f32 0.0, %v3755
  %v3757 = vpop.f32.mrf.mxu0
  %v3758 = vadd.f32 0.0, %v3757
  %3759 = vdwg.mxu0
  %3760 = vmatprep.subr.mxu0 0.0
  %3761 = vmatpush1.msra.mxu0 0.0
  %3762 = vmatprep.subr.mxu0 0.0
  %3763 = vmatpush1.msra.mxu0 0.0
  %3764 = vmatprep.subr.mxu0 0.0
  %3765 = vmatpush1.msra.mxu0 0.0
  %3766 = vmatprep.subr.mxu0 0.0
  %3767 = vmatpush1.msra.mxu0 0.0
  %3768 = vmatprep.subr.mxu0 0.0
  %3769 = vmatpush1.msra.mxu0 0.0
  %3770 = vmatprep.subr.mxu0 0.0
  %3771 = vmatpush1.msra.mxu0 0.0
  %3772 = vmatprep.subr.mxu0 0.0
  %3773 = vmatpush1.msra.mxu0 0.0
  %3774 = vmatprep.subr.mxu0 0.0
  %3775 = vmatpush1.msra.mxu0 0.0
  %3776 = vmatprep.subr.mxu0 0.0
  %3777 = vmatpush1.msra.mxu0 0.0
  %3778 = vmatprep.subr.mxu0 0.0
  %3779 = vmatpush1.msra.mxu0 0.0
  %3780 = vmatprep.subr.mxu0 0.0
  %3781 = vmatpush1.msra.mxu0 0.0
  %3782 = vmatprep.subr.mxu0 0.0
  %3783 = vmatpush1.msra.mxu0 0.0
  %3784 = vmatprep.subr.mxu0 0.0
  %3785 = vmatpush1.msra.mxu0 0.0
  %3786 = vmatprep.subr.mxu0 0.0
  %3787 = vmatpush1.msra.mxu0 0.0
  %3788 = vmatprep.subr.mxu0 0.0
  %3789 = vmatpush1.msra.mxu0 0.0
  %3790 = vmatprep.subr.mxu0 %v3685
  %3791 = vmatpush1.msra.mxu0 %v3683
  %3792 = vmatprep.subr.mxu0 0.0
  %3793 = vmatpush2.msra.mxu0 0.0
  %3794 = vmatprep.subr.mxu0 0.0
  %3795 = vmatpush2.msra.mxu0 0.0
  %3796 = vmatprep.subr.mxu0 0.0
  %3797 = vmatpush2.msra.mxu0 0.0
  %3798 = vmatprep.subr.mxu0 0.0
  %3799 = vmatpush2.msra.mxu0 0.0
  %3800 = vmatprep.subr.mxu0 0.0
  %3801 = vmatpush2.msra.mxu0 0.0
  %3802 = vmatprep.subr.mxu0 0.0
  %3803 = vmatpush2.msra.mxu0 0.0
  %3804 = vmatprep.subr.mxu0 0.0
  %3805 = vmatpush2.msra.mxu0 0.0
  %3806 = vmatprep.subr.mxu0 0.0
  %3807 = vmatpush2.msra.mxu0 0.0
  %3808 = vmatprep.subr.mxu0 0.0
  %3809 = vmatpush2.msra.mxu0 0.0
  %3810 = vmatprep.subr.mxu0 0.0
  %3811 = vmatpush2.msra.mxu0 0.0
  %3812 = vmatprep.subr.mxu0 0.0
  %3813 = vmatpush2.msra.mxu0 0.0
  %3814 = vmatprep.subr.mxu0 0.0
  %3815 = vmatpush2.msra.mxu0 0.0
  %3816 = vmatprep.subr.mxu0 0.0
  %3817 = vmatpush2.msra.mxu0 0.0
  %3818 = vmatprep.subr.mxu0 0.0
  %3819 = vmatpush2.msra.mxu0 0.0
  %3820 = vmatprep.subr.mxu0 0.0
  %3821 = vmatpush2.msra.mxu0 0.0
  %3822 = vmatprep.subr.mxu0 0.0
  %3823 = vmatpush2.msra.mxu0 0.0
  %3824 = vmatprep.mubr.f32.mxu0 0.0
  %3825 = vmatmul.mubr.f32.gmra.mxu0 %v3677
  %v3826 = vpop.f32.mrf.mxu0
  %v3827 = vadd.f32 0.0, %v3826
  %v3828 = vpop.f32.mrf.mxu0
  %v3829 = vadd.f32 0.0, %v3828
  %3830 = vdwg.mxu0
  %3831 = vmatprep.subr.mxu0 0.0
  %3832 = vmatpush1.msra.mxu0 0.0
  %3833 = vmatprep.subr.mxu0 0.0
  %3834 = vmatpush1.msra.mxu0 0.0
  %3835 = vmatprep.subr.mxu0 0.0
  %3836 = vmatpush1.msra.mxu0 0.0
  %3837 = vmatprep.subr.mxu0 0.0
  %3838 = vmatpush1.msra.mxu0 0.0
  %3839 = vmatprep.subr.mxu0 0.0
  %3840 = vmatpush1.msra.mxu0 0.0
  %3841 = vmatprep.subr.mxu0 0.0
  %3842 = vmatpush1.msra.mxu0 0.0
  %3843 = vmatprep.subr.mxu0 0.0
  %3844 = vmatpush1.msra.mxu0 0.0
  %3845 = vmatprep.subr.mxu0 0.0
  %3846 = vmatpush1.msra.mxu0 0.0
  %3847 = vmatprep.subr.mxu0 0.0
  %3848 = vmatpush1.msra.mxu0 0.0
  %3849 = vmatprep.subr.mxu0 0.0
  %3850 = vmatpush1.msra.mxu0 0.0
  %3851 = vmatprep.subr.mxu0 0.0
  %3852 = vmatpush1.msra.mxu0 0.0
  %3853 = vmatprep.subr.mxu0 0.0
  %3854 = vmatpush1.msra.mxu0 0.0
  %3855 = vmatprep.subr.mxu0 0.0
  %3856 = vmatpush1.msra.mxu0 0.0
  %3857 = vmatprep.subr.mxu0 0.0
  %3858 = vmatpush1.msra.mxu0 0.0
  %3859 = vmatprep.subr.mxu0 0.0
  %3860 = vmatpush1.msra.mxu0 0.0
  %3861 = vmatprep.subr.mxu0 0.0
  %3862 = vmatpush1.msra.mxu0 %v3687
  %3863 = vmatprep.subr.mxu0 0.0
  %3864 = vmatpush2.msra.mxu0 0.0
  %3865 = vmatprep.subr.mxu0 0.0
  %3866 = vmatpush2.msra.mxu0 0.0
  %3867 = vmatprep.subr.mxu0 0.0
  %3868 = vmatpush2.msra.mxu0 0.0
  %3869 = vmatprep.subr.mxu0 0.0
  %3870 = vmatpush2.msra.mxu0 0.0
  %3871 = vmatprep.subr.mxu0 0.0
  %3872 = vmatpush2.msra.mxu0 0.0
  %3873 = vmatprep.subr.mxu0 0.0
  %3874 = vmatpush2.msra.mxu0 0.0
  %3875 = vmatprep.subr.mxu0 0.0
  %3876 = vmatpush2.msra.mxu0 0.0
  %3877 = vmatprep.subr.mxu0 0.0
  %3878 = vmatpush2.msra.mxu0 0.0
  %3879 = vmatprep.subr.mxu0 0.0
  %3880 = vmatpush2.msra.mxu0 0.0
  %3881 = vmatprep.subr.mxu0 0.0
  %3882 = vmatpush2.msra.mxu0 0.0
  %3883 = vmatprep.subr.mxu0 0.0
  %3884 = vmatpush2.msra.mxu0 0.0
  %3885 = vmatprep.subr.mxu0 0.0
  %3886 = vmatpush2.msra.mxu0 0.0
  %3887 = vmatprep.subr.mxu0 0.0
  %3888 = vmatpush2.msra.mxu0 0.0
  %3889 = vmatprep.subr.mxu0 0.0
  %3890 = vmatpush2.msra.mxu0 0.0
  %3891 = vmatprep.subr.mxu0 0.0
  %3892 = vmatpush2.msra.mxu0 0.0
  %3893 = vmatprep.subr.mxu0 0.0
  %3894 = vmatpush2.msra.mxu0 0.0
  %3895 = vmatprep.mubr.f32.mxu0 0.0
  %3896 = vmatmul.mubr.f32.gmra.mxu0 %v3677
  %v3897 = vpop.f32.mrf.mxu0
  %v3898 = vadd.f32 0.0, %v3897
  %v3899 = vpop.f32.mrf.mxu0
  %3900 = vdwg.mxu0
  %v3901 = vadd.f32 %v3647, %v3756
  %v3902 = vadd.f32 %v3648, %v3758
  %v3903 = vadd.f32 %v3649, %v3827
  %v3904 = vadd.f32 %v3650, %v3829
  %v3905 = vadd.f32 %v3651, %v3898
  %v3906 = vld [vmem:[#allocation2] sm:$0xff]
  %v3907 = vld [vmem:[#allocation2 + $0x8] sm:$0xff]
  %v3908 = vld [vmem:[#allocation2 + $0x10] sm:$0xff]
  %s3909 = scalar_lea.vmem %s2, 24
  %v3910 = vld [vmem:[%s3909] sm:$0xf]
  %v3914 = vcombine.high %v3906, %v3906
  %v3915 = vcombine.high %v3907, %v3907
  %v3916 = vcombine.high %v3908, %v3908
  %3917 = vrot.lane.b32.xlu0 %v3906, 92
  %v3918 = vpop.permute.xlu0 %3917
  %3919 = vrot.lane.b32.xlu0 %v3914, 92
  %v3920 = vpop.permute.xlu0 %3919
  %3921 = vrot.lane.b32.xlu0 %v3907, 92
  %v3922 = vpop.permute.xlu0 %3921
  %3923 = vrot.lane.b32.xlu0 %v3915, 92
  %v3924 = vpop.permute.xlu0 %3923
  %3925 = vrot.lane.b32.xlu0 %v3908, 92
  %v3926 = vpop.permute.xlu0 %3925
  %3927 = vrot.lane.b32.xlu0 %v3916, 92
  %v3928 = vpop.permute.xlu0 %3927
  %v3929 = vsel %vm1544, %v3918, %v3920
  %v3930 = vsel %vm1544, %v3920, %v3922
  %v3931 = vsel %vm1544, %v3922, %v3924
  %v3932 = vsel %vm1544, %v3924, %v3926
  %v3933 = vsel %vm1544, %v3926, %v3928
  %v3935 = vsel %vm49, %v3910, 0
  %v3937 = vsel %vm53, %v3929, 0
  %v3939 = vsel %vm53, %v3930, 0
  %v3941 = vsel %vm53, %v3931, 0
  %v3943 = vsel %vm53, %v3932, 0
  %v3945 = vsel %vm53, %v3933, 0
  %3947 = vmatprep.subr.mxu0 0.0
  %3948 = vmatpush1.msra.mxu0 0.0
  %3949 = vmatprep.subr.mxu0 0.0
  %3950 = vmatpush1.msra.mxu0 0.0
  %3951 = vmatprep.subr.mxu0 0.0
  %3952 = vmatpush1.msra.mxu0 0.0
  %3953 = vmatprep.subr.mxu0 0.0
  %3954 = vmatpush1.msra.mxu0 0.0
  %3955 = vmatprep.subr.mxu0 0.0
  %3956 = vmatpush1.msra.mxu0 0.0
  %3957 = vmatprep.subr.mxu0 0.0
  %3958 = vmatpush1.msra.mxu0 0.0
  %3959 = vmatprep.subr.mxu0 0.0
  %3960 = vmatpush1.msra.mxu0 0.0
  %3961 = vmatprep.subr.mxu0 0.0
  %3962 = vmatpush1.msra.mxu0 0.0
  %3963 = vmatprep.subr.mxu0 0.0
  %3964 = vmatpush1.msra.mxu0 0.0
  %3965 = vmatprep.subr.mxu0 0.0
  %3966 = vmatpush1.msra.mxu0 0.0
  %3967 = vmatprep.subr.mxu0 0.0
  %3968 = vmatpush1.msra.mxu0 0.0
  %3969 = vmatprep.subr.mxu0 0.0
  %3970 = vmatpush1.msra.mxu0 0.0
  %3971 = vmatprep.subr.mxu0 0.0
  %3972 = vmatpush1.msra.mxu0 0.0
  %3973 = vmatprep.subr.mxu0 0.0
  %3974 = vmatpush1.msra.mxu0 0.0
  %3975 = vmatprep.subr.mxu0 0.0
  %3976 = vmatpush1.msra.mxu0 0.0
  %3977 = vmatprep.subr.mxu0 %v3939
  %3978 = vmatpush1.msra.mxu0 %v3937
  %3979 = vmatprep.subr.mxu0 0.0
  %3980 = vmatpush2.msra.mxu0 0.0
  %3981 = vmatprep.subr.mxu0 0.0
  %3982 = vmatpush2.msra.mxu0 0.0
  %3983 = vmatprep.subr.mxu0 0.0
  %3984 = vmatpush2.msra.mxu0 0.0
  %3985 = vmatprep.subr.mxu0 0.0
  %3986 = vmatpush2.msra.mxu0 0.0
  %3987 = vmatprep.subr.mxu0 0.0
  %3988 = vmatpush2.msra.mxu0 0.0
  %3989 = vmatprep.subr.mxu0 0.0
  %3990 = vmatpush2.msra.mxu0 0.0
  %3991 = vmatprep.subr.mxu0 0.0
  %3992 = vmatpush2.msra.mxu0 0.0
  %3993 = vmatprep.subr.mxu0 0.0
  %3994 = vmatpush2.msra.mxu0 0.0
  %3995 = vmatprep.subr.mxu0 0.0
  %3996 = vmatpush2.msra.mxu0 0.0
  %3997 = vmatprep.subr.mxu0 0.0
  %3998 = vmatpush2.msra.mxu0 0.0
  %3999 = vmatprep.subr.mxu0 0.0
  %4000 = vmatpush2.msra.mxu0 0.0
  %4001 = vmatprep.subr.mxu0 0.0
  %4002 = vmatpush2.msra.mxu0 0.0
  %4003 = vmatprep.subr.mxu0 0.0
  %4004 = vmatpush2.msra.mxu0 0.0
  %4005 = vmatprep.subr.mxu0 0.0
  %4006 = vmatpush2.msra.mxu0 0.0
  %4007 = vmatprep.subr.mxu0 0.0
  %4008 = vmatpush2.msra.mxu0 0.0
  %4009 = vmatprep.subr.mxu0 0.0
  %4010 = vmatpush2.msra.mxu0 0.0
  %4011 = vmatprep.mubr.f32.mxu0 0.0
  %4012 = vmatmul.mubr.f32.gmra.mxu0 %v3935
  %v4013 = vpop.f32.mrf.mxu0
  %v4014 = vadd.f32 0.0, %v4013
  %v4015 = vpop.f32.mrf.mxu0
  %v4016 = vadd.f32 0.0, %v4015
  %4017 = vdwg.mxu0
  %4018 = vmatprep.subr.mxu0 0.0
  %4019 = vmatpush1.msra.mxu0 0.0
  %4020 = vmatprep.subr.mxu0 0.0
  %4021 = vmatpush1.msra.mxu0 0.0
  %4022 = vmatprep.subr.mxu0 0.0
  %4023 = vmatpush1.msra.mxu0 0.0
  %4024 = vmatprep.subr.mxu0 0.0
  %4025 = vmatpush1.msra.mxu0 0.0
  %4026 = vmatprep.subr.mxu0 0.0
  %4027 = vmatpush1.msra.mxu0 0.0
  %4028 = vmatprep.subr.mxu0 0.0
  %4029 = vmatpush1.msra.mxu0 0.0
  %4030 = vmatprep.subr.mxu0 0.0
  %4031 = vmatpush1.msra.mxu0 0.0
  %4032 = vmatprep.subr.mxu0 0.0
  %4033 = vmatpush1.msra.mxu0 0.0
  %4034 = vmatprep.subr.mxu0 0.0
  %4035 = vmatpush1.msra.mxu0 0.0
  %4036 = vmatprep.subr.mxu0 0.0
  %4037 = vmatpush1.msra.mxu0 0.0
  %4038 = vmatprep.subr.mxu0 0.0
  %4039 = vmatpush1.msra.mxu0 0.0
  %4040 = vmatprep.subr.mxu0 0.0
  %4041 = vmatpush1.msra.mxu0 0.0
  %4042 = vmatprep.subr.mxu0 0.0
  %4043 = vmatpush1.msra.mxu0 0.0
  %4044 = vmatprep.subr.mxu0 0.0
  %4045 = vmatpush1.msra.mxu0 0.0
  %4046 = vmatprep.subr.mxu0 0.0
  %4047 = vmatpush1.msra.mxu0 0.0
  %4048 = vmatprep.subr.mxu0 %v3943
  %4049 = vmatpush1.msra.mxu0 %v3941
  %4050 = vmatprep.subr.mxu0 0.0
  %4051 = vmatpush2.msra.mxu0 0.0
  %4052 = vmatprep.subr.mxu0 0.0
  %4053 = vmatpush2.msra.mxu0 0.0
  %4054 = vmatprep.subr.mxu0 0.0
  %4055 = vmatpush2.msra.mxu0 0.0
  %4056 = vmatprep.subr.mxu0 0.0
  %4057 = vmatpush2.msra.mxu0 0.0
  %4058 = vmatprep.subr.mxu0 0.0
  %4059 = vmatpush2.msra.mxu0 0.0
  %4060 = vmatprep.subr.mxu0 0.0
  %4061 = vmatpush2.msra.mxu0 0.0
  %4062 = vmatprep.subr.mxu0 0.0
  %4063 = vmatpush2.msra.mxu0 0.0
  %4064 = vmatprep.subr.mxu0 0.0
  %4065 = vmatpush2.msra.mxu0 0.0
  %4066 = vmatprep.subr.mxu0 0.0
  %4067 = vmatpush2.msra.mxu0 0.0
  %4068 = vmatprep.subr.mxu0 0.0
  %4069 = vmatpush2.msra.mxu0 0.0
  %4070 = vmatprep.subr.mxu0 0.0
  %4071 = vmatpush2.msra.mxu0 0.0
  %4072 = vmatprep.subr.mxu0 0.0
  %4073 = vmatpush2.msra.mxu0 0.0
  %4074 = vmatprep.subr.mxu0 0.0
  %4075 = vmatpush2.msra.mxu0 0.0
  %4076 = vmatprep.subr.mxu0 0.0
  %4077 = vmatpush2.msra.mxu0 0.0
  %4078 = vmatprep.subr.mxu0 0.0
  %4079 = vmatpush2.msra.mxu0 0.0
  %4080 = vmatprep.subr.mxu0 0.0
  %4081 = vmatpush2.msra.mxu0 0.0
  %4082 = vmatprep.mubr.f32.mxu0 0.0
  %4083 = vmatmul.mubr.f32.gmra.mxu0 %v3935
  %v4084 = vpop.f32.mrf.mxu0
  %v4085 = vadd.f32 0.0, %v4084
  %v4086 = vpop.f32.mrf.mxu0
  %v4087 = vadd.f32 0.0, %v4086
  %4088 = vdwg.mxu0
  %4089 = vmatprep.subr.mxu0 0.0
  %4090 = vmatpush1.msra.mxu0 0.0
  %4091 = vmatprep.subr.mxu0 0.0
  %4092 = vmatpush1.msra.mxu0 0.0
  %4093 = vmatprep.subr.mxu0 0.0
  %4094 = vmatpush1.msra.mxu0 0.0
  %4095 = vmatprep.subr.mxu0 0.0
  %4096 = vmatpush1.msra.mxu0 0.0
  %4097 = vmatprep.subr.mxu0 0.0
  %4098 = vmatpush1.msra.mxu0 0.0
  %4099 = vmatprep.subr.mxu0 0.0
  %4100 = vmatpush1.msra.mxu0 0.0
  %4101 = vmatprep.subr.mxu0 0.0
  %4102 = vmatpush1.msra.mxu0 0.0
  %4103 = vmatprep.subr.mxu0 0.0
  %4104 = vmatpush1.msra.mxu0 0.0
  %4105 = vmatprep.subr.mxu0 0.0
  %4106 = vmatpush1.msra.mxu0 0.0
  %4107 = vmatprep.subr.mxu0 0.0
  %4108 = vmatpush1.msra.mxu0 0.0
  %4109 = vmatprep.subr.mxu0 0.0
  %4110 = vmatpush1.msra.mxu0 0.0
  %4111 = vmatprep.subr.mxu0 0.0
  %4112 = vmatpush1.msra.mxu0 0.0
  %4113 = vmatprep.subr.mxu0 0.0
  %4114 = vmatpush1.msra.mxu0 0.0
  %4115 = vmatprep.subr.mxu0 0.0
  %4116 = vmatpush1.msra.mxu0 0.0
  %4117 = vmatprep.subr.mxu0 0.0
  %4118 = vmatpush1.msra.mxu0 0.0
  %4119 = vmatprep.subr.mxu0 0.0
  %4120 = vmatpush1.msra.mxu0 %v3945
  %4121 = vmatprep.subr.mxu0 0.0
  %4122 = vmatpush2.msra.mxu0 0.0
  %4123 = vmatprep.subr.mxu0 0.0
  %4124 = vmatpush2.msra.mxu0 0.0
  %4125 = vmatprep.subr.mxu0 0.0
  %4126 = vmatpush2.msra.mxu0 0.0
  %4127 = vmatprep.subr.mxu0 0.0
  %4128 = vmatpush2.msra.mxu0 0.0
  %4129 = vmatprep.subr.mxu0 0.0
  %4130 = vmatpush2.msra.mxu0 0.0
  %4131 = vmatprep.subr.mxu0 0.0
  %4132 = vmatpush2.msra.mxu0 0.0
  %4133 = vmatprep.subr.mxu0 0.0
  %4134 = vmatpush2.msra.mxu0 0.0
  %4135 = vmatprep.subr.mxu0 0.0
  %4136 = vmatpush2.msra.mxu0 0.0
  %4137 = vmatprep.subr.mxu0 0.0
  %4138 = vmatpush2.msra.mxu0 0.0
  %4139 = vmatprep.subr.mxu0 0.0
  %4140 = vmatpush2.msra.mxu0 0.0
  %4141 = vmatprep.subr.mxu0 0.0
  %4142 = vmatpush2.msra.mxu0 0.0
  %4143 = vmatprep.subr.mxu0 0.0
  %4144 = vmatpush2.msra.mxu0 0.0
  %4145 = vmatprep.subr.mxu0 0.0
  %4146 = vmatpush2.msra.mxu0 0.0
  %4147 = vmatprep.subr.mxu0 0.0
  %4148 = vmatpush2.msra.mxu0 0.0
  %4149 = vmatprep.subr.mxu0 0.0
  %4150 = vmatpush2.msra.mxu0 0.0
  %4151 = vmatprep.subr.mxu0 0.0
  %4152 = vmatpush2.msra.mxu0 0.0
  %4153 = vmatprep.mubr.f32.mxu0 0.0
  %4154 = vmatmul.mubr.f32.gmra.mxu0 %v3935
  %v4155 = vpop.f32.mrf.mxu0
  %v4156 = vadd.f32 0.0, %v4155
  %v4157 = vpop.f32.mrf.mxu0
  %4158 = vdwg.mxu0
  %v4159 = vadd.f32 %v3901, %v4014
  %v4160 = vadd.f32 %v3902, %v4016
  %v4161 = vadd.f32 %v3903, %v4085
  %v4162 = vadd.f32 %v3904, %v4087
  %v4163 = vadd.f32 %v3905, %v4156
  %v4164 = vld [vmem:[#allocation2] sm:$0xff]
  %v4165 = vld [vmem:[#allocation2 + $0x8] sm:$0xff]
  %v4166 = vld [vmem:[#allocation2 + $0x10] sm:$0xff]
  %s4167 = scalar_lea.vmem %s2, 28
  %v4168 = vld [vmem:[%s4167] sm:$0xf]
  %v4172 = vcombine.high %v4164, %v4164
  %v4173 = vcombine.high %v4165, %v4165
  %v4174 = vcombine.high %v4166, %v4166
  %4175 = vrot.lane.b32.xlu0 %v4164, 91
  %v4176 = vpop.permute.xlu0 %4175
  %4177 = vrot.lane.b32.xlu0 %v4172, 91
  %v4178 = vpop.permute.xlu0 %4177
  %4179 = vrot.lane.b32.xlu0 %v4165, 91
  %v4180 = vpop.permute.xlu0 %4179
  %4181 = vrot.lane.b32.xlu0 %v4173, 91
  %v4182 = vpop.permute.xlu0 %4181
  %4183 = vrot.lane.b32.xlu0 %v4166, 91
  %v4184 = vpop.permute.xlu0 %4183
  %4185 = vrot.lane.b32.xlu0 %v4174, 91
  %v4186 = vpop.permute.xlu0 %4185
  %v4187 = vsel %vm1803, %v4176, %v4178
  %v4188 = vsel %vm1803, %v4178, %v4180
  %v4189 = vsel %vm1803, %v4180, %v4182
  %v4190 = vsel %vm1803, %v4182, %v4184
  %v4191 = vsel %vm1803, %v4184, %v4186
  %v4193 = vsel %vm49, %v4168, 0
  %v4195 = vsel %vm53, %v4187, 0
  %v4197 = vsel %vm53, %v4188, 0
  %v4199 = vsel %vm53, %v4189, 0
  %v4201 = vsel %vm53, %v4190, 0
  %v4203 = vsel %vm53, %v4191, 0
  %4205 = vmatprep.subr.mxu0 0.0
  %4206 = vmatpush1.msra.mxu0 0.0
  %4207 = vmatprep.subr.mxu0 0.0
  %4208 = vmatpush1.msra.mxu0 0.0
  %4209 = vmatprep.subr.mxu0 0.0
  %4210 = vmatpush1.msra.mxu0 0.0
  %4211 = vmatprep.subr.mxu0 0.0
  %4212 = vmatpush1.msra.mxu0 0.0
  %4213 = vmatprep.subr.mxu0 0.0
  %4214 = vmatpush1.msra.mxu0 0.0
  %4215 = vmatprep.subr.mxu0 0.0
  %4216 = vmatpush1.msra.mxu0 0.0
  %4217 = vmatprep.subr.mxu0 0.0
  %4218 = vmatpush1.msra.mxu0 0.0
  %4219 = vmatprep.subr.mxu0 0.0
  %4220 = vmatpush1.msra.mxu0 0.0
  %4221 = vmatprep.subr.mxu0 0.0
  %4222 = vmatpush1.msra.mxu0 0.0
  %4223 = vmatprep.subr.mxu0 0.0
  %4224 = vmatpush1.msra.mxu0 0.0
  %4225 = vmatprep.subr.mxu0 0.0
  %4226 = vmatpush1.msra.mxu0 0.0
  %4227 = vmatprep.subr.mxu0 0.0
  %4228 = vmatpush1.msra.mxu0 0.0
  %4229 = vmatprep.subr.mxu0 0.0
  %4230 = vmatpush1.msra.mxu0 0.0
  %4231 = vmatprep.subr.mxu0 0.0
  %4232 = vmatpush1.msra.mxu0 0.0
  %4233 = vmatprep.subr.mxu0 0.0
  %4234 = vmatpush1.msra.mxu0 0.0
  %4235 = vmatprep.subr.mxu0 %v4197
  %4236 = vmatpush1.msra.mxu0 %v4195
  %4237 = vmatprep.subr.mxu0 0.0
  %4238 = vmatpush2.msra.mxu0 0.0
  %4239 = vmatprep.subr.mxu0 0.0
  %4240 = vmatpush2.msra.mxu0 0.0
  %4241 = vmatprep.subr.mxu0 0.0
  %4242 = vmatpush2.msra.mxu0 0.0
  %4243 = vmatprep.subr.mxu0 0.0
  %4244 = vmatpush2.msra.mxu0 0.0
  %4245 = vmatprep.subr.mxu0 0.0
  %4246 = vmatpush2.msra.mxu0 0.0
  %4247 = vmatprep.subr.mxu0 0.0
  %4248 = vmatpush2.msra.mxu0 0.0
  %4249 = vmatprep.subr.mxu0 0.0
  %4250 = vmatpush2.msra.mxu0 0.0
  %4251 = vmatprep.subr.mxu0 0.0
  %4252 = vmatpush2.msra.mxu0 0.0
  %4253 = vmatprep.subr.mxu0 0.0
  %4254 = vmatpush2.msra.mxu0 0.0
  %4255 = vmatprep.subr.mxu0 0.0
  %4256 = vmatpush2.msra.mxu0 0.0
  %4257 = vmatprep.subr.mxu0 0.0
  %4258 = vmatpush2.msra.mxu0 0.0
  %4259 = vmatprep.subr.mxu0 0.0
  %4260 = vmatpush2.msra.mxu0 0.0
  %4261 = vmatprep.subr.mxu0 0.0
  %4262 = vmatpush2.msra.mxu0 0.0
  %4263 = vmatprep.subr.mxu0 0.0
  %4264 = vmatpush2.msra.mxu0 0.0
  %4265 = vmatprep.subr.mxu0 0.0
  %4266 = vmatpush2.msra.mxu0 0.0
  %4267 = vmatprep.subr.mxu0 0.0
  %4268 = vmatpush2.msra.mxu0 0.0
  %4269 = vmatprep.mubr.f32.mxu0 0.0
  %4270 = vmatmul.mubr.f32.gmra.mxu0 %v4193
  %v4271 = vpop.f32.mrf.mxu0
  %v4272 = vadd.f32 0.0, %v4271
  %v4273 = vpop.f32.mrf.mxu0
  %v4274 = vadd.f32 0.0, %v4273
  %4275 = vdwg.mxu0
  %4276 = vmatprep.subr.mxu0 0.0
  %4277 = vmatpush1.msra.mxu0 0.0
  %4278 = vmatprep.subr.mxu0 0.0
  %4279 = vmatpush1.msra.mxu0 0.0
  %4280 = vmatprep.subr.mxu0 0.0
  %4281 = vmatpush1.msra.mxu0 0.0
  %4282 = vmatprep.subr.mxu0 0.0
  %4283 = vmatpush1.msra.mxu0 0.0
  %4284 = vmatprep.subr.mxu0 0.0
  %4285 = vmatpush1.msra.mxu0 0.0
  %4286 = vmatprep.subr.mxu0 0.0
  %4287 = vmatpush1.msra.mxu0 0.0
  %4288 = vmatprep.subr.mxu0 0.0
  %4289 = vmatpush1.msra.mxu0 0.0
  %4290 = vmatprep.subr.mxu0 0.0
  %4291 = vmatpush1.msra.mxu0 0.0
  %4292 = vmatprep.subr.mxu0 0.0
  %4293 = vmatpush1.msra.mxu0 0.0
  %4294 = vmatprep.subr.mxu0 0.0
  %4295 = vmatpush1.msra.mxu0 0.0
  %4296 = vmatprep.subr.mxu0 0.0
  %4297 = vmatpush1.msra.mxu0 0.0
  %4298 = vmatprep.subr.mxu0 0.0
  %4299 = vmatpush1.msra.mxu0 0.0
  %4300 = vmatprep.subr.mxu0 0.0
  %4301 = vmatpush1.msra.mxu0 0.0
  %4302 = vmatprep.subr.mxu0 0.0
  %4303 = vmatpush1.msra.mxu0 0.0
  %4304 = vmatprep.subr.mxu0 0.0
  %4305 = vmatpush1.msra.mxu0 0.0
  %4306 = vmatprep.subr.mxu0 %v4201
  %4307 = vmatpush1.msra.mxu0 %v4199
  %4308 = vmatprep.subr.mxu0 0.0
  %4309 = vmatpush2.msra.mxu0 0.0
  %4310 = vmatprep.subr.mxu0 0.0
  %4311 = vmatpush2.msra.mxu0 0.0
  %4312 = vmatprep.subr.mxu0 0.0
  %4313 = vmatpush2.msra.mxu0 0.0
  %4314 = vmatprep.subr.mxu0 0.0
  %4315 = vmatpush2.msra.mxu0 0.0
  %4316 = vmatprep.subr.mxu0 0.0
  %4317 = vmatpush2.msra.mxu0 0.0
  %4318 = vmatprep.subr.mxu0 0.0
  %4319 = vmatpush2.msra.mxu0 0.0
  %4320 = vmatprep.subr.mxu0 0.0
  %4321 = vmatpush2.msra.mxu0 0.0
  %4322 = vmatprep.subr.mxu0 0.0
  %4323 = vmatpush2.msra.mxu0 0.0
  %4324 = vmatprep.subr.mxu0 0.0
  %4325 = vmatpush2.msra.mxu0 0.0
  %4326 = vmatprep.subr.mxu0 0.0
  %4327 = vmatpush2.msra.mxu0 0.0
  %4328 = vmatprep.subr.mxu0 0.0
  %4329 = vmatpush2.msra.mxu0 0.0
  %4330 = vmatprep.subr.mxu0 0.0
  %4331 = vmatpush2.msra.mxu0 0.0
  %4332 = vmatprep.subr.mxu0 0.0
  %4333 = vmatpush2.msra.mxu0 0.0
  %4334 = vmatprep.subr.mxu0 0.0
  %4335 = vmatpush2.msra.mxu0 0.0
  %4336 = vmatprep.subr.mxu0 0.0
  %4337 = vmatpush2.msra.mxu0 0.0
  %4338 = vmatprep.subr.mxu0 0.0
  %4339 = vmatpush2.msra.mxu0 0.0
  %4340 = vmatprep.mubr.f32.mxu0 0.0
  %4341 = vmatmul.mubr.f32.gmra.mxu0 %v4193
  %v4342 = vpop.f32.mrf.mxu0
  %v4343 = vadd.f32 0.0, %v4342
  %v4344 = vpop.f32.mrf.mxu0
  %v4345 = vadd.f32 0.0, %v4344
  %4346 = vdwg.mxu0
  %4347 = vmatprep.subr.mxu0 0.0
  %4348 = vmatpush1.msra.mxu0 0.0
  %4349 = vmatprep.subr.mxu0 0.0
  %4350 = vmatpush1.msra.mxu0 0.0
  %4351 = vmatprep.subr.mxu0 0.0
  %4352 = vmatpush1.msra.mxu0 0.0
  %4353 = vmatprep.subr.mxu0 0.0
  %4354 = vmatpush1.msra.mxu0 0.0
  %4355 = vmatprep.subr.mxu0 0.0
  %4356 = vmatpush1.msra.mxu0 0.0
  %4357 = vmatprep.subr.mxu0 0.0
  %4358 = vmatpush1.msra.mxu0 0.0
  %4359 = vmatprep.subr.mxu0 0.0
  %4360 = vmatpush1.msra.mxu0 0.0
  %4361 = vmatprep.subr.mxu0 0.0
  %4362 = vmatpush1.msra.mxu0 0.0
  %4363 = vmatprep.subr.mxu0 0.0
  %4364 = vmatpush1.msra.mxu0 0.0
  %4365 = vmatprep.subr.mxu0 0.0
  %4366 = vmatpush1.msra.mxu0 0.0
  %4367 = vmatprep.subr.mxu0 0.0
  %4368 = vmatpush1.msra.mxu0 0.0
  %4369 = vmatprep.subr.mxu0 0.0
  %4370 = vmatpush1.msra.mxu0 0.0
  %4371 = vmatprep.subr.mxu0 0.0
  %4372 = vmatpush1.msra.mxu0 0.0
  %4373 = vmatprep.subr.mxu0 0.0
  %4374 = vmatpush1.msra.mxu0 0.0
  %4375 = vmatprep.subr.mxu0 0.0
  %4376 = vmatpush1.msra.mxu0 0.0
  %4377 = vmatprep.subr.mxu0 0.0
  %4378 = vmatpush1.msra.mxu0 %v4203
  %4379 = vmatprep.subr.mxu0 0.0
  %4380 = vmatpush2.msra.mxu0 0.0
  %4381 = vmatprep.subr.mxu0 0.0
  %4382 = vmatpush2.msra.mxu0 0.0
  %4383 = vmatprep.subr.mxu0 0.0
  %4384 = vmatpush2.msra.mxu0 0.0
  %4385 = vmatprep.subr.mxu0 0.0
  %4386 = vmatpush2.msra.mxu0 0.0
  %4387 = vmatprep.subr.mxu0 0.0
  %4388 = vmatpush2.msra.mxu0 0.0
  %4389 = vmatprep.subr.mxu0 0.0
  %4390 = vmatpush2.msra.mxu0 0.0
  %4391 = vmatprep.subr.mxu0 0.0
  %4392 = vmatpush2.msra.mxu0 0.0
  %4393 = vmatprep.subr.mxu0 0.0
  %4394 = vmatpush2.msra.mxu0 0.0
  %4395 = vmatprep.subr.mxu0 0.0
  %4396 = vmatpush2.msra.mxu0 0.0
  %4397 = vmatprep.subr.mxu0 0.0
  %4398 = vmatpush2.msra.mxu0 0.0
  %4399 = vmatprep.subr.mxu0 0.0
  %4400 = vmatpush2.msra.mxu0 0.0
  %4401 = vmatprep.subr.mxu0 0.0
  %4402 = vmatpush2.msra.mxu0 0.0
  %4403 = vmatprep.subr.mxu0 0.0
  %4404 = vmatpush2.msra.mxu0 0.0
  %4405 = vmatprep.subr.mxu0 0.0
  %4406 = vmatpush2.msra.mxu0 0.0
  %4407 = vmatprep.subr.mxu0 0.0
  %4408 = vmatpush2.msra.mxu0 0.0
  %4409 = vmatprep.subr.mxu0 0.0
  %4410 = vmatpush2.msra.mxu0 0.0
  %4411 = vmatprep.mubr.f32.mxu0 0.0
  %4412 = vmatmul.mubr.f32.gmra.mxu0 %v4193
  %v4413 = vpop.f32.mrf.mxu0
  %v4414 = vadd.f32 0.0, %v4413
  %v4415 = vpop.f32.mrf.mxu0
  %4416 = vdwg.mxu0
  %v4417 = vadd.f32 %v4159, %v4272
  %v4418 = vadd.f32 %v4160, %v4274
  %v4419 = vadd.f32 %v4161, %v4343
  %v4420 = vadd.f32 %v4162, %v4345
  %v4421 = vadd.f32 %v4163, %v4414
  %v4422 = vld [vmem:[#allocation2] sm:$0xff]
  %v4423 = vld [vmem:[#allocation2 + $0x8] sm:$0xff]
  %v4424 = vld [vmem:[#allocation2 + $0x10] sm:$0xff]
  %s4425 = scalar_lea.vmem %s2, 32
  %v4426 = vld [vmem:[%s4425] sm:$0xf]
  %v4430 = vcombine.high %v4422, %v4422
  %v4431 = vcombine.high %v4423, %v4423
  %v4432 = vcombine.high %v4424, %v4424
  %4433 = vrot.lane.b32.xlu0 %v4422, 90
  %v4434 = vpop.permute.xlu0 %4433
  %4435 = vrot.lane.b32.xlu0 %v4430, 90
  %v4436 = vpop.permute.xlu0 %4435
  %4437 = vrot.lane.b32.xlu0 %v4423, 90
  %v4438 = vpop.permute.xlu0 %4437
  %4439 = vrot.lane.b32.xlu0 %v4431, 90
  %v4440 = vpop.permute.xlu0 %4439
  %4441 = vrot.lane.b32.xlu0 %v4424, 90
  %v4442 = vpop.permute.xlu0 %4441
  %4443 = vrot.lane.b32.xlu0 %v4432, 90
  %v4444 = vpop.permute.xlu0 %4443
  %v4445 = vsel %vm2062, %v4434, %v4436
  %v4446 = vsel %vm2062, %v4436, %v4438
  %v4447 = vsel %vm2062, %v4438, %v4440
  %v4448 = vsel %vm2062, %v4440, %v4442
  %v4449 = vsel %vm2062, %v4442, %v4444
  %v4451 = vsel %vm49, %v4426, 0
  %v4453 = vsel %vm53, %v4445, 0
  %v4455 = vsel %vm53, %v4446, 0
  %v4457 = vsel %vm53, %v4447, 0
  %v4459 = vsel %vm53, %v4448, 0
  %v4461 = vsel %vm53, %v4449, 0
  %4463 = vmatprep.subr.mxu0 0.0
  %4464 = vmatpush1.msra.mxu0 0.0
  %4465 = vmatprep.subr.mxu0 0.0
  %4466 = vmatpush1.msra.mxu0 0.0
  %4467 = vmatprep.subr.mxu0 0.0
  %4468 = vmatpush1.msra.mxu0 0.0
  %4469 = vmatprep.subr.mxu0 0.0
  %4470 = vmatpush1.msra.mxu0 0.0
  %4471 = vmatprep.subr.mxu0 0.0
  %4472 = vmatpush1.msra.mxu0 0.0
  %4473 = vmatprep.subr.mxu0 0.0
  %4474 = vmatpush1.msra.mxu0 0.0
  %4475 = vmatprep.subr.mxu0 0.0
  %4476 = vmatpush1.msra.mxu0 0.0
  %4477 = vmatprep.subr.mxu0 0.0
  %4478 = vmatpush1.msra.mxu0 0.0
  %4479 = vmatprep.subr.mxu0 0.0
  %4480 = vmatpush1.msra.mxu0 0.0
  %4481 = vmatprep.subr.mxu0 0.0
  %4482 = vmatpush1.msra.mxu0 0.0
  %4483 = vmatprep.subr.mxu0 0.0
  %4484 = vmatpush1.msra.mxu0 0.0
  %4485 = vmatprep.subr.mxu0 0.0
  %4486 = vmatpush1.msra.mxu0 0.0
  %4487 = vmatprep.subr.mxu0 0.0
  %4488 = vmatpush1.msra.mxu0 0.0
  %4489 = vmatprep.subr.mxu0 0.0
  %4490 = vmatpush1.msra.mxu0 0.0
  %4491 = vmatprep.subr.mxu0 0.0
  %4492 = vmatpush1.msra.mxu0 0.0
  %4493 = vmatprep.subr.mxu0 %v4455
  %4494 = vmatpush1.msra.mxu0 %v4453
  %4495 = vmatprep.subr.mxu0 0.0
  %4496 = vmatpush2.msra.mxu0 0.0
  %4497 = vmatprep.subr.mxu0 0.0
  %4498 = vmatpush2.msra.mxu0 0.0
  %4499 = vmatprep.subr.mxu0 0.0
  %4500 = vmatpush2.msra.mxu0 0.0
  %4501 = vmatprep.subr.mxu0 0.0
  %4502 = vmatpush2.msra.mxu0 0.0
  %4503 = vmatprep.subr.mxu0 0.0
  %4504 = vmatpush2.msra.mxu0 0.0
  %4505 = vmatprep.subr.mxu0 0.0
  %4506 = vmatpush2.msra.mxu0 0.0
  %4507 = vmatprep.subr.mxu0 0.0
  %4508 = vmatpush2.msra.mxu0 0.0
  %4509 = vmatprep.subr.mxu0 0.0
  %4510 = vmatpush2.msra.mxu0 0.0
  %4511 = vmatprep.subr.mxu0 0.0
  %4512 = vmatpush2.msra.mxu0 0.0
  %4513 = vmatprep.subr.mxu0 0.0
  %4514 = vmatpush2.msra.mxu0 0.0
  %4515 = vmatprep.subr.mxu0 0.0
  %4516 = vmatpush2.msra.mxu0 0.0
  %4517 = vmatprep.subr.mxu0 0.0
  %4518 = vmatpush2.msra.mxu0 0.0
  %4519 = vmatprep.subr.mxu0 0.0
  %4520 = vmatpush2.msra.mxu0 0.0
  %4521 = vmatprep.subr.mxu0 0.0
  %4522 = vmatpush2.msra.mxu0 0.0
  %4523 = vmatprep.subr.mxu0 0.0
  %4524 = vmatpush2.msra.mxu0 0.0
  %4525 = vmatprep.subr.mxu0 0.0
  %4526 = vmatpush2.msra.mxu0 0.0
  %4527 = vmatprep.mubr.f32.mxu0 0.0
  %4528 = vmatmul.mubr.f32.gmra.mxu0 %v4451
  %v4529 = vpop.f32.mrf.mxu0
  %v4530 = vadd.f32 0.0, %v4529
  %v4531 = vpop.f32.mrf.mxu0
  %v4532 = vadd.f32 0.0, %v4531
  %4533 = vdwg.mxu0
  %4534 = vmatprep.subr.mxu0 0.0
  %4535 = vmatpush1.msra.mxu0 0.0
  %4536 = vmatprep.subr.mxu0 0.0
  %4537 = vmatpush1.msra.mxu0 0.0
  %4538 = vmatprep.subr.mxu0 0.0
  %4539 = vmatpush1.msra.mxu0 0.0
  %4540 = vmatprep.subr.mxu0 0.0
  %4541 = vmatpush1.msra.mxu0 0.0
  %4542 = vmatprep.subr.mxu0 0.0
  %4543 = vmatpush1.msra.mxu0 0.0
  %4544 = vmatprep.subr.mxu0 0.0
  %4545 = vmatpush1.msra.mxu0 0.0
  %4546 = vmatprep.subr.mxu0 0.0
  %4547 = vmatpush1.msra.mxu0 0.0
  %4548 = vmatprep.subr.mxu0 0.0
  %4549 = vmatpush1.msra.mxu0 0.0
  %4550 = vmatprep.subr.mxu0 0.0
  %4551 = vmatpush1.msra.mxu0 0.0
  %4552 = vmatprep.subr.mxu0 0.0
  %4553 = vmatpush1.msra.mxu0 0.0
  %4554 = vmatprep.subr.mxu0 0.0
  %4555 = vmatpush1.msra.mxu0 0.0
  %4556 = vmatprep.subr.mxu0 0.0
  %4557 = vmatpush1.msra.mxu0 0.0
  %4558 = vmatprep.subr.mxu0 0.0
  %4559 = vmatpush1.msra.mxu0 0.0
  %4560 = vmatprep.subr.mxu0 0.0
  %4561 = vmatpush1.msra.mxu0 0.0
  %4562 = vmatprep.subr.mxu0 0.0
  %4563 = vmatpush1.msra.mxu0 0.0
  %4564 = vmatprep.subr.mxu0 %v4459
  %4565 = vmatpush1.msra.mxu0 %v4457
  %4566 = vmatprep.subr.mxu0 0.0
  %4567 = vmatpush2.msra.mxu0 0.0
  %4568 = vmatprep.subr.mxu0 0.0
  %4569 = vmatpush2.msra.mxu0 0.0
  %4570 = vmatprep.subr.mxu0 0.0
  %4571 = vmatpush2.msra.mxu0 0.0
  %4572 = vmatprep.subr.mxu0 0.0
  %4573 = vmatpush2.msra.mxu0 0.0
  %4574 = vmatprep.subr.mxu0 0.0
  %4575 = vmatpush2.msra.mxu0 0.0
  %4576 = vmatprep.subr.mxu0 0.0
  %4577 = vmatpush2.msra.mxu0 0.0
  %4578 = vmatprep.subr.mxu0 0.0
  %4579 = vmatpush2.msra.mxu0 0.0
  %4580 = vmatprep.subr.mxu0 0.0
  %4581 = vmatpush2.msra.mxu0 0.0
  %4582 = vmatprep.subr.mxu0 0.0
  %4583 = vmatpush2.msra.mxu0 0.0
  %4584 = vmatprep.subr.mxu0 0.0
  %4585 = vmatpush2.msra.mxu0 0.0
  %4586 = vmatprep.subr.mxu0 0.0
  %4587 = vmatpush2.msra.mxu0 0.0
  %4588 = vmatprep.subr.mxu0 0.0
  %4589 = vmatpush2.msra.mxu0 0.0
  %4590 = vmatprep.subr.mxu0 0.0
  %4591 = vmatpush2.msra.mxu0 0.0
  %4592 = vmatprep.subr.mxu0 0.0
  %4593 = vmatpush2.msra.mxu0 0.0
  %4594 = vmatprep.subr.mxu0 0.0
  %4595 = vmatpush2.msra.mxu0 0.0
  %4596 = vmatprep.subr.mxu0 0.0
  %4597 = vmatpush2.msra.mxu0 0.0
  %4598 = vmatprep.mubr.f32.mxu0 0.0
  %4599 = vmatmul.mubr.f32.gmra.mxu0 %v4451
  %v4600 = vpop.f32.mrf.mxu0
  %v4601 = vadd.f32 0.0, %v4600
  %v4602 = vpop.f32.mrf.mxu0
  %v4603 = vadd.f32 0.0, %v4602
  %4604 = vdwg.mxu0
  %4605 = vmatprep.subr.mxu0 0.0
  %4606 = vmatpush1.msra.mxu0 0.0
  %4607 = vmatprep.subr.mxu0 0.0
  %4608 = vmatpush1.msra.mxu0 0.0
  %4609 = vmatprep.subr.mxu0 0.0
  %4610 = vmatpush1.msra.mxu0 0.0
  %4611 = vmatprep.subr.mxu0 0.0
  %4612 = vmatpush1.msra.mxu0 0.0
  %4613 = vmatprep.subr.mxu0 0.0
  %4614 = vmatpush1.msra.mxu0 0.0
  %4615 = vmatprep.subr.mxu0 0.0
  %4616 = vmatpush1.msra.mxu0 0.0
  %4617 = vmatprep.subr.mxu0 0.0
  %4618 = vmatpush1.msra.mxu0 0.0
  %4619 = vmatprep.subr.mxu0 0.0
  %4620 = vmatpush1.msra.mxu0 0.0
  %4621 = vmatprep.subr.mxu0 0.0
  %4622 = vmatpush1.msra.mxu0 0.0
  %4623 = vmatprep.subr.mxu0 0.0
  %4624 = vmatpush1.msra.mxu0 0.0
  %4625 = vmatprep.subr.mxu0 0.0
  %4626 = vmatpush1.msra.mxu0 0.0
  %4627 = vmatprep.subr.mxu0 0.0
  %4628 = vmatpush1.msra.mxu0 0.0
  %4629 = vmatprep.subr.mxu0 0.0
  %4630 = vmatpush1.msra.mxu0 0.0
  %4631 = vmatprep.subr.mxu0 0.0
  %4632 = vmatpush1.msra.mxu0 0.0
  %4633 = vmatprep.subr.mxu0 0.0
  %4634 = vmatpush1.msra.mxu0 0.0
  %4635 = vmatprep.subr.mxu0 0.0
  %4636 = vmatpush1.msra.mxu0 %v4461
  %4637 = vmatprep.subr.mxu0 0.0
  %4638 = vmatpush2.msra.mxu0 0.0
  %4639 = vmatprep.subr.mxu0 0.0
  %4640 = vmatpush2.msra.mxu0 0.0
  %4641 = vmatprep.subr.mxu0 0.0
  %4642 = vmatpush2.msra.mxu0 0.0
  %4643 = vmatprep.subr.mxu0 0.0
  %4644 = vmatpush2.msra.mxu0 0.0
  %4645 = vmatprep.subr.mxu0 0.0
  %4646 = vmatpush2.msra.mxu0 0.0
  %4647 = vmatprep.subr.mxu0 0.0
  %4648 = vmatpush2.msra.mxu0 0.0
  %4649 = vmatprep.subr.mxu0 0.0
  %4650 = vmatpush2.msra.mxu0 0.0
  %4651 = vmatprep.subr.mxu0 0.0
  %4652 = vmatpush2.msra.mxu0 0.0
  %4653 = vmatprep.subr.mxu0 0.0
  %4654 = vmatpush2.msra.mxu0 0.0
  %4655 = vmatprep.subr.mxu0 0.0
  %4656 = vmatpush2.msra.mxu0 0.0
  %4657 = vmatprep.subr.mxu0 0.0
  %4658 = vmatpush2.msra.mxu0 0.0
  %4659 = vmatprep.subr.mxu0 0.0
  %4660 = vmatpush2.msra.mxu0 0.0
  %4661 = vmatprep.subr.mxu0 0.0
  %4662 = vmatpush2.msra.mxu0 0.0
  %4663 = vmatprep.subr.mxu0 0.0
  %4664 = vmatpush2.msra.mxu0 0.0
  %4665 = vmatprep.subr.mxu0 0.0
  %4666 = vmatpush2.msra.mxu0 0.0
  %4667 = vmatprep.subr.mxu0 0.0
  %4668 = vmatpush2.msra.mxu0 0.0
  %4669 = vmatprep.mubr.f32.mxu0 0.0
  %4670 = vmatmul.mubr.f32.gmra.mxu0 %v4451
  %v4671 = vpop.f32.mrf.mxu0
  %v4672 = vadd.f32 0.0, %v4671
  %v4673 = vpop.f32.mrf.mxu0
  %4674 = vdwg.mxu0
  %v4675 = vadd.f32 %v4417, %v4530
  %v4676 = vadd.f32 %v4418, %v4532
  %v4677 = vadd.f32 %v4419, %v4601
  %v4678 = vadd.f32 %v4420, %v4603
  %v4679 = vadd.f32 %v4421, %v4672
  %v4680 = vld [vmem:[%s4] sm:$0xf]
  %4682 = vset.pattern.permute.xlu0 0
  %4683 = vperm.xlu0 %4682, %v4680
  %v4684 = vpop.permute.xlu0 %4683
  %v4686 = vadd.f32 %v4675, %v4684
  %v4687 = vadd.f32 %v4676, %v4684
  %v4688 = vadd.f32 %v4677, %v4684
  %v4689 = vadd.f32 %v4678, %v4684
  %v4690 = vadd.f32 %v4679, %v4684
  %v4695 = vcombine.low %v4686, %v4687
  %v4696 = vcombine.low %v4688, %v4689
  %4699 = vst [vmem:[%s6] sm:$0xff] %v4695
  %4700 = vst [vmem:[%s6 + $0x8] sm:$0xff] %v4696
  %vm4701 = vcmask 797696
  %4702 = vst.msk [vmem:[%s6 + $0x10] sm:$0xf] %vm4701, %v4690
  // Predicated region
  $region26: #{diff_forward.1} parent=0 // pred_check
    _
  $region27: #{diff_forward.1} parent=0 // pred_check_branch
    %4704 = sbr.rel (0) target = $region29
  $region28: #{diff_forward.1} parent=0 // pred_region
    _
  $region29: #{diff_forward.1} parent=0 // pred_fallthru
    _
  // Predicated region
  $region30: #{diff_forward.1} parent=0 // pred_check
    _
  $region31: #{diff_forward.1} parent=0 // pred_check_branch
    %4706 = sbr.rel (0) target = $region33
  $region32: #{diff_forward.1} parent=0 // pred_region
    _
  $region33: #{diff_forward.1} parent=0 // pred_fallthru
    _

</llo_original>
